<compile_context>
chip_gen: v5e
topology: v5e:2x2
jax: 0.10.0
libtpu: 0.0.40
codegen_flags: <defaults>
</compile_context>

<pallas_src>
import functools

import jax
import jax.numpy as jnp
from jax.experimental import pallas as pl
from jax.experimental.pallas import tpu as pltpu


# ----------------------------------------------------------------------------
# Single fused kernel for the whole Encoder forward pass.
# ----------------------------------------------------------------------------
def _encoder_kernel(
    # ----- inputs (all VMEM-resident) -----
    x_ref,                         # (S*B, I)
    lin_w_ref,                     # (I, H)
    l2_w_ref,                      # (2H, H)  rows 0:H -> LN_F(gruF) half, H:2H -> out1 half
    gF_w_ref,                      # (2H, 3H) GRU_F   : rows 0:H = Wi^T, H:2H = Wh^T
    gf_w_ref,                      # (2H, 3H) bi-GRU forward direction
    gb_w_ref,                      # (2H, 3H) bi-GRU backward direction
    gru_b_ref,                     # (6, 3H)  [gF_bi, gF_bh, f_bi, f_bh, b_bi, b_bh]
    vec_ref,                       # (8, H)   [lin_b, lnF_g, lnF_b, l2_b, lng_f, lng_b, lnb_f, lnb_b]
    # ----- outputs -----
    out_f_ref, out_b_ref,          # (S, B, H) each (direction halves)
    hN_ref,                        # (2, B, H)
    # ----- scratch -----
    lin2_scr,                      # (S*B, H)   linear_new output (bi-GRU input)
    gxF_scr,                       # (S*B, 3H)  GRU_F input projections
    gxf_scr,                       # (S*B, 3H)  bi-GRU fwd input projections
    gxb_scr,                       # (S*B, 3H)  bi-GRU bwd input projections
    *, S, B, eps):
  H = lin_w_ref.shape[1]
  H2, H3 = 2 * H, 3 * H

  def dot(a, b):
    return jnp.dot(a, b, preferred_element_type=jnp.float32)

  # ---- hoisted small parameters (loaded once, broadcast once) --------------
  vecs = vec_ref[...]              # (8, H)
  grub = gru_b_ref[...]            # (6, 3H)
  lin_b = vecs[0:1]
  lnFg = jnp.broadcast_to(vecs[1:2], (B, H))
  lnFb = jnp.broadcast_to(vecs[2:3], (B, H))
  l2_b = vecs[3:4]
  lng_f = vecs[4:5].reshape(1, 1, H)
  lng_b = vecs[5:6].reshape(1, 1, H)
  lnb_f = vecs[6:7].reshape(1, 1, H)
  lnb_b = vecs[7:8].reshape(1, 1, H)

  # ---- Stage 1 (bulk): out1 = tanh(x @ W + b) over all S*B rows -------------
  out1 = jnp.tanh(dot(x_ref[...], lin_w_ref[...]) + lin_b)        # (S*B, H)

  # ---- Bulk input-side projections (off the recurrent critical path) --------
  gxF_scr[...] = dot(out1, gF_w_ref[:H, :]) + grub[0:1]            # GRU_F gx
  lin2_scr[...] = dot(out1, l2_w_ref[H:, :]) + l2_b                # out1 @ Wb + b

  h0 = jnp.zeros((B, H), jnp.float32)

  def gates(gx, gh, h):
    # PyTorch nn.GRU cell, gate order [r, z, n]; b_hn stays inside r*(...).
    r = jax.nn.sigmoid(gx[:, :H] + gh[:, :H])
    z = jax.nn.sigmoid(gx[:, H:H2] + gh[:, H:H2])
    n = jnp.tanh(gx[:, H2:] + r * gh[:, H2:])
    return (1.0 - z) * n + z * h

  # ---- Stage 2: GRU_F + LN_F + (g @ Wa) accumulation into lin2 --------------
  whF = gF_w_ref[H:, :]                                            # (H, 3H)
  bhF = jnp.broadcast_to(grub[1:2], (B, H3))
  l2_wa = l2_w_ref[:H, :]                                          # (H, H)

  def stage2(t, h):
    gx = gxF_scr[pl.ds(t * B, B), :]                               # bias included
    gh = dot(h, whF) + bhF                                         # single MXU issue
    h_new = gates(gx, gh, h)
    mean = jnp.mean(h_new, axis=-1, keepdims=True)
    var = jnp.mean(jnp.square(h_new - mean), axis=-1, keepdims=True)
    g = (h_new - mean) * jax.lax.rsqrt(var + eps) * lnFg + lnFb
    # dropout -> identity (inference)
    lin2_scr[pl.ds(t * B, B), :] = lin2_scr[pl.ds(t * B, B), :] + dot(g, l2_wa)
    return h_new

  jax.lax.fori_loop(0, S, stage2, h0, unroll=True)

  # ---- Bulk bi-GRU input projections ----------------------------------------
  lin2 = lin2_scr[...]                                             # (S*B, H)
  gxf_scr[...] = dot(lin2, gf_w_ref[:H, :]) + grub[2:3]
  gxb_scr[...] = dot(lin2, gb_w_ref[:H, :]) + grub[4:5]

  # ---- Stage 3: bidirectional GRU, fwd (index t) + bwd (index S-1-t) --------
  whf = gf_w_ref[H:, :]
  whb = gb_w_ref[H:, :]
  bhf = jnp.broadcast_to(grub[3:4], (B, H3))
  bhb = jnp.broadcast_to(grub[5:6], (B, H3))

  def stage3(t, carry):
    h_f, h_b = carry
    tb = S - 1 - t
    h_f = gates(gxf_scr[pl.ds(t * B, B), :], dot(h_f, whf) + bhf, h_f)
    h_b = gates(gxb_scr[pl.ds(tb * B, B), :], dot(h_b, whb) + bhb, h_b)
    out_f_ref[t] = h_f
    out_b_ref[tb] = h_b
    return (h_f, h_b)

  h_f, h_b = jax.lax.fori_loop(0, S, stage3, (h0, h0), unroll=True)
  hN_ref[0] = h_f            # final fwd hidden (after t = S-1)
  hN_ref[1] = h_b            # final bwd hidden (after processing t = 0)

  # ---- Stage 4 (bulk): final LayerNorm over concat(fwd, bwd), joint stats ---
  inv_n = 1.0 / (2 * H)
  a = out_f_ref[...]                                               # (S, B, H)
  b = out_b_ref[...]
  mean = (jnp.sum(a, axis=-1, keepdims=True) +
          jnp.sum(b, axis=-1, keepdims=True)) * inv_n
  var = (jnp.sum(jnp.square(a - mean), axis=-1, keepdims=True) +
         jnp.sum(jnp.square(b - mean), axis=-1, keepdims=True)) * inv_n
  inv = jax.lax.rsqrt(var + eps)
  # dropout -> identity (inference)
  out_f_ref[...] = (a - mean) * inv * lng_f + lnb_f
  out_b_ref[...] = (b - mean) * inv * lng_b + lnb_b


# ----------------------------------------------------------------------------
# Wrapper: single pallas_call, whole model in VMEM, no grid.
# ----------------------------------------------------------------------------
def encoder_forward(params, x):
  S, B, I = x.shape
  H = params["lin_w"].shape[1]
  vmem = pl.BlockSpec(memory_space=pltpu.MemorySpace.VMEM)

  x2d = x.reshape(S * B, I)                       # free row-major reshape

  inputs = (
      x2d, params["lin_w"], params["l2_w"],
      params["gruF_w"], params["gruf_w"], params["grub_w"],
      params["gru_b"], params["vecs"],
  )

  out_f, out_b, hidden = pl.pallas_call(
      functools.partial(_encoder_kernel, S=S, B=B, eps=1e-5),
      out_shape=(
          jax.ShapeDtypeStruct((S, B, H), jnp.float32),   # fwd direction half
          jax.ShapeDtypeStruct((S, B, H), jnp.float32),   # bwd direction half
          jax.ShapeDtypeStruct((2, B, H), jnp.float32),   # final hidden
      ),
      in_specs=[vmem] * len(inputs),
      out_specs=(vmem, vmem, vmem),
      scratch_shapes=[
          pltpu.VMEM((S * B, H), jnp.float32),        # lin2 (bi-GRU input)
          pltpu.VMEM((S * B, 3 * H), jnp.float32),    # gxF
          pltpu.VMEM((S * B, 3 * H), jnp.float32),    # gxf
          pltpu.VMEM((S * B, 3 * H), jnp.float32),    # gxb
      ],
  )(*inputs)

  # Trivial concat of the two lane-dense direction halves (one XLA copy).
  output = jnp.concatenate([out_f, out_b], axis=-1)     # (S, B, 2H)
  return output, hidden                                  # hidden: (2, B, H)


# ----------------------------------------------------------------------------
# Parameter construction (deterministic, synthetic), pre-packed for the kernel.
# ----------------------------------------------------------------------------
def init_params(key, input_size, hidden_size):
  H = hidden_size
  ks = jax.random.split(key, 16)

  def u(k, shape, fan_in):
    bound = 1.0 / (fan_in ** 0.5)
    return jax.random.uniform(k, shape, jnp.float32, -bound, bound)

  # TODO(synk): PyTorch applies init.orthogonal_ to the GRU weight matrices;
  #             deterministic uniform synthetic weights are used here instead.
  def gru(kw, kh, kbi, kbh):
    # Lane-packed gate order [r, z, n]; rows 0:H = W_ih^T, rows H:2H = W_hh^T.
    w = jnp.concatenate([u(kw, (H, 3 * H), H), u(kh, (H, 3 * H), H)], axis=0)
    return w, u(kbi, (1, 3 * H), H), u(kbh, (1, 3 * H), H)

  gruF_w, gruF_bi, gruF_bh = gru(ks[0], ks[1], ks[2], ks[3])
  gruf_w, gruf_bi, gruf_bh = gru(ks[4], ks[5], ks[6], ks[7])
  grub_w, grub_bi, grub_bh = gru(ks[8], ks[9], ks[10], ks[11])

  lin_b = u(ks[13], (1, H), input_size)
  l2_b = u(ks[15], (1, H), 2 * H)
  ones = jnp.ones((1, H), jnp.float32)
  zeros = jnp.zeros((1, H), jnp.float32)

  return {
      "lin_w": u(ks[12], (input_size, H), input_size),
      # linear_new weight transposed to (2H, H); rows 0:H multiply LN_F(gru_F),
      # rows H:2H multiply out1 (the concat is never materialized).
      "l2_w": u(ks[14], (2 * H, H), 2 * H),
      "gruF_w": gruF_w, "gruf_w": gruf_w, "grub_w": grub_w,
      # rows: [gF_bi, gF_bh, fwd_bi, fwd_bh, bwd_bi, bwd_bh]
      "gru_b": jnp.concatenate(
          [gruF_bi, gruF_bh, gruf_bi, gruf_bh, grub_bi, grub_bh], axis=0),
      # rows: [lin_b, lnF_gamma, lnF_beta, lin2_b,
      #        ln_gamma_fwd, ln_gamma_bwd, ln_beta_fwd, ln_beta_bwd]
      "vecs": jnp.concatenate(
          [lin_b, ones, zeros, l2_b, ones, ones, zeros, zeros], axis=0),
  }


if __name__ == "__main__":
  S, B, I, H = 8, 4, 16, 32          # seq_len, batch, input_size, hidden_size
  key = jax.random.PRNGKey(0)
  kx, kp = jax.random.split(key)
  x = jax.random.normal(kx, (S, B, I), dtype=jnp.float32)
  params = init_params(kp, I, H)

  fwd = jax.jit(encoder_forward)
  output, hidden = fwd(params, x)
  jax.block_until_ready((output, hidden))

  assert output.shape == (S, B, 2 * H), output.shape
  assert hidden.shape == (2, B, H), hidden.shape
  assert output.dtype == jnp.float32 and hidden.dtype == jnp.float32
  print("KERNEL_OK")
</pallas_src>

<mosaic_0001>
module attributes {stable_mosaic.version = 11 : i64} {
  func.func @_encoder_kernel(%arg0: memref<32x16xf32, #tpu.memory_space<vmem>>, %arg1: memref<16x32xf32, #tpu.memory_space<vmem>>, %arg2: memref<64x32xf32, #tpu.memory_space<vmem>>, %arg3: memref<64x96xf32, #tpu.memory_space<vmem>>, %arg4: memref<64x96xf32, #tpu.memory_space<vmem>>, %arg5: memref<64x96xf32, #tpu.memory_space<vmem>>, %arg6: memref<6x96xf32, #tpu.memory_space<vmem>>, %arg7: memref<8x32xf32, #tpu.memory_space<vmem>>, %arg8: memref<8x4x32xf32, #tpu.memory_space<vmem>>, %arg9: memref<8x4x32xf32, #tpu.memory_space<vmem>>, %arg10: memref<2x4x32xf32, #tpu.memory_space<vmem>>, %arg11: memref<32x32xf32, #tpu.memory_space<vmem>>, %arg12: memref<32x96xf32, #tpu.memory_space<vmem>>, %arg13: memref<32x96xf32, #tpu.memory_space<vmem>>, %arg14: memref<32x96xf32, #tpu.memory_space<vmem>>) attributes {dimension_semantics = [], scalar_prefetch = 0 : i64, scratch_operands = 4 : i64, tpu.core_type = #tpu.core_type<tc>} {
    %c0 = arith.constant 0 : index
    %c0_0 = arith.constant 0 : index
    %0 = vector.load %arg7[%c0, %c0_0] : memref<8x32xf32, #tpu.memory_space<vmem>>, vector<8x32xf32>
    %c0_1 = arith.constant 0 : index
    %c0_2 = arith.constant 0 : index
    %1 = vector.load %arg6[%c0_1, %c0_2] : memref<6x96xf32, #tpu.memory_space<vmem>>, vector<6x96xf32>
    %2 = vector.extract_strided_slice %0 {offsets = [0, 0], sizes = [1, 32], strides = [1, 1]} : vector<8x32xf32> to vector<1x32xf32>
    %3 = vector.extract_strided_slice %0 {offsets = [1, 0], sizes = [1, 32], strides = [1, 1]} : vector<8x32xf32> to vector<1x32xf32>
    %4 = vector.shape_cast %3 : vector<1x32xf32> to vector<1x32xf32>
    %5 = vector.broadcast %4 : vector<1x32xf32> to vector<4x32xf32>
    %6 = vector.extract_strided_slice %0 {offsets = [2, 0], sizes = [1, 32], strides = [1, 1]} : vector<8x32xf32> to vector<1x32xf32>
    %7 = vector.shape_cast %6 : vector<1x32xf32> to vector<1x32xf32>
    %8 = vector.broadcast %7 : vector<1x32xf32> to vector<4x32xf32>
    %9 = vector.extract_strided_slice %0 {offsets = [3, 0], sizes = [1, 32], strides = [1, 1]} : vector<8x32xf32> to vector<1x32xf32>
    %10 = vector.extract_strided_slice %0 {offsets = [4, 0], sizes = [1, 32], strides = [1, 1]} : vector<8x32xf32> to vector<1x32xf32>
    %11 = vector.shape_cast %10 : vector<1x32xf32> to vector<1x1x32xf32>
    %12 = vector.extract_strided_slice %0 {offsets = [5, 0], sizes = [1, 32], strides = [1, 1]} : vector<8x32xf32> to vector<1x32xf32>
    %13 = vector.shape_cast %12 : vector<1x32xf32> to vector<1x1x32xf32>
    %14 = vector.extract_strided_slice %0 {offsets = [6, 0], sizes = [1, 32], strides = [1, 1]} : vector<8x32xf32> to vector<1x32xf32>
    %15 = vector.shape_cast %14 : vector<1x32xf32> to vector<1x1x32xf32>
    %16 = vector.extract_strided_slice %0 {offsets = [7, 0], sizes = [1, 32], strides = [1, 1]} : vector<8x32xf32> to vector<1x32xf32>
    %17 = vector.shape_cast %16 : vector<1x32xf32> to vector<1x1x32xf32>
    %c0_3 = arith.constant 0 : index
    %c0_4 = arith.constant 0 : index
    %18 = vector.load %arg0[%c0_3, %c0_4] : memref<32x16xf32, #tpu.memory_space<vmem>>, vector<32x16xf32>
    %c0_5 = arith.constant 0 : index
    %c0_6 = arith.constant 0 : index
    %19 = vector.load %arg1[%c0_5, %c0_6] : memref<16x32xf32, #tpu.memory_space<vmem>>, vector<16x32xf32>
    %cst = arith.constant dense<0.000000e+00> : vector<32x32xf32>
    %20 = tpu.matmul %18, %19, %cst {dimension_numbers = #tpu.dot_dimension_numbers<[1], [0], [0], [1], [0, 0, 1, 1], [], []>} : vector<32x16xf32>, vector<16x32xf32>, vector<32x32xf32> -> vector<32x32xf32>
    %21 = vector.broadcast %2 : vector<1x32xf32> to vector<32x32xf32>
    %22 = arith.addf %20, %21 : vector<32x32xf32>
    %23 = math.tanh %22 : vector<32x32xf32>
    %c0_7 = arith.constant 0 : index
    %c0_8 = arith.constant 0 : index
    %24 = vector.load %arg3[%c0_7, %c0_8] : memref<64x96xf32, #tpu.memory_space<vmem>>, vector<32x96xf32>
    %cst_9 = arith.constant dense<0.000000e+00> : vector<32x96xf32>
    %25 = tpu.matmul %23, %24, %cst_9 {dimension_numbers = #tpu.dot_dimension_numbers<[1], [0], [0], [1], [0, 0, 1, 1], [], []>} : vector<32x32xf32>, vector<32x96xf32>, vector<32x96xf32> -> vector<32x96xf32>
    %26 = vector.extract_strided_slice %1 {offsets = [0, 0], sizes = [1, 96], strides = [1, 1]} : vector<6x96xf32> to vector<1x96xf32>
    %27 = vector.broadcast %26 : vector<1x96xf32> to vector<32x96xf32>
    %28 = arith.addf %25, %27 : vector<32x96xf32>
    %c0_10 = arith.constant 0 : index
    %c0_11 = arith.constant 0 : index
    %29 = vector.load %arg12[%c0_10, %c0_11] : memref<32x96xf32, #tpu.memory_space<vmem>>, vector<32x96xf32>
    tpu.vector_store %arg12[%c0_10, %c0_11], %28 {strides = array<i32>} : memref<32x96xf32, #tpu.memory_space<vmem>>, vector<32x96xf32>,
    %c32 = arith.constant 32 : index
    %c0_12 = arith.constant 0 : index
    %30 = vector.load %arg2[%c32, %c0_12] : memref<64x32xf32, #tpu.memory_space<vmem>>, vector<32x32xf32>
    %cst_13 = arith.constant dense<0.000000e+00> : vector<32x32xf32>
    %31 = tpu.matmul %23, %30, %cst_13 {dimension_numbers = #tpu.dot_dimension_numbers<[1], [0], [0], [1], [0, 0, 1, 1], [], []>} : vector<32x32xf32>, vector<32x32xf32>, vector<32x32xf32> -> vector<32x32xf32>
    %32 = vector.broadcast %9 : vector<1x32xf32> to vector<32x32xf32>
    %33 = arith.addf %31, %32 : vector<32x32xf32>
    %c0_14 = arith.constant 0 : index
    %c0_15 = arith.constant 0 : index
    %34 = vector.load %arg11[%c0_14, %c0_15] : memref<32x32xf32, #tpu.memory_space<vmem>>, vector<32x32xf32>
    tpu.vector_store %arg11[%c0_14, %c0_15], %33 {strides = array<i32>} : memref<32x32xf32, #tpu.memory_space<vmem>>, vector<32x32xf32>,
    %cst_16 = arith.constant 0.000000e+00 : f32
    %35 = vector.broadcast %cst_16 : f32 to vector<4x32xf32>
    %c32_17 = arith.constant 32 : index
    %c0_18 = arith.constant 0 : index
    %36 = vector.load %arg3[%c32_17, %c0_18] : memref<64x96xf32, #tpu.memory_space<vmem>>, vector<32x96xf32>
    %37 = vector.extract_strided_slice %1 {offsets = [1, 0], sizes = [1, 96], strides = [1, 1]} : vector<6x96xf32> to vector<1x96xf32>
    %38 = vector.shape_cast %37 : vector<1x96xf32> to vector<1x96xf32>
    %39 = vector.broadcast %38 : vector<1x96xf32> to vector<4x96xf32>
    %c0_19 = arith.constant 0 : index
    %c0_20 = arith.constant 0 : index
    %40 = vector.load %arg2[%c0_19, %c0_20] : memref<64x32xf32, #tpu.memory_space<vmem>>, vector<32x32xf32>
    %c0_i32 = arith.constant 0 : i32
    %c4_i32 = arith.constant 4 : i32
    %41 = arith.muli %c0_i32, %c4_i32 : i32
    %42 = arith.index_cast %41 : i32 to index
    %c0_21 = arith.constant 0 : index
    %43 = vector.load %arg12[%42, %c0_21] : memref<32x96xf32, #tpu.memory_space<vmem>>, vector<4x96xf32>
    %cst_22 = arith.constant dense<0.000000e+00> : vector<4x96xf32>
    %44 = tpu.matmul %35, %36, %cst_22 {dimension_numbers = #tpu.dot_dimension_numbers<[1], [0], [0], [1], [0, 0, 1, 1], [], []>} : vector<4x32xf32>, vector<32x96xf32>, vector<4x96xf32> -> vector<4x96xf32>
    %45 = arith.addf %44, %39 : vector<4x96xf32>
    %46 = vector.extract_strided_slice %43 {offsets = [0, 0], sizes = [4, 32], strides = [1, 1]} : vector<4x96xf32> to vector<4x32xf32>
    %47 = vector.extract_strided_slice %45 {offsets = [0, 0], sizes = [4, 32], strides = [1, 1]} : vector<4x96xf32> to vector<4x32xf32>
    %48 = arith.addf %46, %47 : vector<4x32xf32>
    %49 = arith.negf %48 : vector<4x32xf32>
    %50 = math.exp %49 : vector<4x32xf32>
    %cst_23 = arith.constant 1.000000e+00 : f32
    %51 = vector.broadcast %cst_23 : f32 to vector<4x32xf32>
    %52 = arith.addf %51, %50 : vector<4x32xf32>
    %53 = arith.divf %51, %52 : vector<4x32xf32>
    %54 = vector.extract_strided_slice %43 {offsets = [0, 32], sizes = [4, 32], strides = [1, 1]} : vector<4x96xf32> to vector<4x32xf32>
    %55 = vector.extract_strided_slice %45 {offsets = [0, 32], sizes = [4, 32], strides = [1, 1]} : vector<4x96xf32> to vector<4x32xf32>
    %56 = arith.addf %54, %55 : vector<4x32xf32>
    %57 = arith.negf %56 : vector<4x32xf32>
    %58 = math.exp %57 : vector<4x32xf32>
    %cst_24 = arith.constant 1.000000e+00 : f32
    %59 = vector.broadcast %cst_24 : f32 to vector<4x32xf32>
    %60 = arith.addf %59, %58 : vector<4x32xf32>
    %61 = arith.divf %59, %60 : vector<4x32xf32>
    %62 = vector.extract_strided_slice %43 {offsets = [0, 64], sizes = [4, 32], strides = [1, 1]} : vector<4x96xf32> to vector<4x32xf32>
    %63 = vector.extract_strided_slice %45 {offsets = [0, 64], sizes = [4, 32], strides = [1, 1]} : vector<4x96xf32> to vector<4x32xf32>
    %64 = arith.mulf %53, %63 : vector<4x32xf32>
    %65 = arith.addf %62, %64 : vector<4x32xf32>
    %66 = math.tanh %65 : vector<4x32xf32>
    %cst_25 = arith.constant 1.000000e+00 : f32
    %67 = vector.broadcast %cst_25 : f32 to vector<4x32xf32>
    %68 = arith.subf %67, %61 : vector<4x32xf32>
    %69 = arith.mulf %68, %66 : vector<4x32xf32>
    %70 = arith.mulf %61, %35 : vector<4x32xf32>
    %71 = arith.addf %69, %70 : vector<4x32xf32>
    %cst_26 = arith.constant dense<0.000000e+00> : vector<4xf32>
    %72 = vector.multi_reduction <add>, %71, %cst_26 [1] : vector<4x32xf32> to vector<4xf32>
    %73 = vector.shape_cast %72 : vector<4xf32> to vector<4x1xf32>
    %cst_27 = arith.constant 3.200000e+01 : f32
    %74 = vector.broadcast %cst_27 : f32 to vector<4x1xf32>
    %75 = arith.divf %73, %74 : vector<4x1xf32>
    %76 = vector.broadcast %75 : vector<4x1xf32> to vector<4x32xf32>
    %77 = arith.subf %71, %76 : vector<4x32xf32>
    %78 = arith.mulf %77, %77 : vector<4x32xf32>
    %cst_28 = arith.constant dense<0.000000e+00> : vector<4xf32>
    %79 = vector.multi_reduction <add>, %78, %cst_28 [1] : vector<4x32xf32> to vector<4xf32>
    %80 = vector.shape_cast %79 : vector<4xf32> to vector<4x1xf32>
    %cst_29 = arith.constant 3.200000e+01 : f32
    %81 = vector.broadcast %cst_29 : f32 to vector<4x1xf32>
    %82 = arith.divf %80, %81 : vector<4x1xf32>
    %83 = vector.broadcast %75 : vector<4x1xf32> to vector<4x32xf32>
    %84 = arith.subf %71, %83 : vector<4x32xf32>
    %cst_30 = arith.constant 9.99999974E-6 : f32
    %85 = vector.broadcast %cst_30 : f32 to vector<4x1xf32>
    %86 = arith.addf %82, %85 : vector<4x1xf32>
    %87 = math.rsqrt %86 : vector<4x1xf32>
    %88 = vector.broadcast %87 : vector<4x1xf32> to vector<4x32xf32>
    %89 = arith.mulf %84, %88 : vector<4x32xf32>
    %90 = arith.mulf %89, %5 : vector<4x32xf32>
    %91 = arith.addf %90, %8 : vector<4x32xf32>
    %c4_i32_31 = arith.constant 4 : i32
    %92 = arith.muli %c0_i32, %c4_i32_31 : i32
    %93 = arith.index_cast %92 : i32 to index
    %c0_32 = arith.constant 0 : index
    %94 = vector.load %arg11[%93, %c0_32] : memref<32x32xf32, #tpu.memory_space<vmem>>, vector<4x32xf32>
    %cst_33 = arith.constant dense<0.000000e+00> : vector<4x32xf32>
    %95 = tpu.matmul %91, %40, %cst_33 {dimension_numbers = #tpu.dot_dimension_numbers<[1], [0], [0], [1], [0, 0, 1, 1], [], []>} : vector<4x32xf32>, vector<32x32xf32>, vector<4x32xf32> -> vector<4x32xf32>
    %96 = arith.addf %94, %95 : vector<4x32xf32>
    %c4_i32_34 = arith.constant 4 : i32
    %97 = arith.muli %c0_i32, %c4_i32_34 : i32
    %98 = arith.index_cast %97 : i32 to index
    %c0_35 = arith.constant 0 : index
    %99 = vector.load %arg11[%98, %c0_35] : memref<32x32xf32, #tpu.memory_space<vmem>>, vector<4x32xf32>
    tpu.vector_store %arg11[%98, %c0_35], %96 {strides = array<i32>} : memref<32x32xf32, #tpu.memory_space<vmem>>, vector<4x32xf32>,
    %c1_i32 = arith.constant 1 : i32
    %c4_i32_36 = arith.constant 4 : i32
    %100 = arith.muli %c1_i32, %c4_i32_36 : i32
    %101 = arith.index_cast %100 : i32 to index
    %c0_37 = arith.constant 0 : index
    %102 = vector.load %arg12[%101, %c0_37] : memref<32x96xf32, #tpu.memory_space<vmem>>, vector<4x96xf32>
    %cst_38 = arith.constant dense<0.000000e+00> : vector<4x96xf32>
    %103 = tpu.matmul %71, %36, %cst_38 {dimension_numbers = #tpu.dot_dimension_numbers<[1], [0], [0], [1], [0, 0, 1, 1], [], []>} : vector<4x32xf32>, vector<32x96xf32>, vector<4x96xf32> -> vector<4x96xf32>
    %104 = arith.addf %103, %39 : vector<4x96xf32>
    %105 = vector.extract_strided_slice %102 {offsets = [0, 0], sizes = [4, 32], strides = [1, 1]} : vector<4x96xf32> to vector<4x32xf32>
    %106 = vector.extract_strided_slice %104 {offsets = [0, 0], sizes = [4, 32], strides = [1, 1]} : vector<4x96xf32> to vector<4x32xf32>
    %107 = arith.addf %105, %106 : vector<4x32xf32>
    %108 = arith.negf %107 : vector<4x32xf32>
    %109 = math.exp %108 : vector<4x32xf32>
    %cst_39 = arith.constant 1.000000e+00 : f32
    %110 = vector.broadcast %cst_39 : f32 to vector<4x32xf32>
    %111 = arith.addf %110, %109 : vector<4x32xf32>
    %112 = arith.divf %110, %111 : vector<4x32xf32>
    %113 = vector.extract_strided_slice %102 {offsets = [0, 32], sizes = [4, 32], strides = [1, 1]} : vector<4x96xf32> to vector<4x32xf32>
    %114 = vector.extract_strided_slice %104 {offsets = [0, 32], sizes = [4, 32], strides = [1, 1]} : vector<4x96xf32> to vector<4x32xf32>
    %115 = arith.addf %113, %114 : vector<4x32xf32>
    %116 = arith.negf %115 : vector<4x32xf32>
    %117 = math.exp %116 : vector<4x32xf32>
    %cst_40 = arith.constant 1.000000e+00 : f32
    %118 = vector.broadcast %cst_40 : f32 to vector<4x32xf32>
    %119 = arith.addf %118, %117 : vector<4x32xf32>
    %120 = arith.divf %118, %119 : vector<4x32xf32>
    %121 = vector.extract_strided_slice %102 {offsets = [0, 64], sizes = [4, 32], strides = [1, 1]} : vector<4x96xf32> to vector<4x32xf32>
    %122 = vector.extract_strided_slice %104 {offsets = [0, 64], sizes = [4, 32], strides = [1, 1]} : vector<4x96xf32> to vector<4x32xf32>
    %123 = arith.mulf %112, %122 : vector<4x32xf32>
    %124 = arith.addf %121, %123 : vector<4x32xf32>
    %125 = math.tanh %124 : vector<4x32xf32>
    %cst_41 = arith.constant 1.000000e+00 : f32
    %126 = vector.broadcast %cst_41 : f32 to vector<4x32xf32>
    %127 = arith.subf %126, %120 : vector<4x32xf32>
    %128 = arith.mulf %127, %125 : vector<4x32xf32>
    %129 = arith.mulf %120, %71 : vector<4x32xf32>
    %130 = arith.addf %128, %129 : vector<4x32xf32>
    %cst_42 = arith.constant dense<0.000000e+00> : vector<4xf32>
    %131 = vector.multi_reduction <add>, %130, %cst_42 [1] : vector<4x32xf32> to vector<4xf32>
    %132 = vector.shape_cast %131 : vector<4xf32> to vector<4x1xf32>
    %cst_43 = arith.constant 3.200000e+01 : f32
    %133 = vector.broadcast %cst_43 : f32 to vector<4x1xf32>
    %134 = arith.divf %132, %133 : vector<4x1xf32>
    %135 = vector.broadcast %134 : vector<4x1xf32> to vector<4x32xf32>
    %136 = arith.subf %130, %135 : vector<4x32xf32>
    %137 = arith.mulf %136, %136 : vector<4x32xf32>
    %cst_44 = arith.constant dense<0.000000e+00> : vector<4xf32>
    %138 = vector.multi_reduction <add>, %137, %cst_44 [1] : vector<4x32xf32> to vector<4xf32>
    %139 = vector.shape_cast %138 : vector<4xf32> to vector<4x1xf32>
    %cst_45 = arith.constant 3.200000e+01 : f32
    %140 = vector.broadcast %cst_45 : f32 to vector<4x1xf32>
    %141 = arith.divf %139, %140 : vector<4x1xf32>
    %142 = vector.broadcast %134 : vector<4x1xf32> to vector<4x32xf32>
    %143 = arith.subf %130, %142 : vector<4x32xf32>
    %cst_46 = arith.constant 9.99999974E-6 : f32
    %144 = vector.broadcast %cst_46 : f32 to vector<4x1xf32>
    %145 = arith.addf %141, %144 : vector<4x1xf32>
    %146 = math.rsqrt %145 : vector<4x1xf32>
    %147 = vector.broadcast %146 : vector<4x1xf32> to vector<4x32xf32>
    %148 = arith.mulf %143, %147 : vector<4x32xf32>
    %149 = arith.mulf %148, %5 : vector<4x32xf32>
    %150 = arith.addf %149, %8 : vector<4x32xf32>
    %c4_i32_47 = arith.constant 4 : i32
    %151 = arith.muli %c1_i32, %c4_i32_47 : i32
    %152 = arith.index_cast %151 : i32 to index
    %c0_48 = arith.constant 0 : index
    %153 = vector.load %arg11[%152, %c0_48] : memref<32x32xf32, #tpu.memory_space<vmem>>, vector<4x32xf32>
    %cst_49 = arith.constant dense<0.000000e+00> : vector<4x32xf32>
    %154 = tpu.matmul %150, %40, %cst_49 {dimension_numbers = #tpu.dot_dimension_numbers<[1], [0], [0], [1], [0, 0, 1, 1], [], []>} : vector<4x32xf32>, vector<32x32xf32>, vector<4x32xf32> -> vector<4x32xf32>
    %155 = arith.addf %153, %154 : vector<4x32xf32>
    %c4_i32_50 = arith.constant 4 : i32
    %156 = arith.muli %c1_i32, %c4_i32_50 : i32
    %157 = arith.index_cast %156 : i32 to index
    %c0_51 = arith.constant 0 : index
    %158 = vector.load %arg11[%157, %c0_51] : memref<32x32xf32, #tpu.memory_space<vmem>>, vector<4x32xf32>
    tpu.vector_store %arg11[%157, %c0_51], %155 {strides = array<i32>} : memref<32x32xf32, #tpu.memory_space<vmem>>, vector<4x32xf32>,
    %c2_i32 = arith.constant 2 : i32
    %c4_i32_52 = arith.constant 4 : i32
    %159 = arith.muli %c2_i32, %c4_i32_52 : i32
    %160 = arith.index_cast %159 : i32 to index
    %c0_53 = arith.constant 0 : index
    %161 = vector.load %arg12[%160, %c0_53] : memref<32x96xf32, #tpu.memory_space<vmem>>, vector<4x96xf32>
    %cst_54 = arith.constant dense<0.000000e+00> : vector<4x96xf32>
    %162 = tpu.matmul %130, %36, %cst_54 {dimension_numbers = #tpu.dot_dimension_numbers<[1], [0], [0], [1], [0, 0, 1, 1], [], []>} : vector<4x32xf32>, vector<32x96xf32>, vector<4x96xf32> -> vector<4x96xf32>
    %163 = arith.addf %162, %39 : vector<4x96xf32>
    %164 = vector.extract_strided_slice %161 {offsets = [0, 0], sizes = [4, 32], strides = [1, 1]} : vector<4x96xf32> to vector<4x32xf32>
    %165 = vector.extract_strided_slice %163 {offsets = [0, 0], sizes = [4, 32], strides = [1, 1]} : vector<4x96xf32> to vector<4x32xf32>
    %166 = arith.addf %164, %165 : vector<4x32xf32>
    %167 = arith.negf %166 : vector<4x32xf32>
    %168 = math.exp %167 : vector<4x32xf32>
    %cst_55 = arith.constant 1.000000e+00 : f32
    %169 = vector.broadcast %cst_55 : f32 to vector<4x32xf32>
    %170 = arith.addf %169, %168 : vector<4x32xf32>
    %171 = arith.divf %169, %170 : vector<4x32xf32>
    %172 = vector.extract_strided_slice %161 {offsets = [0, 32], sizes = [4, 32], strides = [1, 1]} : vector<4x96xf32> to vector<4x32xf32>
    %173 = vector.extract_strided_slice %163 {offsets = [0, 32], sizes = [4, 32], strides = [1, 1]} : vector<4x96xf32> to vector<4x32xf32>
    %174 = arith.addf %172, %173 : vector<4x32xf32>
    %175 = arith.negf %174 : vector<4x32xf32>
    %176 = math.exp %175 : vector<4x32xf32>
    %cst_56 = arith.constant 1.000000e+00 : f32
    %177 = vector.broadcast %cst_56 : f32 to vector<4x32xf32>
    %178 = arith.addf %177, %176 : vector<4x32xf32>
    %179 = arith.divf %177, %178 : vector<4x32xf32>
    %180 = vector.extract_strided_slice %161 {offsets = [0, 64], sizes = [4, 32], strides = [1, 1]} : vector<4x96xf32> to vector<4x32xf32>
    %181 = vector.extract_strided_slice %163 {offsets = [0, 64], sizes = [4, 32], strides = [1, 1]} : vector<4x96xf32> to vector<4x32xf32>
    %182 = arith.mulf %171, %181 : vector<4x32xf32>
    %183 = arith.addf %180, %182 : vector<4x32xf32>
    %184 = math.tanh %183 : vector<4x32xf32>
    %cst_57 = arith.constant 1.000000e+00 : f32
    %185 = vector.broadcast %cst_57 : f32 to vector<4x32xf32>
    %186 = arith.subf %185, %179 : vector<4x32xf32>
    %187 = arith.mulf %186, %184 : vector<4x32xf32>
    %188 = arith.mulf %179, %130 : vector<4x32xf32>
    %189 = arith.addf %187, %188 : vector<4x32xf32>
    %cst_58 = arith.constant dense<0.000000e+00> : vector<4xf32>
    %190 = vector.multi_reduction <add>, %189, %cst_58 [1] : vector<4x32xf32> to vector<4xf32>
    %191 = vector.shape_cast %190 : vector<4xf32> to vector<4x1xf32>
    %cst_59 = arith.constant 3.200000e+01 : f32
    %192 = vector.broadcast %cst_59 : f32 to vector<4x1xf32>
    %193 = arith.divf %191, %192 : vector<4x1xf32>
    %194 = vector.broadcast %193 : vector<4x1xf32> to vector<4x32xf32>
    %195 = arith.subf %189, %194 : vector<4x32xf32>
    %196 = arith.mulf %195, %195 : vector<4x32xf32>
    %cst_60 = arith.constant dense<0.000000e+00> : vector<4xf32>
    %197 = vector.multi_reduction <add>, %196, %cst_60 [1] : vector<4x32xf32> to vector<4xf32>
    %198 = vector.shape_cast %197 : vector<4xf32> to vector<4x1xf32>
    %cst_61 = arith.constant 3.200000e+01 : f32
    %199 = vector.broadcast %cst_61 : f32 to vector<4x1xf32>
    %200 = arith.divf %198, %199 : vector<4x1xf32>
    %201 = vector.broadcast %193 : vector<4x1xf32> to vector<4x32xf32>
    %202 = arith.subf %189, %201 : vector<4x32xf32>
    %cst_62 = arith.constant 9.99999974E-6 : f32
    %203 = vector.broadcast %cst_62 : f32 to vector<4x1xf32>
    %204 = arith.addf %200, %203 : vector<4x1xf32>
    %205 = math.rsqrt %204 : vector<4x1xf32>
    %206 = vector.broadcast %205 : vector<4x1xf32> to vector<4x32xf32>
    %207 = arith.mulf %202, %206 : vector<4x32xf32>
    %208 = arith.mulf %207, %5 : vector<4x32xf32>
    %209 = arith.addf %208, %8 : vector<4x32xf32>
    %c4_i32_63 = arith.constant 4 : i32
    %210 = arith.muli %c2_i32, %c4_i32_63 : i32
    %211 = arith.index_cast %210 : i32 to index
    %c0_64 = arith.constant 0 : index
    %212 = vector.load %arg11[%211, %c0_64] : memref<32x32xf32, #tpu.memory_space<vmem>>, vector<4x32xf32>
    %cst_65 = arith.constant dense<0.000000e+00> : vector<4x32xf32>
    %213 = tpu.matmul %209, %40, %cst_65 {dimension_numbers = #tpu.dot_dimension_numbers<[1], [0], [0], [1], [0, 0, 1, 1], [], []>} : vector<4x32xf32>, vector<32x32xf32>, vector<4x32xf32> -> vector<4x32xf32>
    %214 = arith.addf %212, %213 : vector<4x32xf32>
    %c4_i32_66 = arith.constant 4 : i32
    %215 = arith.muli %c2_i32, %c4_i32_66 : i32
    %216 = arith.index_cast %215 : i32 to index
    %c0_67 = arith.constant 0 : index
    %217 = vector.load %arg11[%216, %c0_67] : memref<32x32xf32, #tpu.memory_space<vmem>>, vector<4x32xf32>
    tpu.vector_store %arg11[%216, %c0_67], %214 {strides = array<i32>} : memref<32x32xf32, #tpu.memory_space<vmem>>, vector<4x32xf32>,
    %c3_i32 = arith.constant 3 : i32
    %c4_i32_68 = arith.constant 4 : i32
    %218 = arith.muli %c3_i32, %c4_i32_68 : i32
    %219 = arith.index_cast %218 : i32 to index
    %c0_69 = arith.constant 0 : index
    %220 = vector.load %arg12[%219, %c0_69] : memref<32x96xf32, #tpu.memory_space<vmem>>, vector<4x96xf32>
    %cst_70 = arith.constant dense<0.000000e+00> : vector<4x96xf32>
    %221 = tpu.matmul %189, %36, %cst_70 {dimension_numbers = #tpu.dot_dimension_numbers<[1], [0], [0], [1], [0, 0, 1, 1], [], []>} : vector<4x32xf32>, vector<32x96xf32>, vector<4x96xf32> -> vector<4x96xf32>
    %222 = arith.addf %221, %39 : vector<4x96xf32>
    %223 = vector.extract_strided_slice %220 {offsets = [0, 0], sizes = [4, 32], strides = [1, 1]} : vector<4x96xf32> to vector<4x32xf32>
    %224 = vector.extract_strided_slice %222 {offsets = [0, 0], sizes = [4, 32], strides = [1, 1]} : vector<4x96xf32> to vector<4x32xf32>
    %225 = arith.addf %223, %224 : vector<4x32xf32>
    %226 = arith.negf %225 : vector<4x32xf32>
    %227 = math.exp %226 : vector<4x32xf32>
    %cst_71 = arith.constant 1.000000e+00 : f32
    %228 = vector.broadcast %cst_71 : f32 to vector<4x32xf32>
    %229 = arith.addf %228, %227 : vector<4x32xf32>
    %230 = arith.divf %228, %229 : vector<4x32xf32>
    %231 = vector.extract_strided_slice %220 {offsets = [0, 32], sizes = [4, 32], strides = [1, 1]} : vector<4x96xf32> to vector<4x32xf32>
    %232 = vector.extract_strided_slice %222 {offsets = [0, 32], sizes = [4, 32], strides = [1, 1]} : vector<4x96xf32> to vector<4x32xf32>
    %233 = arith.addf %231, %232 : vector<4x32xf32>
    %234 = arith.negf %233 : vector<4x32xf32>
    %235 = math.exp %234 : vector<4x32xf32>
    %cst_72 = arith.constant 1.000000e+00 : f32
    %236 = vector.broadcast %cst_72 : f32 to vector<4x32xf32>
    %237 = arith.addf %236, %235 : vector<4x32xf32>
    %238 = arith.divf %236, %237 : vector<4x32xf32>
    %239 = vector.extract_strided_slice %220 {offsets = [0, 64], sizes = [4, 32], strides = [1, 1]} : vector<4x96xf32> to vector<4x32xf32>
    %240 = vector.extract_strided_slice %222 {offsets = [0, 64], sizes = [4, 32], strides = [1, 1]} : vector<4x96xf32> to vector<4x32xf32>
    %241 = arith.mulf %230, %240 : vector<4x32xf32>
    %242 = arith.addf %239, %241 : vector<4x32xf32>
    %243 = math.tanh %242 : vector<4x32xf32>
    %cst_73 = arith.constant 1.000000e+00 : f32
    %244 = vector.broadcast %cst_73 : f32 to vector<4x32xf32>
    %245 = arith.subf %244, %238 : vector<4x32xf32>
    %246 = arith.mulf %245, %243 : vector<4x32xf32>
    %247 = arith.mulf %238, %189 : vector<4x32xf32>
    %248 = arith.addf %246, %247 : vector<4x32xf32>
    %cst_74 = arith.constant dense<0.000000e+00> : vector<4xf32>
    %249 = vector.multi_reduction <add>, %248, %cst_74 [1] : vector<4x32xf32> to vector<4xf32>
    %250 = vector.shape_cast %249 : vector<4xf32> to vector<4x1xf32>
    %cst_75 = arith.constant 3.200000e+01 : f32
    %251 = vector.broadcast %cst_75 : f32 to vector<4x1xf32>
    %252 = arith.divf %250, %251 : vector<4x1xf32>
    %253 = vector.broadcast %252 : vector<4x1xf32> to vector<4x32xf32>
    %254 = arith.subf %248, %253 : vector<4x32xf32>
    %255 = arith.mulf %254, %254 : vector<4x32xf32>
    %cst_76 = arith.constant dense<0.000000e+00> : vector<4xf32>
    %256 = vector.multi_reduction <add>, %255, %cst_76 [1] : vector<4x32xf32> to vector<4xf32>
    %257 = vector.shape_cast %256 : vector<4xf32> to vector<4x1xf32>
    %cst_77 = arith.constant 3.200000e+01 : f32
    %258 = vector.broadcast %cst_77 : f32 to vector<4x1xf32>
    %259 = arith.divf %257, %258 : vector<4x1xf32>
    %260 = vector.broadcast %252 : vector<4x1xf32> to vector<4x32xf32>
    %261 = arith.subf %248, %260 : vector<4x32xf32>
    %cst_78 = arith.constant 9.99999974E-6 : f32
    %262 = vector.broadcast %cst_78 : f32 to vector<4x1xf32>
    %263 = arith.addf %259, %262 : vector<4x1xf32>
    %264 = math.rsqrt %263 : vector<4x1xf32>
    %265 = vector.broadcast %264 : vector<4x1xf32> to vector<4x32xf32>
    %266 = arith.mulf %261, %265 : vector<4x32xf32>
    %267 = arith.mulf %266, %5 : vector<4x32xf32>
    %268 = arith.addf %267, %8 : vector<4x32xf32>
    %c4_i32_79 = arith.constant 4 : i32
    %269 = arith.muli %c3_i32, %c4_i32_79 : i32
    %270 = arith.index_cast %269 : i32 to index
    %c0_80 = arith.constant 0 : index
    %271 = vector.load %arg11[%270, %c0_80] : memref<32x32xf32, #tpu.memory_space<vmem>>, vector<4x32xf32>
    %cst_81 = arith.constant dense<0.000000e+00> : vector<4x32xf32>
    %272 = tpu.matmul %268, %40, %cst_81 {dimension_numbers = #tpu.dot_dimension_numbers<[1], [0], [0], [1], [0, 0, 1, 1], [], []>} : vector<4x32xf32>, vector<32x32xf32>, vector<4x32xf32> -> vector<4x32xf32>
    %273 = arith.addf %271, %272 : vector<4x32xf32>
    %c4_i32_82 = arith.constant 4 : i32
    %274 = arith.muli %c3_i32, %c4_i32_82 : i32
    %275 = arith.index_cast %274 : i32 to index
    %c0_83 = arith.constant 0 : index
    %276 = vector.load %arg11[%275, %c0_83] : memref<32x32xf32, #tpu.memory_space<vmem>>, vector<4x32xf32>
    tpu.vector_store %arg11[%275, %c0_83], %273 {strides = array<i32>} : memref<32x32xf32, #tpu.memory_space<vmem>>, vector<4x32xf32>,
    %c4_i32_84 = arith.constant 4 : i32
    %c4_i32_85 = arith.constant 4 : i32
    %277 = arith.muli %c4_i32_84, %c4_i32_85 : i32
    %278 = arith.index_cast %277 : i32 to index
    %c0_86 = arith.constant 0 : index
    %279 = vector.load %arg12[%278, %c0_86] : memref<32x96xf32, #tpu.memory_space<vmem>>, vector<4x96xf32>
    %cst_87 = arith.constant dense<0.000000e+00> : vector<4x96xf32>
    %280 = tpu.matmul %248, %36, %cst_87 {dimension_numbers = #tpu.dot_dimension_numbers<[1], [0], [0], [1], [0, 0, 1, 1], [], []>} : vector<4x32xf32>, vector<32x96xf32>, vector<4x96xf32> -> vector<4x96xf32>
    %281 = arith.addf %280, %39 : vector<4x96xf32>
    %282 = vector.extract_strided_slice %279 {offsets = [0, 0], sizes = [4, 32], strides = [1, 1]} : vector<4x96xf32> to vector<4x32xf32>
    %283 = vector.extract_strided_slice %281 {offsets = [0, 0], sizes = [4, 32], strides = [1, 1]} : vector<4x96xf32> to vector<4x32xf32>
    %284 = arith.addf %282, %283 : vector<4x32xf32>
    %285 = arith.negf %284 : vector<4x32xf32>
    %286 = math.exp %285 : vector<4x32xf32>
    %cst_88 = arith.constant 1.000000e+00 : f32
    %287 = vector.broadcast %cst_88 : f32 to vector<4x32xf32>
    %288 = arith.addf %287, %286 : vector<4x32xf32>
    %289 = arith.divf %287, %288 : vector<4x32xf32>
    %290 = vector.extract_strided_slice %279 {offsets = [0, 32], sizes = [4, 32], strides = [1, 1]} : vector<4x96xf32> to vector<4x32xf32>
    %291 = vector.extract_strided_slice %281 {offsets = [0, 32], sizes = [4, 32], strides = [1, 1]} : vector<4x96xf32> to vector<4x32xf32>
    %292 = arith.addf %290, %291 : vector<4x32xf32>
    %293 = arith.negf %292 : vector<4x32xf32>
    %294 = math.exp %293 : vector<4x32xf32>
    %cst_89 = arith.constant 1.000000e+00 : f32
    %295 = vector.broadcast %cst_89 : f32 to vector<4x32xf32>
    %296 = arith.addf %295, %294 : vector<4x32xf32>
    %297 = arith.divf %295, %296 : vector<4x32xf32>
    %298 = vector.extract_strided_slice %279 {offsets = [0, 64], sizes = [4, 32], strides = [1, 1]} : vector<4x96xf32> to vector<4x32xf32>
    %299 = vector.extract_strided_slice %281 {offsets = [0, 64], sizes = [4, 32], strides = [1, 1]} : vector<4x96xf32> to vector<4x32xf32>
    %300 = arith.mulf %289, %299 : vector<4x32xf32>
    %301 = arith.addf %298, %300 : vector<4x32xf32>
    %302 = math.tanh %301 : vector<4x32xf32>
    %cst_90 = arith.constant 1.000000e+00 : f32
    %303 = vector.broadcast %cst_90 : f32 to vector<4x32xf32>
    %304 = arith.subf %303, %297 : vector<4x32xf32>
    %305 = arith.mulf %304, %302 : vector<4x32xf32>
    %306 = arith.mulf %297, %248 : vector<4x32xf32>
    %307 = arith.addf %305, %306 : vector<4x32xf32>
    %cst_91 = arith.constant dense<0.000000e+00> : vector<4xf32>
    %308 = vector.multi_reduction <add>, %307, %cst_91 [1] : vector<4x32xf32> to vector<4xf32>
    %309 = vector.shape_cast %308 : vector<4xf32> to vector<4x1xf32>
    %cst_92 = arith.constant 3.200000e+01 : f32
    %310 = vector.broadcast %cst_92 : f32 to vector<4x1xf32>
    %311 = arith.divf %309, %310 : vector<4x1xf32>
    %312 = vector.broadcast %311 : vector<4x1xf32> to vector<4x32xf32>
    %313 = arith.subf %307, %312 : vector<4x32xf32>
    %314 = arith.mulf %313, %313 : vector<4x32xf32>
    %cst_93 = arith.constant dense<0.000000e+00> : vector<4xf32>
    %315 = vector.multi_reduction <add>, %314, %cst_93 [1] : vector<4x32xf32> to vector<4xf32>
    %316 = vector.shape_cast %315 : vector<4xf32> to vector<4x1xf32>
    %cst_94 = arith.constant 3.200000e+01 : f32
    %317 = vector.broadcast %cst_94 : f32 to vector<4x1xf32>
    %318 = arith.divf %316, %317 : vector<4x1xf32>
    %319 = vector.broadcast %311 : vector<4x1xf32> to vector<4x32xf32>
    %320 = arith.subf %307, %319 : vector<4x32xf32>
    %cst_95 = arith.constant 9.99999974E-6 : f32
    %321 = vector.broadcast %cst_95 : f32 to vector<4x1xf32>
    %322 = arith.addf %318, %321 : vector<4x1xf32>
    %323 = math.rsqrt %322 : vector<4x1xf32>
    %324 = vector.broadcast %323 : vector<4x1xf32> to vector<4x32xf32>
    %325 = arith.mulf %320, %324 : vector<4x32xf32>
    %326 = arith.mulf %325, %5 : vector<4x32xf32>
    %327 = arith.addf %326, %8 : vector<4x32xf32>
    %c4_i32_96 = arith.constant 4 : i32
    %328 = arith.muli %c4_i32_84, %c4_i32_96 : i32
    %329 = arith.index_cast %328 : i32 to index
    %c0_97 = arith.constant 0 : index
    %330 = vector.load %arg11[%329, %c0_97] : memref<32x32xf32, #tpu.memory_space<vmem>>, vector<4x32xf32>
    %cst_98 = arith.constant dense<0.000000e+00> : vector<4x32xf32>
    %331 = tpu.matmul %327, %40, %cst_98 {dimension_numbers = #tpu.dot_dimension_numbers<[1], [0], [0], [1], [0, 0, 1, 1], [], []>} : vector<4x32xf32>, vector<32x32xf32>, vector<4x32xf32> -> vector<4x32xf32>
    %332 = arith.addf %330, %331 : vector<4x32xf32>
    %c4_i32_99 = arith.constant 4 : i32
    %333 = arith.muli %c4_i32_84, %c4_i32_99 : i32
    %334 = arith.index_cast %333 : i32 to index
    %c0_100 = arith.constant 0 : index
    %335 = vector.load %arg11[%334, %c0_100] : memref<32x32xf32, #tpu.memory_space<vmem>>, vector<4x32xf32>
    tpu.vector_store %arg11[%334, %c0_100], %332 {strides = array<i32>} : memref<32x32xf32, #tpu.memory_space<vmem>>, vector<4x32xf32>,
    %c5_i32 = arith.constant 5 : i32
    %c4_i32_101 = arith.constant 4 : i32
    %336 = arith.muli %c5_i32, %c4_i32_101 : i32
    %337 = arith.index_cast %336 : i32 to index
    %c0_102 = arith.constant 0 : index
    %338 = vector.load %arg12[%337, %c0_102] : memref<32x96xf32, #tpu.memory_space<vmem>>, vector<4x96xf32>
    %cst_103 = arith.constant dense<0.000000e+00> : vector<4x96xf32>
    %339 = tpu.matmul %307, %36, %cst_103 {dimension_numbers = #tpu.dot_dimension_numbers<[1], [0], [0], [1], [0, 0, 1, 1], [], []>} : vector<4x32xf32>, vector<32x96xf32>, vector<4x96xf32> -> vector<4x96xf32>
    %340 = arith.addf %339, %39 : vector<4x96xf32>
    %341 = vector.extract_strided_slice %338 {offsets = [0, 0], sizes = [4, 32], strides = [1, 1]} : vector<4x96xf32> to vector<4x32xf32>
    %342 = vector.extract_strided_slice %340 {offsets = [0, 0], sizes = [4, 32], strides = [1, 1]} : vector<4x96xf32> to vector<4x32xf32>
    %343 = arith.addf %341, %342 : vector<4x32xf32>
    %344 = arith.negf %343 : vector<4x32xf32>
    %345 = math.exp %344 : vector<4x32xf32>
    %cst_104 = arith.constant 1.000000e+00 : f32
    %346 = vector.broadcast %cst_104 : f32 to vector<4x32xf32>
    %347 = arith.addf %346, %345 : vector<4x32xf32>
    %348 = arith.divf %346, %347 : vector<4x32xf32>
    %349 = vector.extract_strided_slice %338 {offsets = [0, 32], sizes = [4, 32], strides = [1, 1]} : vector<4x96xf32> to vector<4x32xf32>
    %350 = vector.extract_strided_slice %340 {offsets = [0, 32], sizes = [4, 32], strides = [1, 1]} : vector<4x96xf32> to vector<4x32xf32>
    %351 = arith.addf %349, %350 : vector<4x32xf32>
    %352 = arith.negf %351 : vector<4x32xf32>
    %353 = math.exp %352 : vector<4x32xf32>
    %cst_105 = arith.constant 1.000000e+00 : f32
    %354 = vector.broadcast %cst_105 : f32 to vector<4x32xf32>
    %355 = arith.addf %354, %353 : vector<4x32xf32>
    %356 = arith.divf %354, %355 : vector<4x32xf32>
    %357 = vector.extract_strided_slice %338 {offsets = [0, 64], sizes = [4, 32], strides = [1, 1]} : vector<4x96xf32> to vector<4x32xf32>
    %358 = vector.extract_strided_slice %340 {offsets = [0, 64], sizes = [4, 32], strides = [1, 1]} : vector<4x96xf32> to vector<4x32xf32>
    %359 = arith.mulf %348, %358 : vector<4x32xf32>
    %360 = arith.addf %357, %359 : vector<4x32xf32>
    %361 = math.tanh %360 : vector<4x32xf32>
    %cst_106 = arith.constant 1.000000e+00 : f32
    %362 = vector.broadcast %cst_106 : f32 to vector<4x32xf32>
    %363 = arith.subf %362, %356 : vector<4x32xf32>
    %364 = arith.mulf %363, %361 : vector<4x32xf32>
    %365 = arith.mulf %356, %307 : vector<4x32xf32>
    %366 = arith.addf %364, %365 : vector<4x32xf32>
    %cst_107 = arith.constant dense<0.000000e+00> : vector<4xf32>
    %367 = vector.multi_reduction <add>, %366, %cst_107 [1] : vector<4x32xf32> to vector<4xf32>
    %368 = vector.shape_cast %367 : vector<4xf32> to vector<4x1xf32>
    %cst_108 = arith.constant 3.200000e+01 : f32
    %369 = vector.broadcast %cst_108 : f32 to vector<4x1xf32>
    %370 = arith.divf %368, %369 : vector<4x1xf32>
    %371 = vector.broadcast %370 : vector<4x1xf32> to vector<4x32xf32>
    %372 = arith.subf %366, %371 : vector<4x32xf32>
    %373 = arith.mulf %372, %372 : vector<4x32xf32>
    %cst_109 = arith.constant dense<0.000000e+00> : vector<4xf32>
    %374 = vector.multi_reduction <add>, %373, %cst_109 [1] : vector<4x32xf32> to vector<4xf32>
    %375 = vector.shape_cast %374 : vector<4xf32> to vector<4x1xf32>
    %cst_110 = arith.constant 3.200000e+01 : f32
    %376 = vector.broadcast %cst_110 : f32 to vector<4x1xf32>
    %377 = arith.divf %375, %376 : vector<4x1xf32>
    %378 = vector.broadcast %370 : vector<4x1xf32> to vector<4x32xf32>
    %379 = arith.subf %366, %378 : vector<4x32xf32>
    %cst_111 = arith.constant 9.99999974E-6 : f32
    %380 = vector.broadcast %cst_111 : f32 to vector<4x1xf32>
    %381 = arith.addf %377, %380 : vector<4x1xf32>
    %382 = math.rsqrt %381 : vector<4x1xf32>
    %383 = vector.broadcast %382 : vector<4x1xf32> to vector<4x32xf32>
    %384 = arith.mulf %379, %383 : vector<4x32xf32>
    %385 = arith.mulf %384, %5 : vector<4x32xf32>
    %386 = arith.addf %385, %8 : vector<4x32xf32>
    %c4_i32_112 = arith.constant 4 : i32
    %387 = arith.muli %c5_i32, %c4_i32_112 : i32
    %388 = arith.index_cast %387 : i32 to index
    %c0_113 = arith.constant 0 : index
    %389 = vector.load %arg11[%388, %c0_113] : memref<32x32xf32, #tpu.memory_space<vmem>>, vector<4x32xf32>
    %cst_114 = arith.constant dense<0.000000e+00> : vector<4x32xf32>
    %390 = tpu.matmul %386, %40, %cst_114 {dimension_numbers = #tpu.dot_dimension_numbers<[1], [0], [0], [1], [0, 0, 1, 1], [], []>} : vector<4x32xf32>, vector<32x32xf32>, vector<4x32xf32> -> vector<4x32xf32>
    %391 = arith.addf %389, %390 : vector<4x32xf32>
    %c4_i32_115 = arith.constant 4 : i32
    %392 = arith.muli %c5_i32, %c4_i32_115 : i32
    %393 = arith.index_cast %392 : i32 to index
    %c0_116 = arith.constant 0 : index
    %394 = vector.load %arg11[%393, %c0_116] : memref<32x32xf32, #tpu.memory_space<vmem>>, vector<4x32xf32>
    tpu.vector_store %arg11[%393, %c0_116], %391 {strides = array<i32>} : memref<32x32xf32, #tpu.memory_space<vmem>>, vector<4x32xf32>,
    %c6_i32 = arith.constant 6 : i32
    %c4_i32_117 = arith.constant 4 : i32
    %395 = arith.muli %c6_i32, %c4_i32_117 : i32
    %396 = arith.index_cast %395 : i32 to index
    %c0_118 = arith.constant 0 : index
    %397 = vector.load %arg12[%396, %c0_118] : memref<32x96xf32, #tpu.memory_space<vmem>>, vector<4x96xf32>
    %cst_119 = arith.constant dense<0.000000e+00> : vector<4x96xf32>
    %398 = tpu.matmul %366, %36, %cst_119 {dimension_numbers = #tpu.dot_dimension_numbers<[1], [0], [0], [1], [0, 0, 1, 1], [], []>} : vector<4x32xf32>, vector<32x96xf32>, vector<4x96xf32> -> vector<4x96xf32>
    %399 = arith.addf %398, %39 : vector<4x96xf32>
    %400 = vector.extract_strided_slice %397 {offsets = [0, 0], sizes = [4, 32], strides = [1, 1]} : vector<4x96xf32> to vector<4x32xf32>
    %401 = vector.extract_strided_slice %399 {offsets = [0, 0], sizes = [4, 32], strides = [1, 1]} : vector<4x96xf32> to vector<4x32xf32>
    %402 = arith.addf %400, %401 : vector<4x32xf32>
    %403 = arith.negf %402 : vector<4x32xf32>
    %404 = math.exp %403 : vector<4x32xf32>
    %cst_120 = arith.constant 1.000000e+00 : f32
    %405 = vector.broadcast %cst_120 : f32 to vector<4x32xf32>
    %406 = arith.addf %405, %404 : vector<4x32xf32>
    %407 = arith.divf %405, %406 : vector<4x32xf32>
    %408 = vector.extract_strided_slice %397 {offsets = [0, 32], sizes = [4, 32], strides = [1, 1]} : vector<4x96xf32> to vector<4x32xf32>
    %409 = vector.extract_strided_slice %399 {offsets = [0, 32], sizes = [4, 32], strides = [1, 1]} : vector<4x96xf32> to vector<4x32xf32>
    %410 = arith.addf %408, %409 : vector<4x32xf32>
    %411 = arith.negf %410 : vector<4x32xf32>
    %412 = math.exp %411 : vector<4x32xf32>
    %cst_121 = arith.constant 1.000000e+00 : f32
    %413 = vector.broadcast %cst_121 : f32 to vector<4x32xf32>
    %414 = arith.addf %413, %412 : vector<4x32xf32>
    %415 = arith.divf %413, %414 : vector<4x32xf32>
    %416 = vector.extract_strided_slice %397 {offsets = [0, 64], sizes = [4, 32], strides = [1, 1]} : vector<4x96xf32> to vector<4x32xf32>
    %417 = vector.extract_strided_slice %399 {offsets = [0, 64], sizes = [4, 32], strides = [1, 1]} : vector<4x96xf32> to vector<4x32xf32>
    %418 = arith.mulf %407, %417 : vector<4x32xf32>
    %419 = arith.addf %416, %418 : vector<4x32xf32>
    %420 = math.tanh %419 : vector<4x32xf32>
    %cst_122 = arith.constant 1.000000e+00 : f32
    %421 = vector.broadcast %cst_122 : f32 to vector<4x32xf32>
    %422 = arith.subf %421, %415 : vector<4x32xf32>
    %423 = arith.mulf %422, %420 : vector<4x32xf32>
    %424 = arith.mulf %415, %366 : vector<4x32xf32>
    %425 = arith.addf %423, %424 : vector<4x32xf32>
    %cst_123 = arith.constant dense<0.000000e+00> : vector<4xf32>
    %426 = vector.multi_reduction <add>, %425, %cst_123 [1] : vector<4x32xf32> to vector<4xf32>
    %427 = vector.shape_cast %426 : vector<4xf32> to vector<4x1xf32>
    %cst_124 = arith.constant 3.200000e+01 : f32
    %428 = vector.broadcast %cst_124 : f32 to vector<4x1xf32>
    %429 = arith.divf %427, %428 : vector<4x1xf32>
    %430 = vector.broadcast %429 : vector<4x1xf32> to vector<4x32xf32>
    %431 = arith.subf %425, %430 : vector<4x32xf32>
    %432 = arith.mulf %431, %431 : vector<4x32xf32>
    %cst_125 = arith.constant dense<0.000000e+00> : vector<4xf32>
    %433 = vector.multi_reduction <add>, %432, %cst_125 [1] : vector<4x32xf32> to vector<4xf32>
    %434 = vector.shape_cast %433 : vector<4xf32> to vector<4x1xf32>
    %cst_126 = arith.constant 3.200000e+01 : f32
    %435 = vector.broadcast %cst_126 : f32 to vector<4x1xf32>
    %436 = arith.divf %434, %435 : vector<4x1xf32>
    %437 = vector.broadcast %429 : vector<4x1xf32> to vector<4x32xf32>
    %438 = arith.subf %425, %437 : vector<4x32xf32>
    %cst_127 = arith.constant 9.99999974E-6 : f32
    %439 = vector.broadcast %cst_127 : f32 to vector<4x1xf32>
    %440 = arith.addf %436, %439 : vector<4x1xf32>
    %441 = math.rsqrt %440 : vector<4x1xf32>
    %442 = vector.broadcast %441 : vector<4x1xf32> to vector<4x32xf32>
    %443 = arith.mulf %438, %442 : vector<4x32xf32>
    %444 = arith.mulf %443, %5 : vector<4x32xf32>
    %445 = arith.addf %444, %8 : vector<4x32xf32>
    %c4_i32_128 = arith.constant 4 : i32
    %446 = arith.muli %c6_i32, %c4_i32_128 : i32
    %447 = arith.index_cast %446 : i32 to index
    %c0_129 = arith.constant 0 : index
    %448 = vector.load %arg11[%447, %c0_129] : memref<32x32xf32, #tpu.memory_space<vmem>>, vector<4x32xf32>
    %cst_130 = arith.constant dense<0.000000e+00> : vector<4x32xf32>
    %449 = tpu.matmul %445, %40, %cst_130 {dimension_numbers = #tpu.dot_dimension_numbers<[1], [0], [0], [1], [0, 0, 1, 1], [], []>} : vector<4x32xf32>, vector<32x32xf32>, vector<4x32xf32> -> vector<4x32xf32>
    %450 = arith.addf %448, %449 : vector<4x32xf32>
    %c4_i32_131 = arith.constant 4 : i32
    %451 = arith.muli %c6_i32, %c4_i32_131 : i32
    %452 = arith.index_cast %451 : i32 to index
    %c0_132 = arith.constant 0 : index
    %453 = vector.load %arg11[%452, %c0_132] : memref<32x32xf32, #tpu.memory_space<vmem>>, vector<4x32xf32>
    tpu.vector_store %arg11[%452, %c0_132], %450 {strides = array<i32>} : memref<32x32xf32, #tpu.memory_space<vmem>>, vector<4x32xf32>,
    %c7_i32 = arith.constant 7 : i32
    %c4_i32_133 = arith.constant 4 : i32
    %454 = arith.muli %c7_i32, %c4_i32_133 : i32
    %455 = arith.index_cast %454 : i32 to index
    %c0_134 = arith.constant 0 : index
    %456 = vector.load %arg12[%455, %c0_134] : memref<32x96xf32, #tpu.memory_space<vmem>>, vector<4x96xf32>
    %cst_135 = arith.constant dense<0.000000e+00> : vector<4x96xf32>
    %457 = tpu.matmul %425, %36, %cst_135 {dimension_numbers = #tpu.dot_dimension_numbers<[1], [0], [0], [1], [0, 0, 1, 1], [], []>} : vector<4x32xf32>, vector<32x96xf32>, vector<4x96xf32> -> vector<4x96xf32>
    %458 = arith.addf %457, %39 : vector<4x96xf32>
    %459 = vector.extract_strided_slice %456 {offsets = [0, 0], sizes = [4, 32], strides = [1, 1]} : vector<4x96xf32> to vector<4x32xf32>
    %460 = vector.extract_strided_slice %458 {offsets = [0, 0], sizes = [4, 32], strides = [1, 1]} : vector<4x96xf32> to vector<4x32xf32>
    %461 = arith.addf %459, %460 : vector<4x32xf32>
    %462 = arith.negf %461 : vector<4x32xf32>
    %463 = math.exp %462 : vector<4x32xf32>
    %cst_136 = arith.constant 1.000000e+00 : f32
    %464 = vector.broadcast %cst_136 : f32 to vector<4x32xf32>
    %465 = arith.addf %464, %463 : vector<4x32xf32>
    %466 = arith.divf %464, %465 : vector<4x32xf32>
    %467 = vector.extract_strided_slice %456 {offsets = [0, 32], sizes = [4, 32], strides = [1, 1]} : vector<4x96xf32> to vector<4x32xf32>
    %468 = vector.extract_strided_slice %458 {offsets = [0, 32], sizes = [4, 32], strides = [1, 1]} : vector<4x96xf32> to vector<4x32xf32>
    %469 = arith.addf %467, %468 : vector<4x32xf32>
    %470 = arith.negf %469 : vector<4x32xf32>
    %471 = math.exp %470 : vector<4x32xf32>
    %cst_137 = arith.constant 1.000000e+00 : f32
    %472 = vector.broadcast %cst_137 : f32 to vector<4x32xf32>
    %473 = arith.addf %472, %471 : vector<4x32xf32>
    %474 = arith.divf %472, %473 : vector<4x32xf32>
    %475 = vector.extract_strided_slice %456 {offsets = [0, 64], sizes = [4, 32], strides = [1, 1]} : vector<4x96xf32> to vector<4x32xf32>
    %476 = vector.extract_strided_slice %458 {offsets = [0, 64], sizes = [4, 32], strides = [1, 1]} : vector<4x96xf32> to vector<4x32xf32>
    %477 = arith.mulf %466, %476 : vector<4x32xf32>
    %478 = arith.addf %475, %477 : vector<4x32xf32>
    %479 = math.tanh %478 : vector<4x32xf32>
    %cst_138 = arith.constant 1.000000e+00 : f32
    %480 = vector.broadcast %cst_138 : f32 to vector<4x32xf32>
    %481 = arith.subf %480, %474 : vector<4x32xf32>
    %482 = arith.mulf %481, %479 : vector<4x32xf32>
    %483 = arith.mulf %474, %425 : vector<4x32xf32>
    %484 = arith.addf %482, %483 : vector<4x32xf32>
    %cst_139 = arith.constant dense<0.000000e+00> : vector<4xf32>
    %485 = vector.multi_reduction <add>, %484, %cst_139 [1] : vector<4x32xf32> to vector<4xf32>
    %486 = vector.shape_cast %485 : vector<4xf32> to vector<4x1xf32>
    %cst_140 = arith.constant 3.200000e+01 : f32
    %487 = vector.broadcast %cst_140 : f32 to vector<4x1xf32>
    %488 = arith.divf %486, %487 : vector<4x1xf32>
    %489 = vector.broadcast %488 : vector<4x1xf32> to vector<4x32xf32>
    %490 = arith.subf %484, %489 : vector<4x32xf32>
    %491 = arith.mulf %490, %490 : vector<4x32xf32>
    %cst_141 = arith.constant dense<0.000000e+00> : vector<4xf32>
    %492 = vector.multi_reduction <add>, %491, %cst_141 [1] : vector<4x32xf32> to vector<4xf32>
    %493 = vector.shape_cast %492 : vector<4xf32> to vector<4x1xf32>
    %cst_142 = arith.constant 3.200000e+01 : f32
    %494 = vector.broadcast %cst_142 : f32 to vector<4x1xf32>
    %495 = arith.divf %493, %494 : vector<4x1xf32>
    %496 = vector.broadcast %488 : vector<4x1xf32> to vector<4x32xf32>
    %497 = arith.subf %484, %496 : vector<4x32xf32>
    %cst_143 = arith.constant 9.99999974E-6 : f32
    %498 = vector.broadcast %cst_143 : f32 to vector<4x1xf32>
    %499 = arith.addf %495, %498 : vector<4x1xf32>
    %500 = math.rsqrt %499 : vector<4x1xf32>
    %501 = vector.broadcast %500 : vector<4x1xf32> to vector<4x32xf32>
    %502 = arith.mulf %497, %501 : vector<4x32xf32>
    %503 = arith.mulf %502, %5 : vector<4x32xf32>
    %504 = arith.addf %503, %8 : vector<4x32xf32>
    %c4_i32_144 = arith.constant 4 : i32
    %505 = arith.muli %c7_i32, %c4_i32_144 : i32
    %506 = arith.index_cast %505 : i32 to index
    %c0_145 = arith.constant 0 : index
    %507 = vector.load %arg11[%506, %c0_145] : memref<32x32xf32, #tpu.memory_space<vmem>>, vector<4x32xf32>
    %cst_146 = arith.constant dense<0.000000e+00> : vector<4x32xf32>
    %508 = tpu.matmul %504, %40, %cst_146 {dimension_numbers = #tpu.dot_dimension_numbers<[1], [0], [0], [1], [0, 0, 1, 1], [], []>} : vector<4x32xf32>, vector<32x32xf32>, vector<4x32xf32> -> vector<4x32xf32>
    %509 = arith.addf %507, %508 : vector<4x32xf32>
    %c4_i32_147 = arith.constant 4 : i32
    %510 = arith.muli %c7_i32, %c4_i32_147 : i32
    %511 = arith.index_cast %510 : i32 to index
    %c0_148 = arith.constant 0 : index
    %512 = vector.load %arg11[%511, %c0_148] : memref<32x32xf32, #tpu.memory_space<vmem>>, vector<4x32xf32>
    tpu.vector_store %arg11[%511, %c0_148], %509 {strides = array<i32>} : memref<32x32xf32, #tpu.memory_space<vmem>>, vector<4x32xf32>,
    %c8_i32 = arith.constant 8 : i32
    %c0_149 = arith.constant 0 : index
    %c0_150 = arith.constant 0 : index
    %513 = vector.load %arg11[%c0_149, %c0_150] : memref<32x32xf32, #tpu.memory_space<vmem>>, vector<32x32xf32>
    %c0_151 = arith.constant 0 : index
    %c0_152 = arith.constant 0 : index
    %514 = vector.load %arg4[%c0_151, %c0_152] : memref<64x96xf32, #tpu.memory_space<vmem>>, vector<32x96xf32>
    %cst_153 = arith.constant dense<0.000000e+00> : vector<32x96xf32>
    %515 = tpu.matmul %513, %514, %cst_153 {dimension_numbers = #tpu.dot_dimension_numbers<[1], [0], [0], [1], [0, 0, 1, 1], [], []>} : vector<32x32xf32>, vector<32x96xf32>, vector<32x96xf32> -> vector<32x96xf32>
    %516 = vector.extract_strided_slice %1 {offsets = [2, 0], sizes = [1, 96], strides = [1, 1]} : vector<6x96xf32> to vector<1x96xf32>
    %517 = vector.broadcast %516 : vector<1x96xf32> to vector<32x96xf32>
    %518 = arith.addf %515, %517 : vector<32x96xf32>
    %c0_154 = arith.constant 0 : index
    %c0_155 = arith.constant 0 : index
    %519 = vector.load %arg13[%c0_154, %c0_155] : memref<32x96xf32, #tpu.memory_space<vmem>>, vector<32x96xf32>
    tpu.vector_store %arg13[%c0_154, %c0_155], %518 {strides = array<i32>} : memref<32x96xf32, #tpu.memory_space<vmem>>, vector<32x96xf32>,
    %c0_156 = arith.constant 0 : index
    %c0_157 = arith.constant 0 : index
    %520 = vector.load %arg5[%c0_156, %c0_157] : memref<64x96xf32, #tpu.memory_space<vmem>>, vector<32x96xf32>
    %cst_158 = arith.constant dense<0.000000e+00> : vector<32x96xf32>
    %521 = tpu.matmul %513, %520, %cst_158 {dimension_numbers = #tpu.dot_dimension_numbers<[1], [0], [0], [1], [0, 0, 1, 1], [], []>} : vector<32x32xf32>, vector<32x96xf32>, vector<32x96xf32> -> vector<32x96xf32>
    %522 = vector.extract_strided_slice %1 {offsets = [4, 0], sizes = [1, 96], strides = [1, 1]} : vector<6x96xf32> to vector<1x96xf32>
    %523 = vector.broadcast %522 : vector<1x96xf32> to vector<32x96xf32>
    %524 = arith.addf %521, %523 : vector<32x96xf32>
    %c0_159 = arith.constant 0 : index
    %c0_160 = arith.constant 0 : index
    %525 = vector.load %arg14[%c0_159, %c0_160] : memref<32x96xf32, #tpu.memory_space<vmem>>, vector<32x96xf32>
    tpu.vector_store %arg14[%c0_159, %c0_160], %524 {strides = array<i32>} : memref<32x96xf32, #tpu.memory_space<vmem>>, vector<32x96xf32>,
    %c32_161 = arith.constant 32 : index
    %c0_162 = arith.constant 0 : index
    %526 = vector.load %arg4[%c32_161, %c0_162] : memref<64x96xf32, #tpu.memory_space<vmem>>, vector<32x96xf32>
    %c32_163 = arith.constant 32 : index
    %c0_164 = arith.constant 0 : index
    %527 = vector.load %arg5[%c32_163, %c0_164] : memref<64x96xf32, #tpu.memory_space<vmem>>, vector<32x96xf32>
    %528 = vector.extract_strided_slice %1 {offsets = [3, 0], sizes = [1, 96], strides = [1, 1]} : vector<6x96xf32> to vector<1x96xf32>
    %529 = vector.shape_cast %528 : vector<1x96xf32> to vector<1x96xf32>
    %530 = vector.broadcast %529 : vector<1x96xf32> to vector<4x96xf32>
    %531 = vector.extract_strided_slice %1 {offsets = [5, 0], sizes = [1, 96], strides = [1, 1]} : vector<6x96xf32> to vector<1x96xf32>
    %532 = vector.shape_cast %531 : vector<1x96xf32> to vector<1x96xf32>
    %533 = vector.broadcast %532 : vector<1x96xf32> to vector<4x96xf32>
    %c0_i32_165 = arith.constant 0 : i32
    %c7_i32_166 = arith.constant 7 : i32
    %534 = arith.subi %c7_i32_166, %c0_i32_165 : i32
    %c4_i32_167 = arith.constant 4 : i32
    %535 = arith.muli %c0_i32_165, %c4_i32_167 : i32
    %536 = arith.index_cast %535 : i32 to index
    %c0_168 = arith.constant 0 : index
    %537 = vector.load %arg13[%536, %c0_168] : memref<32x96xf32, #tpu.memory_space<vmem>>, vector<4x96xf32>
    %cst_169 = arith.constant dense<0.000000e+00> : vector<4x96xf32>
    %538 = tpu.matmul %35, %526, %cst_169 {dimension_numbers = #tpu.dot_dimension_numbers<[1], [0], [0], [1], [0, 0, 1, 1], [], []>} : vector<4x32xf32>, vector<32x96xf32>, vector<4x96xf32> -> vector<4x96xf32>
    %539 = arith.addf %538, %530 : vector<4x96xf32>
    %540 = vector.extract_strided_slice %537 {offsets = [0, 0], sizes = [4, 32], strides = [1, 1]} : vector<4x96xf32> to vector<4x32xf32>
    %541 = vector.extract_strided_slice %539 {offsets = [0, 0], sizes = [4, 32], strides = [1, 1]} : vector<4x96xf32> to vector<4x32xf32>
    %542 = arith.addf %540, %541 : vector<4x32xf32>
    %543 = arith.negf %542 : vector<4x32xf32>
    %544 = math.exp %543 : vector<4x32xf32>
    %cst_170 = arith.constant 1.000000e+00 : f32
    %545 = vector.broadcast %cst_170 : f32 to vector<4x32xf32>
    %546 = arith.addf %545, %544 : vector<4x32xf32>
    %547 = arith.divf %545, %546 : vector<4x32xf32>
    %548 = vector.extract_strided_slice %537 {offsets = [0, 32], sizes = [4, 32], strides = [1, 1]} : vector<4x96xf32> to vector<4x32xf32>
    %549 = vector.extract_strided_slice %539 {offsets = [0, 32], sizes = [4, 32], strides = [1, 1]} : vector<4x96xf32> to vector<4x32xf32>
    %550 = arith.addf %548, %549 : vector<4x32xf32>
    %551 = arith.negf %550 : vector<4x32xf32>
    %552 = math.exp %551 : vector<4x32xf32>
    %cst_171 = arith.constant 1.000000e+00 : f32
    %553 = vector.broadcast %cst_171 : f32 to vector<4x32xf32>
    %554 = arith.addf %553, %552 : vector<4x32xf32>
    %555 = arith.divf %553, %554 : vector<4x32xf32>
    %556 = vector.extract_strided_slice %537 {offsets = [0, 64], sizes = [4, 32], strides = [1, 1]} : vector<4x96xf32> to vector<4x32xf32>
    %557 = vector.extract_strided_slice %539 {offsets = [0, 64], sizes = [4, 32], strides = [1, 1]} : vector<4x96xf32> to vector<4x32xf32>
    %558 = arith.mulf %547, %557 : vector<4x32xf32>
    %559 = arith.addf %556, %558 : vector<4x32xf32>
    %560 = math.tanh %559 : vector<4x32xf32>
    %cst_172 = arith.constant 1.000000e+00 : f32
    %561 = vector.broadcast %cst_172 : f32 to vector<4x32xf32>
    %562 = arith.subf %561, %555 : vector<4x32xf32>
    %563 = arith.mulf %562, %560 : vector<4x32xf32>
    %564 = arith.mulf %555, %35 : vector<4x32xf32>
    %565 = arith.addf %563, %564 : vector<4x32xf32>
    %c4_i32_173 = arith.constant 4 : i32
    %566 = arith.muli %534, %c4_i32_173 : i32
    %567 = arith.index_cast %566 : i32 to index
    %c0_174 = arith.constant 0 : index
    %568 = vector.load %arg14[%567, %c0_174] : memref<32x96xf32, #tpu.memory_space<vmem>>, vector<4x96xf32>
    %cst_175 = arith.constant dense<0.000000e+00> : vector<4x96xf32>
    %569 = tpu.matmul %35, %527, %cst_175 {dimension_numbers = #tpu.dot_dimension_numbers<[1], [0], [0], [1], [0, 0, 1, 1], [], []>} : vector<4x32xf32>, vector<32x96xf32>, vector<4x96xf32> -> vector<4x96xf32>
    %570 = arith.addf %569, %533 : vector<4x96xf32>
    %571 = vector.extract_strided_slice %568 {offsets = [0, 0], sizes = [4, 32], strides = [1, 1]} : vector<4x96xf32> to vector<4x32xf32>
    %572 = vector.extract_strided_slice %570 {offsets = [0, 0], sizes = [4, 32], strides = [1, 1]} : vector<4x96xf32> to vector<4x32xf32>
    %573 = arith.addf %571, %572 : vector<4x32xf32>
    %574 = arith.negf %573 : vector<4x32xf32>
    %575 = math.exp %574 : vector<4x32xf32>
    %cst_176 = arith.constant 1.000000e+00 : f32
    %576 = vector.broadcast %cst_176 : f32 to vector<4x32xf32>
    %577 = arith.addf %576, %575 : vector<4x32xf32>
    %578 = arith.divf %576, %577 : vector<4x32xf32>
    %579 = vector.extract_strided_slice %568 {offsets = [0, 32], sizes = [4, 32], strides = [1, 1]} : vector<4x96xf32> to vector<4x32xf32>
    %580 = vector.extract_strided_slice %570 {offsets = [0, 32], sizes = [4, 32], strides = [1, 1]} : vector<4x96xf32> to vector<4x32xf32>
    %581 = arith.addf %579, %580 : vector<4x32xf32>
    %582 = arith.negf %581 : vector<4x32xf32>
    %583 = math.exp %582 : vector<4x32xf32>
    %cst_177 = arith.constant 1.000000e+00 : f32
    %584 = vector.broadcast %cst_177 : f32 to vector<4x32xf32>
    %585 = arith.addf %584, %583 : vector<4x32xf32>
    %586 = arith.divf %584, %585 : vector<4x32xf32>
    %587 = vector.extract_strided_slice %568 {offsets = [0, 64], sizes = [4, 32], strides = [1, 1]} : vector<4x96xf32> to vector<4x32xf32>
    %588 = vector.extract_strided_slice %570 {offsets = [0, 64], sizes = [4, 32], strides = [1, 1]} : vector<4x96xf32> to vector<4x32xf32>
    %589 = arith.mulf %578, %588 : vector<4x32xf32>
    %590 = arith.addf %587, %589 : vector<4x32xf32>
    %591 = math.tanh %590 : vector<4x32xf32>
    %cst_178 = arith.constant 1.000000e+00 : f32
    %592 = vector.broadcast %cst_178 : f32 to vector<4x32xf32>
    %593 = arith.subf %592, %586 : vector<4x32xf32>
    %594 = arith.mulf %593, %591 : vector<4x32xf32>
    %595 = arith.mulf %586, %35 : vector<4x32xf32>
    %596 = arith.addf %594, %595 : vector<4x32xf32>
    %597 = arith.index_cast %c0_i32_165 : i32 to index
    %c0_179 = arith.constant 0 : index
    %c0_180 = arith.constant 0 : index
    %598 = vector.load %arg8[%597, %c0_179, %c0_180] : memref<8x4x32xf32, #tpu.memory_space<vmem>>, vector<1x4x32xf32>
    %599 = vector.shape_cast %598 : vector<1x4x32xf32> to vector<4x32xf32>
    %600 = vector.shape_cast %565 : vector<4x32xf32> to vector<1x4x32xf32>
    tpu.vector_store %arg8[%597, %c0_179, %c0_180], %600 {strides = array<i32>} : memref<8x4x32xf32, #tpu.memory_space<vmem>>, vector<1x4x32xf32>,
    %601 = arith.index_cast %534 : i32 to index
    %c0_181 = arith.constant 0 : index
    %c0_182 = arith.constant 0 : index
    %602 = vector.load %arg9[%601, %c0_181, %c0_182] : memref<8x4x32xf32, #tpu.memory_space<vmem>>, vector<1x4x32xf32>
    %603 = vector.shape_cast %602 : vector<1x4x32xf32> to vector<4x32xf32>
    %604 = vector.shape_cast %596 : vector<4x32xf32> to vector<1x4x32xf32>
    tpu.vector_store %arg9[%601, %c0_181, %c0_182], %604 {strides = array<i32>} : memref<8x4x32xf32, #tpu.memory_space<vmem>>, vector<1x4x32xf32>,
    %c1_i32_183 = arith.constant 1 : i32
    %c7_i32_184 = arith.constant 7 : i32
    %605 = arith.subi %c7_i32_184, %c1_i32_183 : i32
    %c4_i32_185 = arith.constant 4 : i32
    %606 = arith.muli %c1_i32_183, %c4_i32_185 : i32
    %607 = arith.index_cast %606 : i32 to index
    %c0_186 = arith.constant 0 : index
    %608 = vector.load %arg13[%607, %c0_186] : memref<32x96xf32, #tpu.memory_space<vmem>>, vector<4x96xf32>
    %cst_187 = arith.constant dense<0.000000e+00> : vector<4x96xf32>
    %609 = tpu.matmul %565, %526, %cst_187 {dimension_numbers = #tpu.dot_dimension_numbers<[1], [0], [0], [1], [0, 0, 1, 1], [], []>} : vector<4x32xf32>, vector<32x96xf32>, vector<4x96xf32> -> vector<4x96xf32>
    %610 = arith.addf %609, %530 : vector<4x96xf32>
    %611 = vector.extract_strided_slice %608 {offsets = [0, 0], sizes = [4, 32], strides = [1, 1]} : vector<4x96xf32> to vector<4x32xf32>
    %612 = vector.extract_strided_slice %610 {offsets = [0, 0], sizes = [4, 32], strides = [1, 1]} : vector<4x96xf32> to vector<4x32xf32>
    %613 = arith.addf %611, %612 : vector<4x32xf32>
    %614 = arith.negf %613 : vector<4x32xf32>
    %615 = math.exp %614 : vector<4x32xf32>
    %cst_188 = arith.constant 1.000000e+00 : f32
    %616 = vector.broadcast %cst_188 : f32 to vector<4x32xf32>
    %617 = arith.addf %616, %615 : vector<4x32xf32>
    %618 = arith.divf %616, %617 : vector<4x32xf32>
    %619 = vector.extract_strided_slice %608 {offsets = [0, 32], sizes = [4, 32], strides = [1, 1]} : vector<4x96xf32> to vector<4x32xf32>
    %620 = vector.extract_strided_slice %610 {offsets = [0, 32], sizes = [4, 32], strides = [1, 1]} : vector<4x96xf32> to vector<4x32xf32>
    %621 = arith.addf %619, %620 : vector<4x32xf32>
    %622 = arith.negf %621 : vector<4x32xf32>
    %623 = math.exp %622 : vector<4x32xf32>
    %cst_189 = arith.constant 1.000000e+00 : f32
    %624 = vector.broadcast %cst_189 : f32 to vector<4x32xf32>
    %625 = arith.addf %624, %623 : vector<4x32xf32>
    %626 = arith.divf %624, %625 : vector<4x32xf32>
    %627 = vector.extract_strided_slice %608 {offsets = [0, 64], sizes = [4, 32], strides = [1, 1]} : vector<4x96xf32> to vector<4x32xf32>
    %628 = vector.extract_strided_slice %610 {offsets = [0, 64], sizes = [4, 32], strides = [1, 1]} : vector<4x96xf32> to vector<4x32xf32>
    %629 = arith.mulf %618, %628 : vector<4x32xf32>
    %630 = arith.addf %627, %629 : vector<4x32xf32>
    %631 = math.tanh %630 : vector<4x32xf32>
    %cst_190 = arith.constant 1.000000e+00 : f32
    %632 = vector.broadcast %cst_190 : f32 to vector<4x32xf32>
    %633 = arith.subf %632, %626 : vector<4x32xf32>
    %634 = arith.mulf %633, %631 : vector<4x32xf32>
    %635 = arith.mulf %626, %565 : vector<4x32xf32>
    %636 = arith.addf %634, %635 : vector<4x32xf32>
    %c4_i32_191 = arith.constant 4 : i32
    %637 = arith.muli %605, %c4_i32_191 : i32
    %638 = arith.index_cast %637 : i32 to index
    %c0_192 = arith.constant 0 : index
    %639 = vector.load %arg14[%638, %c0_192] : memref<32x96xf32, #tpu.memory_space<vmem>>, vector<4x96xf32>
    %cst_193 = arith.constant dense<0.000000e+00> : vector<4x96xf32>
    %640 = tpu.matmul %596, %527, %cst_193 {dimension_numbers = #tpu.dot_dimension_numbers<[1], [0], [0], [1], [0, 0, 1, 1], [], []>} : vector<4x32xf32>, vector<32x96xf32>, vector<4x96xf32> -> vector<4x96xf32>
    %641 = arith.addf %640, %533 : vector<4x96xf32>
    %642 = vector.extract_strided_slice %639 {offsets = [0, 0], sizes = [4, 32], strides = [1, 1]} : vector<4x96xf32> to vector<4x32xf32>
    %643 = vector.extract_strided_slice %641 {offsets = [0, 0], sizes = [4, 32], strides = [1, 1]} : vector<4x96xf32> to vector<4x32xf32>
    %644 = arith.addf %642, %643 : vector<4x32xf32>
    %645 = arith.negf %644 : vector<4x32xf32>
    %646 = math.exp %645 : vector<4x32xf32>
    %cst_194 = arith.constant 1.000000e+00 : f32
    %647 = vector.broadcast %cst_194 : f32 to vector<4x32xf32>
    %648 = arith.addf %647, %646 : vector<4x32xf32>
    %649 = arith.divf %647, %648 : vector<4x32xf32>
    %650 = vector.extract_strided_slice %639 {offsets = [0, 32], sizes = [4, 32], strides = [1, 1]} : vector<4x96xf32> to vector<4x32xf32>
    %651 = vector.extract_strided_slice %641 {offsets = [0, 32], sizes = [4, 32], strides = [1, 1]} : vector<4x96xf32> to vector<4x32xf32>
    %652 = arith.addf %650, %651 : vector<4x32xf32>
    %653 = arith.negf %652 : vector<4x32xf32>
    %654 = math.exp %653 : vector<4x32xf32>
    %cst_195 = arith.constant 1.000000e+00 : f32
    %655 = vector.broadcast %cst_195 : f32 to vector<4x32xf32>
    %656 = arith.addf %655, %654 : vector<4x32xf32>
    %657 = arith.divf %655, %656 : vector<4x32xf32>
    %658 = vector.extract_strided_slice %639 {offsets = [0, 64], sizes = [4, 32], strides = [1, 1]} : vector<4x96xf32> to vector<4x32xf32>
    %659 = vector.extract_strided_slice %641 {offsets = [0, 64], sizes = [4, 32], strides = [1, 1]} : vector<4x96xf32> to vector<4x32xf32>
    %660 = arith.mulf %649, %659 : vector<4x32xf32>
    %661 = arith.addf %658, %660 : vector<4x32xf32>
    %662 = math.tanh %661 : vector<4x32xf32>
    %cst_196 = arith.constant 1.000000e+00 : f32
    %663 = vector.broadcast %cst_196 : f32 to vector<4x32xf32>
    %664 = arith.subf %663, %657 : vector<4x32xf32>
    %665 = arith.mulf %664, %662 : vector<4x32xf32>
    %666 = arith.mulf %657, %596 : vector<4x32xf32>
    %667 = arith.addf %665, %666 : vector<4x32xf32>
    %668 = arith.index_cast %c1_i32_183 : i32 to index
    %c0_197 = arith.constant 0 : index
    %c0_198 = arith.constant 0 : index
    %669 = vector.load %arg8[%668, %c0_197, %c0_198] : memref<8x4x32xf32, #tpu.memory_space<vmem>>, vector<1x4x32xf32>
    %670 = vector.shape_cast %669 : vector<1x4x32xf32> to vector<4x32xf32>
    %671 = vector.shape_cast %636 : vector<4x32xf32> to vector<1x4x32xf32>
    tpu.vector_store %arg8[%668, %c0_197, %c0_198], %671 {strides = array<i32>} : memref<8x4x32xf32, #tpu.memory_space<vmem>>, vector<1x4x32xf32>,
    %672 = arith.index_cast %605 : i32 to index
    %c0_199 = arith.constant 0 : index
    %c0_200 = arith.constant 0 : index
    %673 = vector.load %arg9[%672, %c0_199, %c0_200] : memref<8x4x32xf32, #tpu.memory_space<vmem>>, vector<1x4x32xf32>
    %674 = vector.shape_cast %673 : vector<1x4x32xf32> to vector<4x32xf32>
    %675 = vector.shape_cast %667 : vector<4x32xf32> to vector<1x4x32xf32>
    tpu.vector_store %arg9[%672, %c0_199, %c0_200], %675 {strides = array<i32>} : memref<8x4x32xf32, #tpu.memory_space<vmem>>, vector<1x4x32xf32>,
    %c2_i32_201 = arith.constant 2 : i32
    %c7_i32_202 = arith.constant 7 : i32
    %676 = arith.subi %c7_i32_202, %c2_i32_201 : i32
    %c4_i32_203 = arith.constant 4 : i32
    %677 = arith.muli %c2_i32_201, %c4_i32_203 : i32
    %678 = arith.index_cast %677 : i32 to index
    %c0_204 = arith.constant 0 : index
    %679 = vector.load %arg13[%678, %c0_204] : memref<32x96xf32, #tpu.memory_space<vmem>>, vector<4x96xf32>
    %cst_205 = arith.constant dense<0.000000e+00> : vector<4x96xf32>
    %680 = tpu.matmul %636, %526, %cst_205 {dimension_numbers = #tpu.dot_dimension_numbers<[1], [0], [0], [1], [0, 0, 1, 1], [], []>} : vector<4x32xf32>, vector<32x96xf32>, vector<4x96xf32> -> vector<4x96xf32>
    %681 = arith.addf %680, %530 : vector<4x96xf32>
    %682 = vector.extract_strided_slice %679 {offsets = [0, 0], sizes = [4, 32], strides = [1, 1]} : vector<4x96xf32> to vector<4x32xf32>
    %683 = vector.extract_strided_slice %681 {offsets = [0, 0], sizes = [4, 32], strides = [1, 1]} : vector<4x96xf32> to vector<4x32xf32>
    %684 = arith.addf %682, %683 : vector<4x32xf32>
    %685 = arith.negf %684 : vector<4x32xf32>
    %686 = math.exp %685 : vector<4x32xf32>
    %cst_206 = arith.constant 1.000000e+00 : f32
    %687 = vector.broadcast %cst_206 : f32 to vector<4x32xf32>
    %688 = arith.addf %687, %686 : vector<4x32xf32>
    %689 = arith.divf %687, %688 : vector<4x32xf32>
    %690 = vector.extract_strided_slice %679 {offsets = [0, 32], sizes = [4, 32], strides = [1, 1]} : vector<4x96xf32> to vector<4x32xf32>
    %691 = vector.extract_strided_slice %681 {offsets = [0, 32], sizes = [4, 32], strides = [1, 1]} : vector<4x96xf32> to vector<4x32xf32>
    %692 = arith.addf %690, %691 : vector<4x32xf32>
    %693 = arith.negf %692 : vector<4x32xf32>
    %694 = math.exp %693 : vector<4x32xf32>
    %cst_207 = arith.constant 1.000000e+00 : f32
    %695 = vector.broadcast %cst_207 : f32 to vector<4x32xf32>
    %696 = arith.addf %695, %694 : vector<4x32xf32>
    %697 = arith.divf %695, %696 : vector<4x32xf32>
    %698 = vector.extract_strided_slice %679 {offsets = [0, 64], sizes = [4, 32], strides = [1, 1]} : vector<4x96xf32> to vector<4x32xf32>
    %699 = vector.extract_strided_slice %681 {offsets = [0, 64], sizes = [4, 32], strides = [1, 1]} : vector<4x96xf32> to vector<4x32xf32>
    %700 = arith.mulf %689, %699 : vector<4x32xf32>
    %701 = arith.addf %698, %700 : vector<4x32xf32>
    %702 = math.tanh %701 : vector<4x32xf32>
    %cst_208 = arith.constant 1.000000e+00 : f32
    %703 = vector.broadcast %cst_208 : f32 to vector<4x32xf32>
    %704 = arith.subf %703, %697 : vector<4x32xf32>
    %705 = arith.mulf %704, %702 : vector<4x32xf32>
    %706 = arith.mulf %697, %636 : vector<4x32xf32>
    %707 = arith.addf %705, %706 : vector<4x32xf32>
    %c4_i32_209 = arith.constant 4 : i32
    %708 = arith.muli %676, %c4_i32_209 : i32
    %709 = arith.index_cast %708 : i32 to index
    %c0_210 = arith.constant 0 : index
    %710 = vector.load %arg14[%709, %c0_210] : memref<32x96xf32, #tpu.memory_space<vmem>>, vector<4x96xf32>
    %cst_211 = arith.constant dense<0.000000e+00> : vector<4x96xf32>
    %711 = tpu.matmul %667, %527, %cst_211 {dimension_numbers = #tpu.dot_dimension_numbers<[1], [0], [0], [1], [0, 0, 1, 1], [], []>} : vector<4x32xf32>, vector<32x96xf32>, vector<4x96xf32> -> vector<4x96xf32>
    %712 = arith.addf %711, %533 : vector<4x96xf32>
    %713 = vector.extract_strided_slice %710 {offsets = [0, 0], sizes = [4, 32], strides = [1, 1]} : vector<4x96xf32> to vector<4x32xf32>
    %714 = vector.extract_strided_slice %712 {offsets = [0, 0], sizes = [4, 32], strides = [1, 1]} : vector<4x96xf32> to vector<4x32xf32>
    %715 = arith.addf %713, %714 : vector<4x32xf32>
    %716 = arith.negf %715 : vector<4x32xf32>
    %717 = math.exp %716 : vector<4x32xf32>
    %cst_212 = arith.constant 1.000000e+00 : f32
    %718 = vector.broadcast %cst_212 : f32 to vector<4x32xf32>
    %719 = arith.addf %718, %717 : vector<4x32xf32>
    %720 = arith.divf %718, %719 : vector<4x32xf32>
    %721 = vector.extract_strided_slice %710 {offsets = [0, 32], sizes = [4, 32], strides = [1, 1]} : vector<4x96xf32> to vector<4x32xf32>
    %722 = vector.extract_strided_slice %712 {offsets = [0, 32], sizes = [4, 32], strides = [1, 1]} : vector<4x96xf32> to vector<4x32xf32>
    %723 = arith.addf %721, %722 : vector<4x32xf32>
    %724 = arith.negf %723 : vector<4x32xf32>
    %725 = math.exp %724 : vector<4x32xf32>
    %cst_213 = arith.constant 1.000000e+00 : f32
    %726 = vector.broadcast %cst_213 : f32 to vector<4x32xf32>
    %727 = arith.addf %726, %725 : vector<4x32xf32>
    %728 = arith.divf %726, %727 : vector<4x32xf32>
    %729 = vector.extract_strided_slice %710 {offsets = [0, 64], sizes = [4, 32], strides = [1, 1]} : vector<4x96xf32> to vector<4x32xf32>
    %730 = vector.extract_strided_slice %712 {offsets = [0, 64], sizes = [4, 32], strides = [1, 1]} : vector<4x96xf32> to vector<4x32xf32>
    %731 = arith.mulf %720, %730 : vector<4x32xf32>
    %732 = arith.addf %729, %731 : vector<4x32xf32>
    %733 = math.tanh %732 : vector<4x32xf32>
    %cst_214 = arith.constant 1.000000e+00 : f32
    %734 = vector.broadcast %cst_214 : f32 to vector<4x32xf32>
    %735 = arith.subf %734, %728 : vector<4x32xf32>
    %736 = arith.mulf %735, %733 : vector<4x32xf32>
    %737 = arith.mulf %728, %667 : vector<4x32xf32>
    %738 = arith.addf %736, %737 : vector<4x32xf32>
    %739 = arith.index_cast %c2_i32_201 : i32 to index
    %c0_215 = arith.constant 0 : index
    %c0_216 = arith.constant 0 : index
    %740 = vector.load %arg8[%739, %c0_215, %c0_216] : memref<8x4x32xf32, #tpu.memory_space<vmem>>, vector<1x4x32xf32>
    %741 = vector.shape_cast %740 : vector<1x4x32xf32> to vector<4x32xf32>
    %742 = vector.shape_cast %707 : vector<4x32xf32> to vector<1x4x32xf32>
    tpu.vector_store %arg8[%739, %c0_215, %c0_216], %742 {strides = array<i32>} : memref<8x4x32xf32, #tpu.memory_space<vmem>>, vector<1x4x32xf32>,
    %743 = arith.index_cast %676 : i32 to index
    %c0_217 = arith.constant 0 : index
    %c0_218 = arith.constant 0 : index
    %744 = vector.load %arg9[%743, %c0_217, %c0_218] : memref<8x4x32xf32, #tpu.memory_space<vmem>>, vector<1x4x32xf32>
    %745 = vector.shape_cast %744 : vector<1x4x32xf32> to vector<4x32xf32>
    %746 = vector.shape_cast %738 : vector<4x32xf32> to vector<1x4x32xf32>
    tpu.vector_store %arg9[%743, %c0_217, %c0_218], %746 {strides = array<i32>} : memref<8x4x32xf32, #tpu.memory_space<vmem>>, vector<1x4x32xf32>,
    %c3_i32_219 = arith.constant 3 : i32
    %c7_i32_220 = arith.constant 7 : i32
    %747 = arith.subi %c7_i32_220, %c3_i32_219 : i32
    %c4_i32_221 = arith.constant 4 : i32
    %748 = arith.muli %c3_i32_219, %c4_i32_221 : i32
    %749 = arith.index_cast %748 : i32 to index
    %c0_222 = arith.constant 0 : index
    %750 = vector.load %arg13[%749, %c0_222] : memref<32x96xf32, #tpu.memory_space<vmem>>, vector<4x96xf32>
    %cst_223 = arith.constant dense<0.000000e+00> : vector<4x96xf32>
    %751 = tpu.matmul %707, %526, %cst_223 {dimension_numbers = #tpu.dot_dimension_numbers<[1], [0], [0], [1], [0, 0, 1, 1], [], []>} : vector<4x32xf32>, vector<32x96xf32>, vector<4x96xf32> -> vector<4x96xf32>
    %752 = arith.addf %751, %530 : vector<4x96xf32>
    %753 = vector.extract_strided_slice %750 {offsets = [0, 0], sizes = [4, 32], strides = [1, 1]} : vector<4x96xf32> to vector<4x32xf32>
    %754 = vector.extract_strided_slice %752 {offsets = [0, 0], sizes = [4, 32], strides = [1, 1]} : vector<4x96xf32> to vector<4x32xf32>
    %755 = arith.addf %753, %754 : vector<4x32xf32>
    %756 = arith.negf %755 : vector<4x32xf32>
    %757 = math.exp %756 : vector<4x32xf32>
    %cst_224 = arith.constant 1.000000e+00 : f32
    %758 = vector.broadcast %cst_224 : f32 to vector<4x32xf32>
    %759 = arith.addf %758, %757 : vector<4x32xf32>
    %760 = arith.divf %758, %759 : vector<4x32xf32>
    %761 = vector.extract_strided_slice %750 {offsets = [0, 32], sizes = [4, 32], strides = [1, 1]} : vector<4x96xf32> to vector<4x32xf32>
    %762 = vector.extract_strided_slice %752 {offsets = [0, 32], sizes = [4, 32], strides = [1, 1]} : vector<4x96xf32> to vector<4x32xf32>
    %763 = arith.addf %761, %762 : vector<4x32xf32>
    %764 = arith.negf %763 : vector<4x32xf32>
    %765 = math.exp %764 : vector<4x32xf32>
    %cst_225 = arith.constant 1.000000e+00 : f32
    %766 = vector.broadcast %cst_225 : f32 to vector<4x32xf32>
    %767 = arith.addf %766, %765 : vector<4x32xf32>
    %768 = arith.divf %766, %767 : vector<4x32xf32>
    %769 = vector.extract_strided_slice %750 {offsets = [0, 64], sizes = [4, 32], strides = [1, 1]} : vector<4x96xf32> to vector<4x32xf32>
    %770 = vector.extract_strided_slice %752 {offsets = [0, 64], sizes = [4, 32], strides = [1, 1]} : vector<4x96xf32> to vector<4x32xf32>
    %771 = arith.mulf %760, %770 : vector<4x32xf32>
    %772 = arith.addf %769, %771 : vector<4x32xf32>
    %773 = math.tanh %772 : vector<4x32xf32>
    %cst_226 = arith.constant 1.000000e+00 : f32
    %774 = vector.broadcast %cst_226 : f32 to vector<4x32xf32>
    %775 = arith.subf %774, %768 : vector<4x32xf32>
    %776 = arith.mulf %775, %773 : vector<4x32xf32>
    %777 = arith.mulf %768, %707 : vector<4x32xf32>
    %778 = arith.addf %776, %777 : vector<4x32xf32>
    %c4_i32_227 = arith.constant 4 : i32
    %779 = arith.muli %747, %c4_i32_227 : i32
    %780 = arith.index_cast %779 : i32 to index
    %c0_228 = arith.constant 0 : index
    %781 = vector.load %arg14[%780, %c0_228] : memref<32x96xf32, #tpu.memory_space<vmem>>, vector<4x96xf32>
    %cst_229 = arith.constant dense<0.000000e+00> : vector<4x96xf32>
    %782 = tpu.matmul %738, %527, %cst_229 {dimension_numbers = #tpu.dot_dimension_numbers<[1], [0], [0], [1], [0, 0, 1, 1], [], []>} : vector<4x32xf32>, vector<32x96xf32>, vector<4x96xf32> -> vector<4x96xf32>
    %783 = arith.addf %782, %533 : vector<4x96xf32>
    %784 = vector.extract_strided_slice %781 {offsets = [0, 0], sizes = [4, 32], strides = [1, 1]} : vector<4x96xf32> to vector<4x32xf32>
    %785 = vector.extract_strided_slice %783 {offsets = [0, 0], sizes = [4, 32], strides = [1, 1]} : vector<4x96xf32> to vector<4x32xf32>
    %786 = arith.addf %784, %785 : vector<4x32xf32>
    %787 = arith.negf %786 : vector<4x32xf32>
    %788 = math.exp %787 : vector<4x32xf32>
    %cst_230 = arith.constant 1.000000e+00 : f32
    %789 = vector.broadcast %cst_230 : f32 to vector<4x32xf32>
    %790 = arith.addf %789, %788 : vector<4x32xf32>
    %791 = arith.divf %789, %790 : vector<4x32xf32>
    %792 = vector.extract_strided_slice %781 {offsets = [0, 32], sizes = [4, 32], strides = [1, 1]} : vector<4x96xf32> to vector<4x32xf32>
    %793 = vector.extract_strided_slice %783 {offsets = [0, 32], sizes = [4, 32], strides = [1, 1]} : vector<4x96xf32> to vector<4x32xf32>
    %794 = arith.addf %792, %793 : vector<4x32xf32>
    %795 = arith.negf %794 : vector<4x32xf32>
    %796 = math.exp %795 : vector<4x32xf32>
    %cst_231 = arith.constant 1.000000e+00 : f32
    %797 = vector.broadcast %cst_231 : f32 to vector<4x32xf32>
    %798 = arith.addf %797, %796 : vector<4x32xf32>
    %799 = arith.divf %797, %798 : vector<4x32xf32>
    %800 = vector.extract_strided_slice %781 {offsets = [0, 64], sizes = [4, 32], strides = [1, 1]} : vector<4x96xf32> to vector<4x32xf32>
    %801 = vector.extract_strided_slice %783 {offsets = [0, 64], sizes = [4, 32], strides = [1, 1]} : vector<4x96xf32> to vector<4x32xf32>
    %802 = arith.mulf %791, %801 : vector<4x32xf32>
    %803 = arith.addf %800, %802 : vector<4x32xf32>
    %804 = math.tanh %803 : vector<4x32xf32>
    %cst_232 = arith.constant 1.000000e+00 : f32
    %805 = vector.broadcast %cst_232 : f32 to vector<4x32xf32>
    %806 = arith.subf %805, %799 : vector<4x32xf32>
    %807 = arith.mulf %806, %804 : vector<4x32xf32>
    %808 = arith.mulf %799, %738 : vector<4x32xf32>
    %809 = arith.addf %807, %808 : vector<4x32xf32>
    %810 = arith.index_cast %c3_i32_219 : i32 to index
    %c0_233 = arith.constant 0 : index
    %c0_234 = arith.constant 0 : index
    %811 = vector.load %arg8[%810, %c0_233, %c0_234] : memref<8x4x32xf32, #tpu.memory_space<vmem>>, vector<1x4x32xf32>
    %812 = vector.shape_cast %811 : vector<1x4x32xf32> to vector<4x32xf32>
    %813 = vector.shape_cast %778 : vector<4x32xf32> to vector<1x4x32xf32>
    tpu.vector_store %arg8[%810, %c0_233, %c0_234], %813 {strides = array<i32>} : memref<8x4x32xf32, #tpu.memory_space<vmem>>, vector<1x4x32xf32>,
    %814 = arith.index_cast %747 : i32 to index
    %c0_235 = arith.constant 0 : index
    %c0_236 = arith.constant 0 : index
    %815 = vector.load %arg9[%814, %c0_235, %c0_236] : memref<8x4x32xf32, #tpu.memory_space<vmem>>, vector<1x4x32xf32>
    %816 = vector.shape_cast %815 : vector<1x4x32xf32> to vector<4x32xf32>
    %817 = vector.shape_cast %809 : vector<4x32xf32> to vector<1x4x32xf32>
    tpu.vector_store %arg9[%814, %c0_235, %c0_236], %817 {strides = array<i32>} : memref<8x4x32xf32, #tpu.memory_space<vmem>>, vector<1x4x32xf32>,
    %c4_i32_237 = arith.constant 4 : i32
    %c7_i32_238 = arith.constant 7 : i32
    %818 = arith.subi %c7_i32_238, %c4_i32_237 : i32
    %c4_i32_239 = arith.constant 4 : i32
    %819 = arith.muli %c4_i32_237, %c4_i32_239 : i32
    %820 = arith.index_cast %819 : i32 to index
    %c0_240 = arith.constant 0 : index
    %821 = vector.load %arg13[%820, %c0_240] : memref<32x96xf32, #tpu.memory_space<vmem>>, vector<4x96xf32>
    %cst_241 = arith.constant dense<0.000000e+00> : vector<4x96xf32>
    %822 = tpu.matmul %778, %526, %cst_241 {dimension_numbers = #tpu.dot_dimension_numbers<[1], [0], [0], [1], [0, 0, 1, 1], [], []>} : vector<4x32xf32>, vector<32x96xf32>, vector<4x96xf32> -> vector<4x96xf32>
    %823 = arith.addf %822, %530 : vector<4x96xf32>
    %824 = vector.extract_strided_slice %821 {offsets = [0, 0], sizes = [4, 32], strides = [1, 1]} : vector<4x96xf32> to vector<4x32xf32>
    %825 = vector.extract_strided_slice %823 {offsets = [0, 0], sizes = [4, 32], strides = [1, 1]} : vector<4x96xf32> to vector<4x32xf32>
    %826 = arith.addf %824, %825 : vector<4x32xf32>
    %827 = arith.negf %826 : vector<4x32xf32>
    %828 = math.exp %827 : vector<4x32xf32>
    %cst_242 = arith.constant 1.000000e+00 : f32
    %829 = vector.broadcast %cst_242 : f32 to vector<4x32xf32>
    %830 = arith.addf %829, %828 : vector<4x32xf32>
    %831 = arith.divf %829, %830 : vector<4x32xf32>
    %832 = vector.extract_strided_slice %821 {offsets = [0, 32], sizes = [4, 32], strides = [1, 1]} : vector<4x96xf32> to vector<4x32xf32>
    %833 = vector.extract_strided_slice %823 {offsets = [0, 32], sizes = [4, 32], strides = [1, 1]} : vector<4x96xf32> to vector<4x32xf32>
    %834 = arith.addf %832, %833 : vector<4x32xf32>
    %835 = arith.negf %834 : vector<4x32xf32>
    %836 = math.exp %835 : vector<4x32xf32>
    %cst_243 = arith.constant 1.000000e+00 : f32
    %837 = vector.broadcast %cst_243 : f32 to vector<4x32xf32>
    %838 = arith.addf %837, %836 : vector<4x32xf32>
    %839 = arith.divf %837, %838 : vector<4x32xf32>
    %840 = vector.extract_strided_slice %821 {offsets = [0, 64], sizes = [4, 32], strides = [1, 1]} : vector<4x96xf32> to vector<4x32xf32>
    %841 = vector.extract_strided_slice %823 {offsets = [0, 64], sizes = [4, 32], strides = [1, 1]} : vector<4x96xf32> to vector<4x32xf32>
    %842 = arith.mulf %831, %841 : vector<4x32xf32>
    %843 = arith.addf %840, %842 : vector<4x32xf32>
    %844 = math.tanh %843 : vector<4x32xf32>
    %cst_244 = arith.constant 1.000000e+00 : f32
    %845 = vector.broadcast %cst_244 : f32 to vector<4x32xf32>
    %846 = arith.subf %845, %839 : vector<4x32xf32>
    %847 = arith.mulf %846, %844 : vector<4x32xf32>
    %848 = arith.mulf %839, %778 : vector<4x32xf32>
    %849 = arith.addf %847, %848 : vector<4x32xf32>
    %c4_i32_245 = arith.constant 4 : i32
    %850 = arith.muli %818, %c4_i32_245 : i32
    %851 = arith.index_cast %850 : i32 to index
    %c0_246 = arith.constant 0 : index
    %852 = vector.load %arg14[%851, %c0_246] : memref<32x96xf32, #tpu.memory_space<vmem>>, vector<4x96xf32>
    %cst_247 = arith.constant dense<0.000000e+00> : vector<4x96xf32>
    %853 = tpu.matmul %809, %527, %cst_247 {dimension_numbers = #tpu.dot_dimension_numbers<[1], [0], [0], [1], [0, 0, 1, 1], [], []>} : vector<4x32xf32>, vector<32x96xf32>, vector<4x96xf32> -> vector<4x96xf32>
    %854 = arith.addf %853, %533 : vector<4x96xf32>
    %855 = vector.extract_strided_slice %852 {offsets = [0, 0], sizes = [4, 32], strides = [1, 1]} : vector<4x96xf32> to vector<4x32xf32>
    %856 = vector.extract_strided_slice %854 {offsets = [0, 0], sizes = [4, 32], strides = [1, 1]} : vector<4x96xf32> to vector<4x32xf32>
    %857 = arith.addf %855, %856 : vector<4x32xf32>
    %858 = arith.negf %857 : vector<4x32xf32>
    %859 = math.exp %858 : vector<4x32xf32>
    %cst_248 = arith.constant 1.000000e+00 : f32
    %860 = vector.broadcast %cst_248 : f32 to vector<4x32xf32>
    %861 = arith.addf %860, %859 : vector<4x32xf32>
    %862 = arith.divf %860, %861 : vector<4x32xf32>
    %863 = vector.extract_strided_slice %852 {offsets = [0, 32], sizes = [4, 32], strides = [1, 1]} : vector<4x96xf32> to vector<4x32xf32>
    %864 = vector.extract_strided_slice %854 {offsets = [0, 32], sizes = [4, 32], strides = [1, 1]} : vector<4x96xf32> to vector<4x32xf32>
    %865 = arith.addf %863, %864 : vector<4x32xf32>
    %866 = arith.negf %865 : vector<4x32xf32>
    %867 = math.exp %866 : vector<4x32xf32>
    %cst_249 = arith.constant 1.000000e+00 : f32
    %868 = vector.broadcast %cst_249 : f32 to vector<4x32xf32>
    %869 = arith.addf %868, %867 : vector<4x32xf32>
    %870 = arith.divf %868, %869 : vector<4x32xf32>
    %871 = vector.extract_strided_slice %852 {offsets = [0, 64], sizes = [4, 32], strides = [1, 1]} : vector<4x96xf32> to vector<4x32xf32>
    %872 = vector.extract_strided_slice %854 {offsets = [0, 64], sizes = [4, 32], strides = [1, 1]} : vector<4x96xf32> to vector<4x32xf32>
    %873 = arith.mulf %862, %872 : vector<4x32xf32>
    %874 = arith.addf %871, %873 : vector<4x32xf32>
    %875 = math.tanh %874 : vector<4x32xf32>
    %cst_250 = arith.constant 1.000000e+00 : f32
    %876 = vector.broadcast %cst_250 : f32 to vector<4x32xf32>
    %877 = arith.subf %876, %870 : vector<4x32xf32>
    %878 = arith.mulf %877, %875 : vector<4x32xf32>
    %879 = arith.mulf %870, %809 : vector<4x32xf32>
    %880 = arith.addf %878, %879 : vector<4x32xf32>
    %881 = arith.index_cast %c4_i32_237 : i32 to index
    %c0_251 = arith.constant 0 : index
    %c0_252 = arith.constant 0 : index
    %882 = vector.load %arg8[%881, %c0_251, %c0_252] : memref<8x4x32xf32, #tpu.memory_space<vmem>>, vector<1x4x32xf32>
    %883 = vector.shape_cast %882 : vector<1x4x32xf32> to vector<4x32xf32>
    %884 = vector.shape_cast %849 : vector<4x32xf32> to vector<1x4x32xf32>
    tpu.vector_store %arg8[%881, %c0_251, %c0_252], %884 {strides = array<i32>} : memref<8x4x32xf32, #tpu.memory_space<vmem>>, vector<1x4x32xf32>,
    %885 = arith.index_cast %818 : i32 to index
    %c0_253 = arith.constant 0 : index
    %c0_254 = arith.constant 0 : index
    %886 = vector.load %arg9[%885, %c0_253, %c0_254] : memref<8x4x32xf32, #tpu.memory_space<vmem>>, vector<1x4x32xf32>
    %887 = vector.shape_cast %886 : vector<1x4x32xf32> to vector<4x32xf32>
    %888 = vector.shape_cast %880 : vector<4x32xf32> to vector<1x4x32xf32>
    tpu.vector_store %arg9[%885, %c0_253, %c0_254], %888 {strides = array<i32>} : memref<8x4x32xf32, #tpu.memory_space<vmem>>, vector<1x4x32xf32>,
    %c5_i32_255 = arith.constant 5 : i32
    %c7_i32_256 = arith.constant 7 : i32
    %889 = arith.subi %c7_i32_256, %c5_i32_255 : i32
    %c4_i32_257 = arith.constant 4 : i32
    %890 = arith.muli %c5_i32_255, %c4_i32_257 : i32
    %891 = arith.index_cast %890 : i32 to index
    %c0_258 = arith.constant 0 : index
    %892 = vector.load %arg13[%891, %c0_258] : memref<32x96xf32, #tpu.memory_space<vmem>>, vector<4x96xf32>
    %cst_259 = arith.constant dense<0.000000e+00> : vector<4x96xf32>
    %893 = tpu.matmul %849, %526, %cst_259 {dimension_numbers = #tpu.dot_dimension_numbers<[1], [0], [0], [1], [0, 0, 1, 1], [], []>} : vector<4x32xf32>, vector<32x96xf32>, vector<4x96xf32> -> vector<4x96xf32>
    %894 = arith.addf %893, %530 : vector<4x96xf32>
    %895 = vector.extract_strided_slice %892 {offsets = [0, 0], sizes = [4, 32], strides = [1, 1]} : vector<4x96xf32> to vector<4x32xf32>
    %896 = vector.extract_strided_slice %894 {offsets = [0, 0], sizes = [4, 32], strides = [1, 1]} : vector<4x96xf32> to vector<4x32xf32>
    %897 = arith.addf %895, %896 : vector<4x32xf32>
    %898 = arith.negf %897 : vector<4x32xf32>
    %899 = math.exp %898 : vector<4x32xf32>
    %cst_260 = arith.constant 1.000000e+00 : f32
    %900 = vector.broadcast %cst_260 : f32 to vector<4x32xf32>
    %901 = arith.addf %900, %899 : vector<4x32xf32>
    %902 = arith.divf %900, %901 : vector<4x32xf32>
    %903 = vector.extract_strided_slice %892 {offsets = [0, 32], sizes = [4, 32], strides = [1, 1]} : vector<4x96xf32> to vector<4x32xf32>
    %904 = vector.extract_strided_slice %894 {offsets = [0, 32], sizes = [4, 32], strides = [1, 1]} : vector<4x96xf32> to vector<4x32xf32>
    %905 = arith.addf %903, %904 : vector<4x32xf32>
    %906 = arith.negf %905 : vector<4x32xf32>
    %907 = math.exp %906 : vector<4x32xf32>
    %cst_261 = arith.constant 1.000000e+00 : f32
    %908 = vector.broadcast %cst_261 : f32 to vector<4x32xf32>
    %909 = arith.addf %908, %907 : vector<4x32xf32>
    %910 = arith.divf %908, %909 : vector<4x32xf32>
    %911 = vector.extract_strided_slice %892 {offsets = [0, 64], sizes = [4, 32], strides = [1, 1]} : vector<4x96xf32> to vector<4x32xf32>
    %912 = vector.extract_strided_slice %894 {offsets = [0, 64], sizes = [4, 32], strides = [1, 1]} : vector<4x96xf32> to vector<4x32xf32>
    %913 = arith.mulf %902, %912 : vector<4x32xf32>
    %914 = arith.addf %911, %913 : vector<4x32xf32>
    %915 = math.tanh %914 : vector<4x32xf32>
    %cst_262 = arith.constant 1.000000e+00 : f32
    %916 = vector.broadcast %cst_262 : f32 to vector<4x32xf32>
    %917 = arith.subf %916, %910 : vector<4x32xf32>
    %918 = arith.mulf %917, %915 : vector<4x32xf32>
    %919 = arith.mulf %910, %849 : vector<4x32xf32>
    %920 = arith.addf %918, %919 : vector<4x32xf32>
    %c4_i32_263 = arith.constant 4 : i32
    %921 = arith.muli %889, %c4_i32_263 : i32
    %922 = arith.index_cast %921 : i32 to index
    %c0_264 = arith.constant 0 : index
    %923 = vector.load %arg14[%922, %c0_264] : memref<32x96xf32, #tpu.memory_space<vmem>>, vector<4x96xf32>
    %cst_265 = arith.constant dense<0.000000e+00> : vector<4x96xf32>
    %924 = tpu.matmul %880, %527, %cst_265 {dimension_numbers = #tpu.dot_dimension_numbers<[1], [0], [0], [1], [0, 0, 1, 1], [], []>} : vector<4x32xf32>, vector<32x96xf32>, vector<4x96xf32> -> vector<4x96xf32>
    %925 = arith.addf %924, %533 : vector<4x96xf32>
    %926 = vector.extract_strided_slice %923 {offsets = [0, 0], sizes = [4, 32], strides = [1, 1]} : vector<4x96xf32> to vector<4x32xf32>
    %927 = vector.extract_strided_slice %925 {offsets = [0, 0], sizes = [4, 32], strides = [1, 1]} : vector<4x96xf32> to vector<4x32xf32>
    %928 = arith.addf %926, %927 : vector<4x32xf32>
    %929 = arith.negf %928 : vector<4x32xf32>
    %930 = math.exp %929 : vector<4x32xf32>
    %cst_266 = arith.constant 1.000000e+00 : f32
    %931 = vector.broadcast %cst_266 : f32 to vector<4x32xf32>
    %932 = arith.addf %931, %930 : vector<4x32xf32>
    %933 = arith.divf %931, %932 : vector<4x32xf32>
    %934 = vector.extract_strided_slice %923 {offsets = [0, 32], sizes = [4, 32], strides = [1, 1]} : vector<4x96xf32> to vector<4x32xf32>
    %935 = vector.extract_strided_slice %925 {offsets = [0, 32], sizes = [4, 32], strides = [1, 1]} : vector<4x96xf32> to vector<4x32xf32>
    %936 = arith.addf %934, %935 : vector<4x32xf32>
    %937 = arith.negf %936 : vector<4x32xf32>
    %938 = math.exp %937 : vector<4x32xf32>
    %cst_267 = arith.constant 1.000000e+00 : f32
    %939 = vector.broadcast %cst_267 : f32 to vector<4x32xf32>
    %940 = arith.addf %939, %938 : vector<4x32xf32>
    %941 = arith.divf %939, %940 : vector<4x32xf32>
    %942 = vector.extract_strided_slice %923 {offsets = [0, 64], sizes = [4, 32], strides = [1, 1]} : vector<4x96xf32> to vector<4x32xf32>
    %943 = vector.extract_strided_slice %925 {offsets = [0, 64], sizes = [4, 32], strides = [1, 1]} : vector<4x96xf32> to vector<4x32xf32>
    %944 = arith.mulf %933, %943 : vector<4x32xf32>
    %945 = arith.addf %942, %944 : vector<4x32xf32>
    %946 = math.tanh %945 : vector<4x32xf32>
    %cst_268 = arith.constant 1.000000e+00 : f32
    %947 = vector.broadcast %cst_268 : f32 to vector<4x32xf32>
    %948 = arith.subf %947, %941 : vector<4x32xf32>
    %949 = arith.mulf %948, %946 : vector<4x32xf32>
    %950 = arith.mulf %941, %880 : vector<4x32xf32>
    %951 = arith.addf %949, %950 : vector<4x32xf32>
    %952 = arith.index_cast %c5_i32_255 : i32 to index
    %c0_269 = arith.constant 0 : index
    %c0_270 = arith.constant 0 : index
    %953 = vector.load %arg8[%952, %c0_269, %c0_270] : memref<8x4x32xf32, #tpu.memory_space<vmem>>, vector<1x4x32xf32>
    %954 = vector.shape_cast %953 : vector<1x4x32xf32> to vector<4x32xf32>
    %955 = vector.shape_cast %920 : vector<4x32xf32> to vector<1x4x32xf32>
    tpu.vector_store %arg8[%952, %c0_269, %c0_270], %955 {strides = array<i32>} : memref<8x4x32xf32, #tpu.memory_space<vmem>>, vector<1x4x32xf32>,
    %956 = arith.index_cast %889 : i32 to index
    %c0_271 = arith.constant 0 : index
    %c0_272 = arith.constant 0 : index
    %957 = vector.load %arg9[%956, %c0_271, %c0_272] : memref<8x4x32xf32, #tpu.memory_space<vmem>>, vector<1x4x32xf32>
    %958 = vector.shape_cast %957 : vector<1x4x32xf32> to vector<4x32xf32>
    %959 = vector.shape_cast %951 : vector<4x32xf32> to vector<1x4x32xf32>
    tpu.vector_store %arg9[%956, %c0_271, %c0_272], %959 {strides = array<i32>} : memref<8x4x32xf32, #tpu.memory_space<vmem>>, vector<1x4x32xf32>,
    %c6_i32_273 = arith.constant 6 : i32
    %c7_i32_274 = arith.constant 7 : i32
    %960 = arith.subi %c7_i32_274, %c6_i32_273 : i32
    %c4_i32_275 = arith.constant 4 : i32
    %961 = arith.muli %c6_i32_273, %c4_i32_275 : i32
    %962 = arith.index_cast %961 : i32 to index
    %c0_276 = arith.constant 0 : index
    %963 = vector.load %arg13[%962, %c0_276] : memref<32x96xf32, #tpu.memory_space<vmem>>, vector<4x96xf32>
    %cst_277 = arith.constant dense<0.000000e+00> : vector<4x96xf32>
    %964 = tpu.matmul %920, %526, %cst_277 {dimension_numbers = #tpu.dot_dimension_numbers<[1], [0], [0], [1], [0, 0, 1, 1], [], []>} : vector<4x32xf32>, vector<32x96xf32>, vector<4x96xf32> -> vector<4x96xf32>
    %965 = arith.addf %964, %530 : vector<4x96xf32>
    %966 = vector.extract_strided_slice %963 {offsets = [0, 0], sizes = [4, 32], strides = [1, 1]} : vector<4x96xf32> to vector<4x32xf32>
    %967 = vector.extract_strided_slice %965 {offsets = [0, 0], sizes = [4, 32], strides = [1, 1]} : vector<4x96xf32> to vector<4x32xf32>
    %968 = arith.addf %966, %967 : vector<4x32xf32>
    %969 = arith.negf %968 : vector<4x32xf32>
    %970 = math.exp %969 : vector<4x32xf32>
    %cst_278 = arith.constant 1.000000e+00 : f32
    %971 = vector.broadcast %cst_278 : f32 to vector<4x32xf32>
    %972 = arith.addf %971, %970 : vector<4x32xf32>
    %973 = arith.divf %971, %972 : vector<4x32xf32>
    %974 = vector.extract_strided_slice %963 {offsets = [0, 32], sizes = [4, 32], strides = [1, 1]} : vector<4x96xf32> to vector<4x32xf32>
    %975 = vector.extract_strided_slice %965 {offsets = [0, 32], sizes = [4, 32], strides = [1, 1]} : vector<4x96xf32> to vector<4x32xf32>
    %976 = arith.addf %974, %975 : vector<4x32xf32>
    %977 = arith.negf %976 : vector<4x32xf32>
    %978 = math.exp %977 : vector<4x32xf32>
    %cst_279 = arith.constant 1.000000e+00 : f32
    %979 = vector.broadcast %cst_279 : f32 to vector<4x32xf32>
    %980 = arith.addf %979, %978 : vector<4x32xf32>
    %981 = arith.divf %979, %980 : vector<4x32xf32>
    %982 = vector.extract_strided_slice %963 {offsets = [0, 64], sizes = [4, 32], strides = [1, 1]} : vector<4x96xf32> to vector<4x32xf32>
    %983 = vector.extract_strided_slice %965 {offsets = [0, 64], sizes = [4, 32], strides = [1, 1]} : vector<4x96xf32> to vector<4x32xf32>
    %984 = arith.mulf %973, %983 : vector<4x32xf32>
    %985 = arith.addf %982, %984 : vector<4x32xf32>
    %986 = math.tanh %985 : vector<4x32xf32>
    %cst_280 = arith.constant 1.000000e+00 : f32
    %987 = vector.broadcast %cst_280 : f32 to vector<4x32xf32>
    %988 = arith.subf %987, %981 : vector<4x32xf32>
    %989 = arith.mulf %988, %986 : vector<4x32xf32>
    %990 = arith.mulf %981, %920 : vector<4x32xf32>
    %991 = arith.addf %989, %990 : vector<4x32xf32>
    %c4_i32_281 = arith.constant 4 : i32
    %992 = arith.muli %960, %c4_i32_281 : i32
    %993 = arith.index_cast %992 : i32 to index
    %c0_282 = arith.constant 0 : index
    %994 = vector.load %arg14[%993, %c0_282] : memref<32x96xf32, #tpu.memory_space<vmem>>, vector<4x96xf32>
    %cst_283 = arith.constant dense<0.000000e+00> : vector<4x96xf32>
    %995 = tpu.matmul %951, %527, %cst_283 {dimension_numbers = #tpu.dot_dimension_numbers<[1], [0], [0], [1], [0, 0, 1, 1], [], []>} : vector<4x32xf32>, vector<32x96xf32>, vector<4x96xf32> -> vector<4x96xf32>
    %996 = arith.addf %995, %533 : vector<4x96xf32>
    %997 = vector.extract_strided_slice %994 {offsets = [0, 0], sizes = [4, 32], strides = [1, 1]} : vector<4x96xf32> to vector<4x32xf32>
    %998 = vector.extract_strided_slice %996 {offsets = [0, 0], sizes = [4, 32], strides = [1, 1]} : vector<4x96xf32> to vector<4x32xf32>
    %999 = arith.addf %997, %998 : vector<4x32xf32>
    %1000 = arith.negf %999 : vector<4x32xf32>
    %1001 = math.exp %1000 : vector<4x32xf32>
    %cst_284 = arith.constant 1.000000e+00 : f32
    %1002 = vector.broadcast %cst_284 : f32 to vector<4x32xf32>
    %1003 = arith.addf %1002, %1001 : vector<4x32xf32>
    %1004 = arith.divf %1002, %1003 : vector<4x32xf32>
    %1005 = vector.extract_strided_slice %994 {offsets = [0, 32], sizes = [4, 32], strides = [1, 1]} : vector<4x96xf32> to vector<4x32xf32>
    %1006 = vector.extract_strided_slice %996 {offsets = [0, 32], sizes = [4, 32], strides = [1, 1]} : vector<4x96xf32> to vector<4x32xf32>
    %1007 = arith.addf %1005, %1006 : vector<4x32xf32>
    %1008 = arith.negf %1007 : vector<4x32xf32>
    %1009 = math.exp %1008 : vector<4x32xf32>
    %cst_285 = arith.constant 1.000000e+00 : f32
    %1010 = vector.broadcast %cst_285 : f32 to vector<4x32xf32>
    %1011 = arith.addf %1010, %1009 : vector<4x32xf32>
    %1012 = arith.divf %1010, %1011 : vector<4x32xf32>
    %1013 = vector.extract_strided_slice %994 {offsets = [0, 64], sizes = [4, 32], strides = [1, 1]} : vector<4x96xf32> to vector<4x32xf32>
    %1014 = vector.extract_strided_slice %996 {offsets = [0, 64], sizes = [4, 32], strides = [1, 1]} : vector<4x96xf32> to vector<4x32xf32>
    %1015 = arith.mulf %1004, %1014 : vector<4x32xf32>
    %1016 = arith.addf %1013, %1015 : vector<4x32xf32>
    %1017 = math.tanh %1016 : vector<4x32xf32>
    %cst_286 = arith.constant 1.000000e+00 : f32
    %1018 = vector.broadcast %cst_286 : f32 to vector<4x32xf32>
    %1019 = arith.subf %1018, %1012 : vector<4x32xf32>
    %1020 = arith.mulf %1019, %1017 : vector<4x32xf32>
    %1021 = arith.mulf %1012, %951 : vector<4x32xf32>
    %1022 = arith.addf %1020, %1021 : vector<4x32xf32>
    %1023 = arith.index_cast %c6_i32_273 : i32 to index
    %c0_287 = arith.constant 0 : index
    %c0_288 = arith.constant 0 : index
    %1024 = vector.load %arg8[%1023, %c0_287, %c0_288] : memref<8x4x32xf32, #tpu.memory_space<vmem>>, vector<1x4x32xf32>
    %1025 = vector.shape_cast %1024 : vector<1x4x32xf32> to vector<4x32xf32>
    %1026 = vector.shape_cast %991 : vector<4x32xf32> to vector<1x4x32xf32>
    tpu.vector_store %arg8[%1023, %c0_287, %c0_288], %1026 {strides = array<i32>} : memref<8x4x32xf32, #tpu.memory_space<vmem>>, vector<1x4x32xf32>,
    %1027 = arith.index_cast %960 : i32 to index
    %c0_289 = arith.constant 0 : index
    %c0_290 = arith.constant 0 : index
    %1028 = vector.load %arg9[%1027, %c0_289, %c0_290] : memref<8x4x32xf32, #tpu.memory_space<vmem>>, vector<1x4x32xf32>
    %1029 = vector.shape_cast %1028 : vector<1x4x32xf32> to vector<4x32xf32>
    %1030 = vector.shape_cast %1022 : vector<4x32xf32> to vector<1x4x32xf32>
    tpu.vector_store %arg9[%1027, %c0_289, %c0_290], %1030 {strides = array<i32>} : memref<8x4x32xf32, #tpu.memory_space<vmem>>, vector<1x4x32xf32>,
    %c7_i32_291 = arith.constant 7 : i32
    %c7_i32_292 = arith.constant 7 : i32
    %1031 = arith.subi %c7_i32_292, %c7_i32_291 : i32
    %c4_i32_293 = arith.constant 4 : i32
    %1032 = arith.muli %c7_i32_291, %c4_i32_293 : i32
    %1033 = arith.index_cast %1032 : i32 to index
    %c0_294 = arith.constant 0 : index
    %1034 = vector.load %arg13[%1033, %c0_294] : memref<32x96xf32, #tpu.memory_space<vmem>>, vector<4x96xf32>
    %cst_295 = arith.constant dense<0.000000e+00> : vector<4x96xf32>
    %1035 = tpu.matmul %991, %526, %cst_295 {dimension_numbers = #tpu.dot_dimension_numbers<[1], [0], [0], [1], [0, 0, 1, 1], [], []>} : vector<4x32xf32>, vector<32x96xf32>, vector<4x96xf32> -> vector<4x96xf32>
    %1036 = arith.addf %1035, %530 : vector<4x96xf32>
    %1037 = vector.extract_strided_slice %1034 {offsets = [0, 0], sizes = [4, 32], strides = [1, 1]} : vector<4x96xf32> to vector<4x32xf32>
    %1038 = vector.extract_strided_slice %1036 {offsets = [0, 0], sizes = [4, 32], strides = [1, 1]} : vector<4x96xf32> to vector<4x32xf32>
    %1039 = arith.addf %1037, %1038 : vector<4x32xf32>
    %1040 = arith.negf %1039 : vector<4x32xf32>
    %1041 = math.exp %1040 : vector<4x32xf32>
    %cst_296 = arith.constant 1.000000e+00 : f32
    %1042 = vector.broadcast %cst_296 : f32 to vector<4x32xf32>
    %1043 = arith.addf %1042, %1041 : vector<4x32xf32>
    %1044 = arith.divf %1042, %1043 : vector<4x32xf32>
    %1045 = vector.extract_strided_slice %1034 {offsets = [0, 32], sizes = [4, 32], strides = [1, 1]} : vector<4x96xf32> to vector<4x32xf32>
    %1046 = vector.extract_strided_slice %1036 {offsets = [0, 32], sizes = [4, 32], strides = [1, 1]} : vector<4x96xf32> to vector<4x32xf32>
    %1047 = arith.addf %1045, %1046 : vector<4x32xf32>
    %1048 = arith.negf %1047 : vector<4x32xf32>
    %1049 = math.exp %1048 : vector<4x32xf32>
    %cst_297 = arith.constant 1.000000e+00 : f32
    %1050 = vector.broadcast %cst_297 : f32 to vector<4x32xf32>
    %1051 = arith.addf %1050, %1049 : vector<4x32xf32>
    %1052 = arith.divf %1050, %1051 : vector<4x32xf32>
    %1053 = vector.extract_strided_slice %1034 {offsets = [0, 64], sizes = [4, 32], strides = [1, 1]} : vector<4x96xf32> to vector<4x32xf32>
    %1054 = vector.extract_strided_slice %1036 {offsets = [0, 64], sizes = [4, 32], strides = [1, 1]} : vector<4x96xf32> to vector<4x32xf32>
    %1055 = arith.mulf %1044, %1054 : vector<4x32xf32>
    %1056 = arith.addf %1053, %1055 : vector<4x32xf32>
    %1057 = math.tanh %1056 : vector<4x32xf32>
    %cst_298 = arith.constant 1.000000e+00 : f32
    %1058 = vector.broadcast %cst_298 : f32 to vector<4x32xf32>
    %1059 = arith.subf %1058, %1052 : vector<4x32xf32>
    %1060 = arith.mulf %1059, %1057 : vector<4x32xf32>
    %1061 = arith.mulf %1052, %991 : vector<4x32xf32>
    %1062 = arith.addf %1060, %1061 : vector<4x32xf32>
    %c4_i32_299 = arith.constant 4 : i32
    %1063 = arith.muli %1031, %c4_i32_299 : i32
    %1064 = arith.index_cast %1063 : i32 to index
    %c0_300 = arith.constant 0 : index
    %1065 = vector.load %arg14[%1064, %c0_300] : memref<32x96xf32, #tpu.memory_space<vmem>>, vector<4x96xf32>
    %cst_301 = arith.constant dense<0.000000e+00> : vector<4x96xf32>
    %1066 = tpu.matmul %1022, %527, %cst_301 {dimension_numbers = #tpu.dot_dimension_numbers<[1], [0], [0], [1], [0, 0, 1, 1], [], []>} : vector<4x32xf32>, vector<32x96xf32>, vector<4x96xf32> -> vector<4x96xf32>
    %1067 = arith.addf %1066, %533 : vector<4x96xf32>
    %1068 = vector.extract_strided_slice %1065 {offsets = [0, 0], sizes = [4, 32], strides = [1, 1]} : vector<4x96xf32> to vector<4x32xf32>
    %1069 = vector.extract_strided_slice %1067 {offsets = [0, 0], sizes = [4, 32], strides = [1, 1]} : vector<4x96xf32> to vector<4x32xf32>
    %1070 = arith.addf %1068, %1069 : vector<4x32xf32>
    %1071 = arith.negf %1070 : vector<4x32xf32>
    %1072 = math.exp %1071 : vector<4x32xf32>
    %cst_302 = arith.constant 1.000000e+00 : f32
    %1073 = vector.broadcast %cst_302 : f32 to vector<4x32xf32>
    %1074 = arith.addf %1073, %1072 : vector<4x32xf32>
    %1075 = arith.divf %1073, %1074 : vector<4x32xf32>
    %1076 = vector.extract_strided_slice %1065 {offsets = [0, 32], sizes = [4, 32], strides = [1, 1]} : vector<4x96xf32> to vector<4x32xf32>
    %1077 = vector.extract_strided_slice %1067 {offsets = [0, 32], sizes = [4, 32], strides = [1, 1]} : vector<4x96xf32> to vector<4x32xf32>
    %1078 = arith.addf %1076, %1077 : vector<4x32xf32>
    %1079 = arith.negf %1078 : vector<4x32xf32>
    %1080 = math.exp %1079 : vector<4x32xf32>
    %cst_303 = arith.constant 1.000000e+00 : f32
    %1081 = vector.broadcast %cst_303 : f32 to vector<4x32xf32>
    %1082 = arith.addf %1081, %1080 : vector<4x32xf32>
    %1083 = arith.divf %1081, %1082 : vector<4x32xf32>
    %1084 = vector.extract_strided_slice %1065 {offsets = [0, 64], sizes = [4, 32], strides = [1, 1]} : vector<4x96xf32> to vector<4x32xf32>
    %1085 = vector.extract_strided_slice %1067 {offsets = [0, 64], sizes = [4, 32], strides = [1, 1]} : vector<4x96xf32> to vector<4x32xf32>
    %1086 = arith.mulf %1075, %1085 : vector<4x32xf32>
    %1087 = arith.addf %1084, %1086 : vector<4x32xf32>
    %1088 = math.tanh %1087 : vector<4x32xf32>
    %cst_304 = arith.constant 1.000000e+00 : f32
    %1089 = vector.broadcast %cst_304 : f32 to vector<4x32xf32>
    %1090 = arith.subf %1089, %1083 : vector<4x32xf32>
    %1091 = arith.mulf %1090, %1088 : vector<4x32xf32>
    %1092 = arith.mulf %1083, %1022 : vector<4x32xf32>
    %1093 = arith.addf %1091, %1092 : vector<4x32xf32>
    %1094 = arith.index_cast %c7_i32_291 : i32 to index
    %c0_305 = arith.constant 0 : index
    %c0_306 = arith.constant 0 : index
    %1095 = vector.load %arg8[%1094, %c0_305, %c0_306] : memref<8x4x32xf32, #tpu.memory_space<vmem>>, vector<1x4x32xf32>
    %1096 = vector.shape_cast %1095 : vector<1x4x32xf32> to vector<4x32xf32>
    %1097 = vector.shape_cast %1062 : vector<4x32xf32> to vector<1x4x32xf32>
    tpu.vector_store %arg8[%1094, %c0_305, %c0_306], %1097 {strides = array<i32>} : memref<8x4x32xf32, #tpu.memory_space<vmem>>, vector<1x4x32xf32>,
    %1098 = arith.index_cast %1031 : i32 to index
    %c0_307 = arith.constant 0 : index
    %c0_308 = arith.constant 0 : index
    %1099 = vector.load %arg9[%1098, %c0_307, %c0_308] : memref<8x4x32xf32, #tpu.memory_space<vmem>>, vector<1x4x32xf32>
    %1100 = vector.shape_cast %1099 : vector<1x4x32xf32> to vector<4x32xf32>
    %1101 = vector.shape_cast %1093 : vector<4x32xf32> to vector<1x4x32xf32>
    tpu.vector_store %arg9[%1098, %c0_307, %c0_308], %1101 {strides = array<i32>} : memref<8x4x32xf32, #tpu.memory_space<vmem>>, vector<1x4x32xf32>,
    %c8_i32_309 = arith.constant 8 : i32
    %c0_310 = arith.constant 0 : index
    %c0_311 = arith.constant 0 : index
    %c0_312 = arith.constant 0 : index
    %1102 = vector.load %arg10[%c0_310, %c0_311, %c0_312] : memref<2x4x32xf32, #tpu.memory_space<vmem>>, vector<1x4x32xf32>
    %1103 = vector.shape_cast %1102 : vector<1x4x32xf32> to vector<4x32xf32>
    %1104 = vector.shape_cast %1062 : vector<4x32xf32> to vector<1x4x32xf32>
    tpu.vector_store %arg10[%c0_310, %c0_311, %c0_312], %1104 {strides = array<i32>} : memref<2x4x32xf32, #tpu.memory_space<vmem>>, vector<1x4x32xf32>,
    %c1 = arith.constant 1 : index
    %c0_313 = arith.constant 0 : index
    %c0_314 = arith.constant 0 : index
    %1105 = vector.load %arg10[%c1, %c0_313, %c0_314] : memref<2x4x32xf32, #tpu.memory_space<vmem>>, vector<1x4x32xf32>
    %1106 = vector.shape_cast %1105 : vector<1x4x32xf32> to vector<4x32xf32>
    %1107 = vector.shape_cast %1093 : vector<4x32xf32> to vector<1x4x32xf32>
    tpu.vector_store %arg10[%c1, %c0_313, %c0_314], %1107 {strides = array<i32>} : memref<2x4x32xf32, #tpu.memory_space<vmem>>, vector<1x4x32xf32>,
    %c0_315 = arith.constant 0 : index
    %c0_316 = arith.constant 0 : index
    %c0_317 = arith.constant 0 : index
    %1108 = vector.load %arg8[%c0_315, %c0_316, %c0_317] : memref<8x4x32xf32, #tpu.memory_space<vmem>>, vector<8x4x32xf32>
    %c0_318 = arith.constant 0 : index
    %c0_319 = arith.constant 0 : index
    %c0_320 = arith.constant 0 : index
    %1109 = vector.load %arg9[%c0_318, %c0_319, %c0_320] : memref<8x4x32xf32, #tpu.memory_space<vmem>>, vector<8x4x32xf32>
    %cst_321 = arith.constant dense<0.000000e+00> : vector<8x4xf32>
    %1110 = vector.multi_reduction <add>, %1108, %cst_321 [2] : vector<8x4x32xf32> to vector<8x4xf32>
    %1111 = vector.shape_cast %1110 : vector<8x4xf32> to vector<8x4x1xf32>
    %cst_322 = arith.constant dense<0.000000e+00> : vector<8x4xf32>
    %1112 = vector.multi_reduction <add>, %1109, %cst_322 [2] : vector<8x4x32xf32> to vector<8x4xf32>
    %1113 = vector.shape_cast %1112 : vector<8x4xf32> to vector<8x4x1xf32>
    %1114 = arith.addf %1111, %1113 : vector<8x4x1xf32>
    %cst_323 = arith.constant 1.562500e-02 : f32
    %1115 = vector.broadcast %cst_323 : f32 to vector<8x4x1xf32>
    %1116 = arith.mulf %1114, %1115 : vector<8x4x1xf32>
    %1117 = vector.broadcast %1116 : vector<8x4x1xf32> to vector<8x4x32xf32>
    %1118 = arith.subf %1108, %1117 : vector<8x4x32xf32>
    %1119 = arith.mulf %1118, %1118 : vector<8x4x32xf32>
    %cst_324 = arith.constant dense<0.000000e+00> : vector<8x4xf32>
    %1120 = vector.multi_reduction <add>, %1119, %cst_324 [2] : vector<8x4x32xf32> to vector<8x4xf32>
    %1121 = vector.shape_cast %1120 : vector<8x4xf32> to vector<8x4x1xf32>
    %1122 = vector.broadcast %1116 : vector<8x4x1xf32> to vector<8x4x32xf32>
    %1123 = arith.subf %1109, %1122 : vector<8x4x32xf32>
    %1124 = arith.mulf %1123, %1123 : vector<8x4x32xf32>
    %cst_325 = arith.constant dense<0.000000e+00> : vector<8x4xf32>
    %1125 = vector.multi_reduction <add>, %1124, %cst_325 [2] : vector<8x4x32xf32> to vector<8x4xf32>
    %1126 = vector.shape_cast %1125 : vector<8x4xf32> to vector<8x4x1xf32>
    %1127 = arith.addf %1121, %1126 : vector<8x4x1xf32>
    %cst_326 = arith.constant 1.562500e-02 : f32
    %1128 = vector.broadcast %cst_326 : f32 to vector<8x4x1xf32>
    %1129 = arith.mulf %1127, %1128 : vector<8x4x1xf32>
    %cst_327 = arith.constant 9.99999974E-6 : f32
    %1130 = vector.broadcast %cst_327 : f32 to vector<8x4x1xf32>
    %1131 = arith.addf %1129, %1130 : vector<8x4x1xf32>
    %1132 = math.rsqrt %1131 : vector<8x4x1xf32>
    %1133 = vector.broadcast %1116 : vector<8x4x1xf32> to vector<8x4x32xf32>
    %1134 = arith.subf %1108, %1133 : vector<8x4x32xf32>
    %1135 = vector.broadcast %1132 : vector<8x4x1xf32> to vector<8x4x32xf32>
    %1136 = arith.mulf %1134, %1135 : vector<8x4x32xf32>
    %1137 = vector.broadcast %11 : vector<1x1x32xf32> to vector<8x4x32xf32>
    %1138 = arith.mulf %1136, %1137 : vector<8x4x32xf32>
    %1139 = vector.broadcast %15 : vector<1x1x32xf32> to vector<8x4x32xf32>
    %1140 = arith.addf %1138, %1139 : vector<8x4x32xf32>
    %c0_328 = arith.constant 0 : index
    %c0_329 = arith.constant 0 : index
    %c0_330 = arith.constant 0 : index
    %1141 = vector.load %arg8[%c0_328, %c0_329, %c0_330] : memref<8x4x32xf32, #tpu.memory_space<vmem>>, vector<8x4x32xf32>
    tpu.vector_store %arg8[%c0_328, %c0_329, %c0_330], %1140 {strides = array<i32>} : memref<8x4x32xf32, #tpu.memory_space<vmem>>, vector<8x4x32xf32>,
    %1142 = vector.broadcast %1116 : vector<8x4x1xf32> to vector<8x4x32xf32>
    %1143 = arith.subf %1109, %1142 : vector<8x4x32xf32>
    %1144 = vector.broadcast %1132 : vector<8x4x1xf32> to vector<8x4x32xf32>
    %1145 = arith.mulf %1143, %1144 : vector<8x4x32xf32>
    %1146 = vector.broadcast %13 : vector<1x1x32xf32> to vector<8x4x32xf32>
    %1147 = arith.mulf %1145, %1146 : vector<8x4x32xf32>
    %1148 = vector.broadcast %17 : vector<1x1x32xf32> to vector<8x4x32xf32>
    %1149 = arith.addf %1147, %1148 : vector<8x4x32xf32>
    %c0_331 = arith.constant 0 : index
    %c0_332 = arith.constant 0 : index
    %c0_333 = arith.constant 0 : index
    %1150 = vector.load %arg9[%c0_331, %c0_332, %c0_333] : memref<8x4x32xf32, #tpu.memory_space<vmem>>, vector<8x4x32xf32>
    tpu.vector_store %arg9[%c0_331, %c0_332, %c0_333], %1149 {strides = array<i32>} : memref<8x4x32xf32, #tpu.memory_space<vmem>>, vector<8x4x32xf32>,
    return
  }
}

</mosaic_0001>

<llo_original>
// kernel: encoder_forward.1
$region0: #{encoder_forward.1}
  #allocation0 [shape = 'u32[]', space=smem, size = 0x4, offset = 0x4, fixed_abs, tag = 'smem constant byte address 0x4 - core index']
  #allocation1 [shape = 'u32[72,128]{1,0:T(1,128)}', space=vmem, size = 0x9000, scoped, tag = 'internal scratch']
  #allocation2 [shape = 'f32[32,32]{1,0:T(8,128)}', space=vmem, size = 0x4000, scoped, tag = 'scratch operand']
  #allocation3 [shape = 'f32[32,96]{1,0:T(8,128)}', space=vmem, size = 0x4000, scoped, tag = 'scratch operand']
  #allocation4 [shape = 'f32[32,96]{1,0:T(8,128)}', space=vmem, size = 0x4000, scoped, tag = 'scratch operand']
  #allocation5 [shape = 'f32[32,96]{1,0:T(8,128)}', space=vmem, size = 0x4000, scoped, tag = 'scratch operand']
  %s0 = inlined_call_operand.vmem [shape: f32[32,16], index: 0, kind: input, shape index: {}]
  %s1 = inlined_call_operand.hbm [shape: f32[16,32], index: 1, kind: input, shape index: {}]
  %s2 = inlined_call_operand.vmem [shape: f32[64,32], index: 2, kind: input, shape index: {}]
  %s3 = inlined_call_operand.vmem [shape: f32[64,96], index: 3, kind: input, shape index: {}]
  %s4 = inlined_call_operand.hbm [shape: f32[64,96], index: 4, kind: input, shape index: {}]
  %s5 = inlined_call_operand.hbm [shape: f32[64,96], index: 5, kind: input, shape index: {}]
  %s6 = inlined_call_operand.hbm [shape: f32[6,96], index: 6, kind: input, shape index: {}]
  %s7 = inlined_call_operand.hbm [shape: f32[8,32], index: 7, kind: input, shape index: {}]
  %s8 = inlined_call_operand.vmem [shape: f32[8,4,32], index: 8, kind: output, shape index: {0}]
  %s9 = inlined_call_operand.vmem [shape: f32[8,4,32], index: 9, kind: output, shape index: {1}]
  %s10 = inlined_call_operand.hbm [shape: f32[2,4,32], index: 10, kind: output, shape index: {2}]
  %11 = xla_tuple %s8, %s9, %s10
  %s12 = sld [smem:[#allocation0]]
  $region78: #{encoder_forward.1} parent=0
    _
  %s14 = ssub.s32 1, %s12
  %s15 = scalar_select 0, %s14, %s12
  $region1: #{encoder_forward.1} parent=0
    #allocation6 [shape = 'u8[8192]{0}', space=vmem, size = 0x2000, scoped, tag = 'input window, operand 1, single buffered']
    #allocation7 [shape = 's32[1]{0}', space=sflag, size = 0x4, scoped, tag = 'scoped memory for encoder_forward.1']
    #allocation8 [shape = 's32[1]{0}', space=sflag, size = 0x4, scoped, tag = 'scoped memory for encoder_forward.1']
    #allocation9 [shape = 'u8[32768]{0}', space=vmem, size = 0x8000, scoped, tag = 'input window, operand 4, single buffered']
    #allocation10 [shape = 's32[1]{0}', space=sflag, size = 0x4, scoped, tag = 'scoped memory for encoder_forward.1']
    #allocation11 [shape = 'u8[32768]{0}', space=vmem, size = 0x8000, scoped, tag = 'input window, operand 5, single buffered']
    #allocation12 [shape = 'u8[4096]{0}', space=vmem, size = 0x1000, scoped, tag = 'input window, operand 6, single buffered']
    #allocation13 [shape = 's32[1]{0}', space=sflag, size = 0x4, scoped, tag = 'scoped memory for encoder_forward.1']
    #allocation14 [shape = 'u8[4096]{0}', space=vmem, size = 0x1000, scoped, tag = 'input window, operand 7, single buffered']
    #allocation15 [shape = 'u8[4096]{0}', space=vmem, size = 0x1000, scoped, tag = 'output window, operand 2, single buffered']
    %16 = vsyncpa [#allocation7], 0
    %17 = vsyncpa [#allocation10], 0
    %18 = vsyncpa [#allocation13], 0
    %19 = vsyncpa [#allocation8], 0
    // Predicated region
    $region2: #{encoder_forward.1} parent=1 // pred_check
      _
    $region3: #{encoder_forward.1} parent=1 // pred_check_branch
      %21 = sbr.rel (0) target = $region5
    $region4: #{encoder_forward.1} parent=1 // pred_region
      _
    $region5: #{encoder_forward.1} parent=1 // pred_fallthru
      _
    // Predicated region
    $region6: #{encoder_forward.1} parent=1 // pred_check
      _
    $region7: #{encoder_forward.1} parent=1 // pred_check_branch
      %23 = sbr.rel (0) target = $region9
    $region8: #{encoder_forward.1} parent=1 // pred_region
      %25 = vsyncadd [#allocation7], 0
      %s26 = sshll.u32 %s1, 4
      %s27 = int_to_ptr.hbm [resolvable:$true] %s26
      %s28 = sshll.u32 [#allocation6], 4
      %s29 = int_to_ptr.vmem [resolvable:$true] %s28
      %34 = dma.hbm_to_vmem [thread:$0]  %s27, 256, %s29, [#allocation7], 128, 128, 8
    $region9: #{encoder_forward.1} parent=1 // pred_fallthru
      _
    // Predicated region
    $region10: #{encoder_forward.1} parent=1 // pred_check
      _
    $region11: #{encoder_forward.1} parent=1 // pred_check_branch
      %36 = sbr.rel (0) target = $region13
    $region12: #{encoder_forward.1} parent=1 // pred_region
      _
    $region13: #{encoder_forward.1} parent=1 // pred_fallthru
      _
    // Predicated region
    $region14: #{encoder_forward.1} parent=1 // pred_check
      _
    $region15: #{encoder_forward.1} parent=1 // pred_check_branch
      %38 = sbr.rel (0) target = $region17
    $region16: #{encoder_forward.1} parent=1 // pred_region
      _
    $region17: #{encoder_forward.1} parent=1 // pred_fallthru
      _
    // Predicated region
    $region18: #{encoder_forward.1} parent=1 // pred_check
      _
    $region19: #{encoder_forward.1} parent=1 // pred_check_branch
      %40 = sbr.rel (0) target = $region21
    $region20: #{encoder_forward.1} parent=1 // pred_region
      %42 = vsyncadd [#allocation10], 0
      %s43 = sshll.u32 %s4, 4
      %s44 = int_to_ptr.hbm [resolvable:$true] %s43
      %s45 = sshll.u32 [#allocation9], 4
      %s46 = int_to_ptr.vmem [resolvable:$true] %s45
      %51 = dma.hbm_to_vmem [thread:$0]  %s44, 1024, %s46, [#allocation10], 128, 128, 8
    $region21: #{encoder_forward.1} parent=1 // pred_fallthru
      _
    // Predicated region
    $region22: #{encoder_forward.1} parent=1 // pred_check
      _
    $region23: #{encoder_forward.1} parent=1 // pred_check_branch
      %53 = sbr.rel (0) target = $region25
    $region24: #{encoder_forward.1} parent=1 // pred_region
      %55 = vsyncadd [#allocation10], 0
      %s56 = sshll.u32 %s5, 4
      %s57 = int_to_ptr.hbm [resolvable:$true] %s56
      %s58 = sshll.u32 [#allocation11], 4
      %s59 = int_to_ptr.vmem [resolvable:$true] %s58
      %64 = dma.hbm_to_vmem [thread:$0]  %s57, 1024, %s59, [#allocation10], 128, 128, 8
    $region25: #{encoder_forward.1} parent=1 // pred_fallthru
      _
    // Predicated region
    $region26: #{encoder_forward.1} parent=1 // pred_check
      _
    $region27: #{encoder_forward.1} parent=1 // pred_check_branch
      %66 = sbr.rel (0) target = $region29
    $region28: #{encoder_forward.1} parent=1 // pred_region
      %68 = vsyncadd [#allocation13], 0
      %s70 = sshll.u32 %s6, 4
      %s71 = int_to_ptr.hbm [resolvable:$true] %s70
      %s72 = sshll.u32 [#allocation12], 4
      %s73 = int_to_ptr.vmem [resolvable:$true] %s72
      %75 = dma.hbm_to_vmem [thread:$0]  %s71, 128, %s73, [#allocation13]
    $region29: #{encoder_forward.1} parent=1 // pred_fallthru
      _
    // Predicated region
    $region30: #{encoder_forward.1} parent=1 // pred_check
      _
    $region31: #{encoder_forward.1} parent=1 // pred_check_branch
      %77 = sbr.rel (0) target = $region33
    $region32: #{encoder_forward.1} parent=1 // pred_region
      %79 = vsyncadd [#allocation13], 0
      %s81 = sshll.u32 %s7, 4
      %s82 = int_to_ptr.hbm [resolvable:$true] %s81
      %s83 = sshll.u32 [#allocation14], 4
      %s84 = int_to_ptr.vmem [resolvable:$true] %s83
      %86 = dma.hbm_to_vmem [thread:$0]  %s82, 128, %s84, [#allocation13]
    $region33: #{encoder_forward.1} parent=1 // pred_fallthru
      _
    // Predicated region
    $region34: #{encoder_forward.1} parent=1 // pred_check
      _
    $region35: #{encoder_forward.1} parent=1 // pred_check_branch
      %88 = sbr.rel (0) target = $region37
    $region36: #{encoder_forward.1} parent=1 // pred_region
      %90 = dma.done [#allocation7], 256
    $region37: #{encoder_forward.1} parent=1 // pred_fallthru
      _
    // Predicated region
    $region38: #{encoder_forward.1} parent=1 // pred_check
      _
    $region39: #{encoder_forward.1} parent=1 // pred_check_branch
      %92 = sbr.rel (0) target = $region41
    $region40: #{encoder_forward.1} parent=1 // pred_region
      %94 = dma.done [#allocation10], 1024
    $region41: #{encoder_forward.1} parent=1 // pred_fallthru
      _
    // Predicated region
    $region42: #{encoder_forward.1} parent=1 // pred_check
      _
    $region43: #{encoder_forward.1} parent=1 // pred_check_branch
      %96 = sbr.rel (0) target = $region45
    $region44: #{encoder_forward.1} parent=1 // pred_region
      %98 = dma.done [#allocation10], 1024
    $region45: #{encoder_forward.1} parent=1 // pred_fallthru
      _
    // Predicated region
    $region46: #{encoder_forward.1} parent=1 // pred_check
      _
    $region47: #{encoder_forward.1} parent=1 // pred_check_branch
      %100 = sbr.rel (0) target = $region49
    $region48: #{encoder_forward.1} parent=1 // pred_region
      %102 = dma.done [#allocation13], 128
    $region49: #{encoder_forward.1} parent=1 // pred_fallthru
      _
    // Predicated region
    $region50: #{encoder_forward.1} parent=1 // pred_check
      _
    $region51: #{encoder_forward.1} parent=1 // pred_check_branch
      %104 = sbr.rel (0) target = $region53
    $region52: #{encoder_forward.1} parent=1 // pred_region
      %106 = dma.done [#allocation13], 128
    $region53: #{encoder_forward.1} parent=1 // pred_fallthru
      _
    %v107 = vld [vmem:[#allocation14] sm:$0xff]
    %v108 = vld [vmem:[#allocation12] sm:$0x3f]
    %v109 = vperm.slane %v107, 1
    %v110 = vperm.slane %v107, 2
    %v111 = vld [vmem:[%s0] sm:$0xff]
    %v112 = vld [vmem:[%s0 + $0x8] sm:$0xff]
    %v113 = vld [vmem:[%s0 + $0x10] sm:$0xff]
    %v114 = vld [vmem:[%s0 + $0x18] sm:$0xff]
    %v115 = vld [vmem:[#allocation6] sm:$0xff]
    %v116 = vld [vmem:[#allocation6 + $0x8] sm:$0xff]
    %v117 = vperm.slane %v107, 0
    %vm118 = vcmask 130048
    %v120 = vsel %vm118, %v111, 0
    %v123 = vsel %vm118, %v112, 0
    %v126 = vsel %vm118, %v113, 0
    %v129 = vsel %vm118, %v114, 0
    %131 = vmatpush.msra.mxu0 0.0
    %132 = vmatpush.msra.mxu0 0.0
    %133 = vmatpush.msra.mxu0 0.0
    %134 = vmatpush.msra.mxu0 0.0
    %135 = vmatpush.msra.mxu0 0.0
    %136 = vmatpush.msra.mxu0 0.0
    %137 = vmatpush.msra.mxu0 0.0
    %138 = vmatpush.msra.mxu0 0.0
    %139 = vmatpush.msra.mxu0 0.0
    %140 = vmatpush.msra.mxu0 0.0
    %141 = vmatpush.msra.mxu0 0.0
    %142 = vmatpush.msra.mxu0 0.0
    %143 = vmatpush.msra.mxu0 0.0
    %144 = vmatpush.msra.mxu0 0.0
    %145 = vmatpush.msra.mxu0 %v116
    %146 = vmatpush.msra.mxu0 %v115
    %147 = vmatmul.f32.gmra.mxu0 %v120
    %v148 = vpop.f32.mrf.mxu0
    %v149 = vadd.f32 %v117, %v148
    %150 = vmatmul.f32.gmra.mxu0 %v123
    %v151 = vpop.f32.mrf.mxu0
    %v152 = vadd.f32 %v117, %v151
    %153 = vmatmul.f32.gmra.mxu0 %v126
    %v154 = vpop.f32.mrf.mxu0
    %v155 = vadd.f32 %v117, %v154
    %156 = vmatmul.f32.gmra.mxu0 %v129
    %v157 = vpop.f32.mrf.mxu0
    %v158 = vadd.f32 %v117, %v157
    %159 = vdwg.mxu0
    %v160 = vtanh.pop %v149
    %v161 = vtanh.pop %v152
    %v162 = vtanh.pop %v155
    %v163 = vtanh.pop %v158
    %v164 = vld [vmem:[%s3] sm:$0xff]
    %v165 = vld [vmem:[%s3 + $0x8] sm:$0xff]
    %v166 = vld [vmem:[%s3 + $0x10] sm:$0xff]
    %v167 = vld [vmem:[%s3 + $0x18] sm:$0xff]
    %v168 = vperm.slane %v108, 0
    %vm169 = vcmask 261120
    %v171 = vsel %vm169, %v160, 0
    %v174 = vsel %vm169, %v161, 0
    %v177 = vsel %vm169, %v162, 0
    %v180 = vsel %vm169, %v163, 0
    %182 = vmatpush.msra.mxu0 0.0
    %183 = vmatpush.msra.mxu0 0.0
    %184 = vmatpush.msra.mxu0 0.0
    %185 = vmatpush.msra.mxu0 0.0
    %186 = vmatpush.msra.mxu0 0.0
    %187 = vmatpush.msra.mxu0 0.0
    %188 = vmatpush.msra.mxu0 0.0
    %189 = vmatpush.msra.mxu0 0.0
    %190 = vmatpush.msra.mxu0 0.0
    %191 = vmatpush.msra.mxu0 0.0
    %192 = vmatpush.msra.mxu0 0.0
    %193 = vmatpush.msra.mxu0 0.0
    %194 = vmatpush.msra.mxu0 %v167
    %195 = vmatpush.msra.mxu0 %v166
    %196 = vmatpush.msra.mxu0 %v165
    %197 = vmatpush.msra.mxu0 %v164
    %198 = vmatmul.f32.gmra.mxu0 %v171
    %v199 = vpop.f32.mrf.mxu0
    %v200 = vadd.f32 %v168, %v199
    %201 = vmatmul.f32.gmra.mxu0 %v174
    %v202 = vpop.f32.mrf.mxu0
    %v203 = vadd.f32 %v168, %v202
    %204 = vmatmul.f32.gmra.mxu0 %v177
    %v205 = vpop.f32.mrf.mxu0
    %v206 = vadd.f32 %v168, %v205
    %207 = vmatmul.f32.gmra.mxu0 %v180
    %v208 = vpop.f32.mrf.mxu0
    %v209 = vadd.f32 %v168, %v208
    %210 = vdwg.mxu0
    %vm211 = vcmask 785408
    %212 = vst.msk [vmem:[#allocation3] sm:$0xff] %vm211, %v200
    %213 = vst.msk [vmem:[#allocation3 + $0x8] sm:$0xff] %vm211, %v203
    %214 = vst.msk [vmem:[#allocation3 + $0x10] sm:$0xff] %vm211, %v206
    %215 = vst.msk [vmem:[#allocation3 + $0x18] sm:$0xff] %vm211, %v209
    %v216 = vld [vmem:[%s2 + $0x20] sm:$0xff]
    %v217 = vld [vmem:[%s2 + $0x28] sm:$0xff]
    %v218 = vld [vmem:[%s2 + $0x30] sm:$0xff]
    %v219 = vld [vmem:[%s2 + $0x38] sm:$0xff]
    %v220 = vperm.slane %v107, 3
    %221 = vmatpush.msra.mxu0 0.0
    %222 = vmatpush.msra.mxu0 0.0
    %223 = vmatpush.msra.mxu0 0.0
    %224 = vmatpush.msra.mxu0 0.0
    %225 = vmatpush.msra.mxu0 0.0
    %226 = vmatpush.msra.mxu0 0.0
    %227 = vmatpush.msra.mxu0 0.0
    %228 = vmatpush.msra.mxu0 0.0
    %229 = vmatpush.msra.mxu0 0.0
    %230 = vmatpush.msra.mxu0 0.0
    %231 = vmatpush.msra.mxu0 0.0
    %232 = vmatpush.msra.mxu0 0.0
    %233 = vmatpush.msra.mxu0 %v219
    %234 = vmatpush.msra.mxu0 %v218
    %235 = vmatpush.msra.mxu0 %v217
    %236 = vmatpush.msra.mxu0 %v216
    %237 = vmatmul.f32.gmra.mxu0 %v171
    %v238 = vpop.f32.mrf.mxu0
    %v239 = vadd.f32 %v220, %v238
    %240 = vmatmul.f32.gmra.mxu0 %v174
    %v241 = vpop.f32.mrf.mxu0
    %v242 = vadd.f32 %v220, %v241
    %243 = vmatmul.f32.gmra.mxu0 %v177
    %v244 = vpop.f32.mrf.mxu0
    %v245 = vadd.f32 %v220, %v244
    %246 = vmatmul.f32.gmra.mxu0 %v180
    %v247 = vpop.f32.mrf.mxu0
    %v248 = vadd.f32 %v220, %v247
    %249 = vdwg.mxu0
    %250 = vst.msk [vmem:[#allocation2] sm:$0xff] %vm169, %v239
    %251 = vst.msk [vmem:[#allocation2 + $0x8] sm:$0xff] %vm169, %v242
    %252 = vst.msk [vmem:[#allocation2 + $0x10] sm:$0xff] %vm169, %v245
    %253 = vst.msk [vmem:[#allocation2 + $0x18] sm:$0xff] %vm169, %v248
    %v254 = vld [vmem:[%s3 + $0x20] sm:$0xff]
    %v255 = vld [vmem:[%s3 + $0x28] sm:$0xff]
    %v256 = vld [vmem:[%s3 + $0x30] sm:$0xff]
    %v257 = vld [vmem:[%s3 + $0x38] sm:$0xff]
    %v258 = vperm.slane %v108, 1
    %v259 = vld [vmem:[%s2] sm:$0xff]
    %v260 = vld [vmem:[%s2 + $0x8] sm:$0xff]
    %v261 = vld [vmem:[%s2 + $0x10] sm:$0xff]
    %v262 = vld [vmem:[%s2 + $0x18] sm:$0xff]
    %v263 = vld [vmem:[#allocation3] sm:$0xf]
    %v265 = vsel %vm169, 0.0, 0
    %267 = vmatpush.msra.mxu0 0.0
    %268 = vmatpush.msra.mxu0 0.0
    %269 = vmatpush.msra.mxu0 0.0
    %270 = vmatpush.msra.mxu0 0.0
    %271 = vmatpush.msra.mxu0 0.0
    %272 = vmatpush.msra.mxu0 0.0
    %273 = vmatpush.msra.mxu0 0.0
    %274 = vmatpush.msra.mxu0 0.0
    %275 = vmatpush.msra.mxu0 0.0
    %276 = vmatpush.msra.mxu0 0.0
    %277 = vmatpush.msra.mxu0 0.0
    %278 = vmatpush.msra.mxu0 0.0
    %279 = vmatpush.msra.mxu0 %v257
    %280 = vmatpush.msra.mxu0 %v256
    %281 = vmatpush.msra.mxu0 %v255
    %282 = vmatpush.msra.mxu0 %v254
    %283 = vmatmul.f32.gmra.mxu0 %v265
    %v284 = vpop.f32.mrf.mxu0
    %v285 = vadd.f32 %v258, %v284
    %286 = vdwg.mxu0
    %v287 = vadd.f32 %v263, %v285
    %v288 = vxor.u32 %v287, 2147483648
    %v289 = vmul.f32 %v288, 1.442695
    %v290 = vpow.pop %v289
    %v291 = vadd.f32 %v290, 1.0
    %v292 = vrcp.pop %v291
    %v293 = vmul.f32 %v291, %v292
    %v294 = vsub.f32 1.0, %v293
    %v295 = vmul.f32 %v292, %v294
    %v296 = vadd.f32 %v292, %v295
    %vm297 = vweird.f32 %v291
    %vm298 = vweird.f32 %v292
    %vm299 = vmor %vm297, %vm298
    %v300 = vsel %vm299, %v292, %v296
    %v301 = vand.u32 2147483647, %v291
    %vm302 = vcmp.eq.f32.partialorder %v301, 8.507059e+37
    %v303 = vand.u32 %v291, 2147483648
    %v304 = vor.u32 1.1754944e-38, %v303
    %v305 = vsel %vm302, %v304, %v300
    %v306 = vmul.f32 1.0, %v305
    %308 = vrot.lane.b32.xlu0 %v285, 64
    %v309 = vpop.permute.xlu0 %308
    %v311 = vmul.f32 %v306, %v309
    %313 = vrot.lane.b32.xlu0 %v311, 64
    %v314 = vpop.permute.xlu0 %313
    %v316 = vadd.f32 %v263, %v314
    %v317 = vtanh.pop %v316
    %v318 = vsub.f32 1.0, %v306
    %320 = vrot.lane.b32.xlu0 %v317, 96
    %v321 = vpop.permute.xlu0 %320
    %v323 = vmul.f32 %v318, %v321
    %v324 = vmul.f32 %v306, 0.0
    %v325 = vadd.f32 %v323, %v324
    %327 = vrot.lane.b32.xlu0 %v325, 96
    %v328 = vpop.permute.xlu0 %327
    %vm330 = vcmask 257024
    %v331 = vsel %vm330, %v328, 0.0
    %332 = vadd.xlane.f32.xlu0 %v331
    %v333 = vpop.xlane.xlu0 %332
    %v334 = vrcp.pop 32.0
    %v335 = vmul.f32 32.0, %v334
    %v336 = vsub.f32 1.0, %v335
    %v337 = vmul.f32 %v334, %v336
    %v338 = vadd.f32 %v334, %v337
    %vm339 = vweird.f32 %v334
    %v340 = vsel %vm339, %v334, %v338
    %v341 = vmul.f32 %v333, %v340
    %v342 = vsub.f32 %v325, %v341
    %v343 = vmul.f32 %v342, %v342
    %345 = vrot.lane.b32.xlu0 %v343, 96
    %v346 = vpop.permute.xlu0 %345
    %v348 = vsel %vm330, %v346, 0.0
    %349 = vadd.xlane.f32.xlu0 %v348
    %v350 = vpop.xlane.xlu0 %349
    %v351 = vmul.f32 %v350, %v340
    %v352 = vadd.f32 %v351, 1e-05
    %v353 = vrsqrt.pop %v352
    %v354 = vmul.f32 %v353, %v352
    %v355 = vmul.f32 %v354, %v353
    %v356 = vmul.f32 0.5, %v355
    %v357 = vsub.f32 1.5, %v356
    %v358 = vmul.f32 %v353, %v357
    %vm359 = vweird.f32 %v352
    %vm360 = vweird.f32 %v353
    %vm361 = vmor %vm359, %vm360
    %v362 = vsel %vm361, %v353, %v358
    %v363 = vmul.f32 %v342, %v362
    %365 = vrot.lane.b32.xlu0 %v109, 32
    %v366 = vpop.permute.xlu0 %365
    %v368 = vmul.f32 %v363, %v366
    %370 = vrot.lane.b32.xlu0 %v110, 32
    %v371 = vpop.permute.xlu0 %370
    %v373 = vadd.f32 %v368, %v371
    %v374 = vld [vmem:[#allocation2] sm:$0xf]
    %376 = vrot.lane.b32.xlu0 %v373, 96
    %v377 = vpop.permute.xlu0 %376
    %v378 = vsel %vm169, %v377, 0
    %380 = vmatpush.msra.mxu0 0.0
    %381 = vmatpush.msra.mxu0 0.0
    %382 = vmatpush.msra.mxu0 0.0
    %383 = vmatpush.msra.mxu0 0.0
    %384 = vmatpush.msra.mxu0 0.0
    %385 = vmatpush.msra.mxu0 0.0
    %386 = vmatpush.msra.mxu0 0.0
    %387 = vmatpush.msra.mxu0 0.0
    %388 = vmatpush.msra.mxu0 0.0
    %389 = vmatpush.msra.mxu0 0.0
    %390 = vmatpush.msra.mxu0 0.0
    %391 = vmatpush.msra.mxu0 0.0
    %392 = vmatpush.msra.mxu0 %v262
    %393 = vmatpush.msra.mxu0 %v261
    %394 = vmatpush.msra.mxu0 %v260
    %395 = vmatpush.msra.mxu0 %v259
    %396 = vmatmul.f32.gmra.mxu0 %v378
    %v397 = vpop.f32.mrf.mxu0
    %v398 = vadd.f32 0.0, %v397
    %399 = vdwg.mxu0
    %v400 = vadd.f32 %v374, %v398
    %401 = vst.msk [vmem:[#allocation2] sm:$0xf] %vm330, %v400
    %v402 = vld [vmem:[#allocation3 + $0x4] sm:$0xf]
    %v403 = vsel %vm169, %v328, 0
    %405 = vmatpush.msra.mxu0 0.0
    %406 = vmatpush.msra.mxu0 0.0
    %407 = vmatpush.msra.mxu0 0.0
    %408 = vmatpush.msra.mxu0 0.0
    %409 = vmatpush.msra.mxu0 0.0
    %410 = vmatpush.msra.mxu0 0.0
    %411 = vmatpush.msra.mxu0 0.0
    %412 = vmatpush.msra.mxu0 0.0
    %413 = vmatpush.msra.mxu0 0.0
    %414 = vmatpush.msra.mxu0 0.0
    %415 = vmatpush.msra.mxu0 0.0
    %416 = vmatpush.msra.mxu0 0.0
    %417 = vmatpush.msra.mxu0 %v257
    %418 = vmatpush.msra.mxu0 %v256
    %419 = vmatpush.msra.mxu0 %v255
    %420 = vmatpush.msra.mxu0 %v254
    %421 = vmatmul.f32.gmra.mxu0 %v403
    %v422 = vpop.f32.mrf.mxu0
    %v423 = vadd.f32 %v258, %v422
    %424 = vdwg.mxu0
    %v425 = vadd.f32 %v402, %v423
    %v426 = vxor.u32 %v425, 2147483648
    %v427 = vmul.f32 %v426, 1.442695
    %v428 = vpow.pop %v427
    %v429 = vadd.f32 %v428, 1.0
    %v430 = vrcp.pop %v429
    %v431 = vmul.f32 %v429, %v430
    %v432 = vsub.f32 1.0, %v431
    %v433 = vmul.f32 %v430, %v432
    %v434 = vadd.f32 %v430, %v433
    %vm435 = vweird.f32 %v429
    %vm436 = vweird.f32 %v430
    %vm437 = vmor %vm435, %vm436
    %v438 = vsel %vm437, %v430, %v434
    %v439 = vand.u32 2147483647, %v429
    %vm440 = vcmp.eq.f32.partialorder %v439, 8.507059e+37
    %v441 = vand.u32 %v429, 2147483648
    %v442 = vor.u32 1.1754944e-38, %v441
    %v443 = vsel %vm440, %v442, %v438
    %v444 = vmul.f32 1.0, %v443
    %446 = vrot.lane.b32.xlu0 %v423, 64
    %v447 = vpop.permute.xlu0 %446
    %v449 = vmul.f32 %v444, %v447
    %451 = vrot.lane.b32.xlu0 %v449, 64
    %v452 = vpop.permute.xlu0 %451
    %v454 = vadd.f32 %v402, %v452
    %v455 = vtanh.pop %v454
    %v456 = vsub.f32 1.0, %v444
    %458 = vrot.lane.b32.xlu0 %v455, 96
    %v459 = vpop.permute.xlu0 %458
    %v461 = vmul.f32 %v456, %v459
    %v462 = vmul.f32 %v444, %v325
    %v463 = vadd.f32 %v461, %v462
    %465 = vrot.lane.b32.xlu0 %v463, 96
    %v466 = vpop.permute.xlu0 %465
    %v468 = vsel %vm330, %v466, 0.0
    %469 = vadd.xlane.f32.xlu0 %v468
    %v470 = vpop.xlane.xlu0 %469
    %v471 = vmul.f32 %v470, %v340
    %v472 = vsub.f32 %v463, %v471
    %v473 = vmul.f32 %v472, %v472
    %475 = vrot.lane.b32.xlu0 %v473, 96
    %v476 = vpop.permute.xlu0 %475
    %v478 = vsel %vm330, %v476, 0.0
    %479 = vadd.xlane.f32.xlu0 %v478
    %v480 = vpop.xlane.xlu0 %479
    %v481 = vmul.f32 %v480, %v340
    %v482 = vadd.f32 %v481, 1e-05
    %v483 = vrsqrt.pop %v482
    %v484 = vmul.f32 %v483, %v482
    %v485 = vmul.f32 %v484, %v483
    %v486 = vmul.f32 0.5, %v485
    %v487 = vsub.f32 1.5, %v486
    %v488 = vmul.f32 %v483, %v487
    %vm489 = vweird.f32 %v482
    %vm490 = vweird.f32 %v483
    %vm491 = vmor %vm489, %vm490
    %v492 = vsel %vm491, %v483, %v488
    %v493 = vmul.f32 %v472, %v492
    %v494 = vmul.f32 %v493, %v366
    %v495 = vadd.f32 %v494, %v371
    %v496 = vld [vmem:[#allocation2 + $0x4] sm:$0xf]
    %498 = vrot.lane.b32.xlu0 %v495, 96
    %v499 = vpop.permute.xlu0 %498
    %v500 = vsel %vm169, %v499, 0
    %502 = vmatpush.msra.mxu0 0.0
    %503 = vmatpush.msra.mxu0 0.0
    %504 = vmatpush.msra.mxu0 0.0
    %505 = vmatpush.msra.mxu0 0.0
    %506 = vmatpush.msra.mxu0 0.0
    %507 = vmatpush.msra.mxu0 0.0
    %508 = vmatpush.msra.mxu0 0.0
    %509 = vmatpush.msra.mxu0 0.0
    %510 = vmatpush.msra.mxu0 0.0
    %511 = vmatpush.msra.mxu0 0.0
    %512 = vmatpush.msra.mxu0 0.0
    %513 = vmatpush.msra.mxu0 0.0
    %514 = vmatpush.msra.mxu0 %v262
    %515 = vmatpush.msra.mxu0 %v261
    %516 = vmatpush.msra.mxu0 %v260
    %517 = vmatpush.msra.mxu0 %v259
    %518 = vmatmul.f32.gmra.mxu0 %v500
    %v519 = vpop.f32.mrf.mxu0
    %v520 = vadd.f32 0.0, %v519
    %521 = vdwg.mxu0
    %v522 = vadd.f32 %v496, %v520
    %523 = vst.msk [vmem:[#allocation2 + $0x4] sm:$0xf] %vm330, %v522
    %v524 = vld [vmem:[#allocation3 + $0x8] sm:$0xf]
    %v525 = vsel %vm169, %v466, 0
    %527 = vmatpush.msra.mxu0 0.0
    %528 = vmatpush.msra.mxu0 0.0
    %529 = vmatpush.msra.mxu0 0.0
    %530 = vmatpush.msra.mxu0 0.0
    %531 = vmatpush.msra.mxu0 0.0
    %532 = vmatpush.msra.mxu0 0.0
    %533 = vmatpush.msra.mxu0 0.0
    %534 = vmatpush.msra.mxu0 0.0
    %535 = vmatpush.msra.mxu0 0.0
    %536 = vmatpush.msra.mxu0 0.0
    %537 = vmatpush.msra.mxu0 0.0
    %538 = vmatpush.msra.mxu0 0.0
    %539 = vmatpush.msra.mxu0 %v257
    %540 = vmatpush.msra.mxu0 %v256
    %541 = vmatpush.msra.mxu0 %v255
    %542 = vmatpush.msra.mxu0 %v254
    %543 = vmatmul.f32.gmra.mxu0 %v525
    %v544 = vpop.f32.mrf.mxu0
    %v545 = vadd.f32 %v258, %v544
    %546 = vdwg.mxu0
    %v547 = vadd.f32 %v524, %v545
    %v548 = vxor.u32 %v547, 2147483648
    %v549 = vmul.f32 %v548, 1.442695
    %v550 = vpow.pop %v549
    %v551 = vadd.f32 %v550, 1.0
    %v552 = vrcp.pop %v551
    %v553 = vmul.f32 %v551, %v552
    %v554 = vsub.f32 1.0, %v553
    %v555 = vmul.f32 %v552, %v554
    %v556 = vadd.f32 %v552, %v555
    %vm557 = vweird.f32 %v551
    %vm558 = vweird.f32 %v552
    %vm559 = vmor %vm557, %vm558
    %v560 = vsel %vm559, %v552, %v556
    %v561 = vand.u32 2147483647, %v551
    %vm562 = vcmp.eq.f32.partialorder %v561, 8.507059e+37
    %v563 = vand.u32 %v551, 2147483648
    %v564 = vor.u32 1.1754944e-38, %v563
    %v565 = vsel %vm562, %v564, %v560
    %v566 = vmul.f32 1.0, %v565
    %568 = vrot.lane.b32.xlu0 %v545, 64
    %v569 = vpop.permute.xlu0 %568
    %v571 = vmul.f32 %v566, %v569
    %573 = vrot.lane.b32.xlu0 %v571, 64
    %v574 = vpop.permute.xlu0 %573
    %v576 = vadd.f32 %v524, %v574
    %v577 = vtanh.pop %v576
    %v578 = vsub.f32 1.0, %v566
    %580 = vrot.lane.b32.xlu0 %v577, 96
    %v581 = vpop.permute.xlu0 %580
    %v583 = vmul.f32 %v578, %v581
    %v584 = vmul.f32 %v566, %v463
    %v585 = vadd.f32 %v583, %v584
    %587 = vrot.lane.b32.xlu0 %v585, 96
    %v588 = vpop.permute.xlu0 %587
    %v590 = vsel %vm330, %v588, 0.0
    %591 = vadd.xlane.f32.xlu0 %v590
    %v592 = vpop.xlane.xlu0 %591
    %v593 = vmul.f32 %v592, %v340
    %v594 = vsub.f32 %v585, %v593
    %v595 = vmul.f32 %v594, %v594
    %597 = vrot.lane.b32.xlu0 %v595, 96
    %v598 = vpop.permute.xlu0 %597
    %v600 = vsel %vm330, %v598, 0.0
    %601 = vadd.xlane.f32.xlu0 %v600
    %v602 = vpop.xlane.xlu0 %601
    %v603 = vmul.f32 %v602, %v340
    %v604 = vadd.f32 %v603, 1e-05
    %v605 = vrsqrt.pop %v604
    %v606 = vmul.f32 %v605, %v604
    %v607 = vmul.f32 %v606, %v605
    %v608 = vmul.f32 0.5, %v607
    %v609 = vsub.f32 1.5, %v608
    %v610 = vmul.f32 %v605, %v609
    %vm611 = vweird.f32 %v604
    %vm612 = vweird.f32 %v605
    %vm613 = vmor %vm611, %vm612
    %v614 = vsel %vm613, %v605, %v610
    %v615 = vmul.f32 %v594, %v614
    %v616 = vmul.f32 %v615, %v366
    %v617 = vadd.f32 %v616, %v371
    %v618 = vld [vmem:[#allocation2 + $0x8] sm:$0xf]
    %620 = vrot.lane.b32.xlu0 %v617, 96
    %v621 = vpop.permute.xlu0 %620
    %v622 = vsel %vm169, %v621, 0
    %624 = vmatpush.msra.mxu0 0.0
    %625 = vmatpush.msra.mxu0 0.0
    %626 = vmatpush.msra.mxu0 0.0
    %627 = vmatpush.msra.mxu0 0.0
    %628 = vmatpush.msra.mxu0 0.0
    %629 = vmatpush.msra.mxu0 0.0
    %630 = vmatpush.msra.mxu0 0.0
    %631 = vmatpush.msra.mxu0 0.0
    %632 = vmatpush.msra.mxu0 0.0
    %633 = vmatpush.msra.mxu0 0.0
    %634 = vmatpush.msra.mxu0 0.0
    %635 = vmatpush.msra.mxu0 0.0
    %636 = vmatpush.msra.mxu0 %v262
    %637 = vmatpush.msra.mxu0 %v261
    %638 = vmatpush.msra.mxu0 %v260
    %639 = vmatpush.msra.mxu0 %v259
    %640 = vmatmul.f32.gmra.mxu0 %v622
    %v641 = vpop.f32.mrf.mxu0
    %v642 = vadd.f32 0.0, %v641
    %643 = vdwg.mxu0
    %v644 = vadd.f32 %v618, %v642
    %645 = vst.msk [vmem:[#allocation2 + $0x8] sm:$0xf] %vm330, %v644
    %v646 = vld [vmem:[#allocation3 + $0xc] sm:$0xf]
    %v647 = vsel %vm169, %v588, 0
    %649 = vmatpush.msra.mxu0 0.0
    %650 = vmatpush.msra.mxu0 0.0
    %651 = vmatpush.msra.mxu0 0.0
    %652 = vmatpush.msra.mxu0 0.0
    %653 = vmatpush.msra.mxu0 0.0
    %654 = vmatpush.msra.mxu0 0.0
    %655 = vmatpush.msra.mxu0 0.0
    %656 = vmatpush.msra.mxu0 0.0
    %657 = vmatpush.msra.mxu0 0.0
    %658 = vmatpush.msra.mxu0 0.0
    %659 = vmatpush.msra.mxu0 0.0
    %660 = vmatpush.msra.mxu0 0.0
    %661 = vmatpush.msra.mxu0 %v257
    %662 = vmatpush.msra.mxu0 %v256
    %663 = vmatpush.msra.mxu0 %v255
    %664 = vmatpush.msra.mxu0 %v254
    %665 = vmatmul.f32.gmra.mxu0 %v647
    %v666 = vpop.f32.mrf.mxu0
    %v667 = vadd.f32 %v258, %v666
    %668 = vdwg.mxu0
    %v669 = vadd.f32 %v646, %v667
    %v670 = vxor.u32 %v669, 2147483648
    %v671 = vmul.f32 %v670, 1.442695
    %v672 = vpow.pop %v671
    %v673 = vadd.f32 %v672, 1.0
    %v674 = vrcp.pop %v673
    %v675 = vmul.f32 %v673, %v674
    %v676 = vsub.f32 1.0, %v675
    %v677 = vmul.f32 %v674, %v676
    %v678 = vadd.f32 %v674, %v677
    %vm679 = vweird.f32 %v673
    %vm680 = vweird.f32 %v674
    %vm681 = vmor %vm679, %vm680
    %v682 = vsel %vm681, %v674, %v678
    %v683 = vand.u32 2147483647, %v673
    %vm684 = vcmp.eq.f32.partialorder %v683, 8.507059e+37
    %v685 = vand.u32 %v673, 2147483648
    %v686 = vor.u32 1.1754944e-38, %v685
    %v687 = vsel %vm684, %v686, %v682
    %v688 = vmul.f32 1.0, %v687
    %690 = vrot.lane.b32.xlu0 %v667, 64
    %v691 = vpop.permute.xlu0 %690
    %v693 = vmul.f32 %v688, %v691
    %695 = vrot.lane.b32.xlu0 %v693, 64
    %v696 = vpop.permute.xlu0 %695
    %v698 = vadd.f32 %v646, %v696
    %v699 = vtanh.pop %v698
    %v700 = vsub.f32 1.0, %v688
    %702 = vrot.lane.b32.xlu0 %v699, 96
    %v703 = vpop.permute.xlu0 %702
    %v705 = vmul.f32 %v700, %v703
    %v706 = vmul.f32 %v688, %v585
    %v707 = vadd.f32 %v705, %v706
    %709 = vrot.lane.b32.xlu0 %v707, 96
    %v710 = vpop.permute.xlu0 %709
    %v712 = vsel %vm330, %v710, 0.0
    %713 = vadd.xlane.f32.xlu0 %v712
    %v714 = vpop.xlane.xlu0 %713
    %v715 = vmul.f32 %v714, %v340
    %v716 = vsub.f32 %v707, %v715
    %v717 = vmul.f32 %v716, %v716
    %719 = vrot.lane.b32.xlu0 %v717, 96
    %v720 = vpop.permute.xlu0 %719
    %v722 = vsel %vm330, %v720, 0.0
    %723 = vadd.xlane.f32.xlu0 %v722
    %v724 = vpop.xlane.xlu0 %723
    %v725 = vmul.f32 %v724, %v340
    %v726 = vadd.f32 %v725, 1e-05
    %v727 = vrsqrt.pop %v726
    %v728 = vmul.f32 %v727, %v726
    %v729 = vmul.f32 %v728, %v727
    %v730 = vmul.f32 0.5, %v729
    %v731 = vsub.f32 1.5, %v730
    %v732 = vmul.f32 %v727, %v731
    %vm733 = vweird.f32 %v726
    %vm734 = vweird.f32 %v727
    %vm735 = vmor %vm733, %vm734
    %v736 = vsel %vm735, %v727, %v732
    %v737 = vmul.f32 %v716, %v736
    %v738 = vmul.f32 %v737, %v366
    %v739 = vadd.f32 %v738, %v371
    %v740 = vld [vmem:[#allocation2 + $0xc] sm:$0xf]
    %742 = vrot.lane.b32.xlu0 %v739, 96
    %v743 = vpop.permute.xlu0 %742
    %v744 = vsel %vm169, %v743, 0
    %746 = vmatpush.msra.mxu0 0.0
    %747 = vmatpush.msra.mxu0 0.0
    %748 = vmatpush.msra.mxu0 0.0
    %749 = vmatpush.msra.mxu0 0.0
    %750 = vmatpush.msra.mxu0 0.0
    %751 = vmatpush.msra.mxu0 0.0
    %752 = vmatpush.msra.mxu0 0.0
    %753 = vmatpush.msra.mxu0 0.0
    %754 = vmatpush.msra.mxu0 0.0
    %755 = vmatpush.msra.mxu0 0.0
    %756 = vmatpush.msra.mxu0 0.0
    %757 = vmatpush.msra.mxu0 0.0
    %758 = vmatpush.msra.mxu0 %v262
    %759 = vmatpush.msra.mxu0 %v261
    %760 = vmatpush.msra.mxu0 %v260
    %761 = vmatpush.msra.mxu0 %v259
    %762 = vmatmul.f32.gmra.mxu0 %v744
    %v763 = vpop.f32.mrf.mxu0
    %v764 = vadd.f32 0.0, %v763
    %765 = vdwg.mxu0
    %v766 = vadd.f32 %v740, %v764
    %767 = vst.msk [vmem:[#allocation2 + $0xc] sm:$0xf] %vm330, %v766
    %v768 = vld [vmem:[#allocation3 + $0x10] sm:$0xf]
    %v769 = vsel %vm169, %v710, 0
    %771 = vmatpush.msra.mxu0 0.0
    %772 = vmatpush.msra.mxu0 0.0
    %773 = vmatpush.msra.mxu0 0.0
    %774 = vmatpush.msra.mxu0 0.0
    %775 = vmatpush.msra.mxu0 0.0
    %776 = vmatpush.msra.mxu0 0.0
    %777 = vmatpush.msra.mxu0 0.0
    %778 = vmatpush.msra.mxu0 0.0
    %779 = vmatpush.msra.mxu0 0.0
    %780 = vmatpush.msra.mxu0 0.0
    %781 = vmatpush.msra.mxu0 0.0
    %782 = vmatpush.msra.mxu0 0.0
    %783 = vmatpush.msra.mxu0 %v257
    %784 = vmatpush.msra.mxu0 %v256
    %785 = vmatpush.msra.mxu0 %v255
    %786 = vmatpush.msra.mxu0 %v254
    %787 = vmatmul.f32.gmra.mxu0 %v769
    %v788 = vpop.f32.mrf.mxu0
    %v789 = vadd.f32 %v258, %v788
    %790 = vdwg.mxu0
    %v791 = vadd.f32 %v768, %v789
    %v792 = vxor.u32 %v791, 2147483648
    %v793 = vmul.f32 %v792, 1.442695
    %v794 = vpow.pop %v793
    %v795 = vadd.f32 %v794, 1.0
    %v796 = vrcp.pop %v795
    %v797 = vmul.f32 %v795, %v796
    %v798 = vsub.f32 1.0, %v797
    %v799 = vmul.f32 %v796, %v798
    %v800 = vadd.f32 %v796, %v799
    %vm801 = vweird.f32 %v795
    %vm802 = vweird.f32 %v796
    %vm803 = vmor %vm801, %vm802
    %v804 = vsel %vm803, %v796, %v800
    %v805 = vand.u32 2147483647, %v795
    %vm806 = vcmp.eq.f32.partialorder %v805, 8.507059e+37
    %v807 = vand.u32 %v795, 2147483648
    %v808 = vor.u32 1.1754944e-38, %v807
    %v809 = vsel %vm806, %v808, %v804
    %v810 = vmul.f32 1.0, %v809
    %812 = vrot.lane.b32.xlu0 %v789, 64
    %v813 = vpop.permute.xlu0 %812
    %v815 = vmul.f32 %v810, %v813
    %817 = vrot.lane.b32.xlu0 %v815, 64
    %v818 = vpop.permute.xlu0 %817
    %v820 = vadd.f32 %v768, %v818
    %v821 = vtanh.pop %v820
    %v822 = vsub.f32 1.0, %v810
    %824 = vrot.lane.b32.xlu0 %v821, 96
    %v825 = vpop.permute.xlu0 %824
    %v827 = vmul.f32 %v822, %v825
    %v828 = vmul.f32 %v810, %v707
    %v829 = vadd.f32 %v827, %v828
    %831 = vrot.lane.b32.xlu0 %v829, 96
    %v832 = vpop.permute.xlu0 %831
    %v834 = vsel %vm330, %v832, 0.0
    %835 = vadd.xlane.f32.xlu0 %v834
    %v836 = vpop.xlane.xlu0 %835
    %v837 = vmul.f32 %v836, %v340
    %v838 = vsub.f32 %v829, %v837
    %v839 = vmul.f32 %v838, %v838
    %841 = vrot.lane.b32.xlu0 %v839, 96
    %v842 = vpop.permute.xlu0 %841
    %v844 = vsel %vm330, %v842, 0.0
    %845 = vadd.xlane.f32.xlu0 %v844
    %v846 = vpop.xlane.xlu0 %845
    %v847 = vmul.f32 %v846, %v340
    %v848 = vadd.f32 %v847, 1e-05
    %v849 = vrsqrt.pop %v848
    %v850 = vmul.f32 %v849, %v848
    %v851 = vmul.f32 %v850, %v849
    %v852 = vmul.f32 0.5, %v851
    %v853 = vsub.f32 1.5, %v852
    %v854 = vmul.f32 %v849, %v853
    %vm855 = vweird.f32 %v848
    %vm856 = vweird.f32 %v849
    %vm857 = vmor %vm855, %vm856
    %v858 = vsel %vm857, %v849, %v854
    %v859 = vmul.f32 %v838, %v858
    %v860 = vmul.f32 %v859, %v366
    %v861 = vadd.f32 %v860, %v371
    %v862 = vld [vmem:[#allocation2 + $0x10] sm:$0xf]
    %864 = vrot.lane.b32.xlu0 %v861, 96
    %v865 = vpop.permute.xlu0 %864
    %v866 = vsel %vm169, %v865, 0
    %868 = vmatpush.msra.mxu0 0.0
    %869 = vmatpush.msra.mxu0 0.0
    %870 = vmatpush.msra.mxu0 0.0
    %871 = vmatpush.msra.mxu0 0.0
    %872 = vmatpush.msra.mxu0 0.0
    %873 = vmatpush.msra.mxu0 0.0
    %874 = vmatpush.msra.mxu0 0.0
    %875 = vmatpush.msra.mxu0 0.0
    %876 = vmatpush.msra.mxu0 0.0
    %877 = vmatpush.msra.mxu0 0.0
    %878 = vmatpush.msra.mxu0 0.0
    %879 = vmatpush.msra.mxu0 0.0
    %880 = vmatpush.msra.mxu0 %v262
    %881 = vmatpush.msra.mxu0 %v261
    %882 = vmatpush.msra.mxu0 %v260
    %883 = vmatpush.msra.mxu0 %v259
    %884 = vmatmul.f32.gmra.mxu0 %v866
    %v885 = vpop.f32.mrf.mxu0
    %v886 = vadd.f32 0.0, %v885
    %887 = vdwg.mxu0
    %v888 = vadd.f32 %v862, %v886
    %889 = vst.msk [vmem:[#allocation2 + $0x10] sm:$0xf] %vm330, %v888
    %v890 = vld [vmem:[#allocation3 + $0x14] sm:$0xf]
    %v891 = vsel %vm169, %v832, 0
    %893 = vmatpush.msra.mxu0 0.0
    %894 = vmatpush.msra.mxu0 0.0
    %895 = vmatpush.msra.mxu0 0.0
    %896 = vmatpush.msra.mxu0 0.0
    %897 = vmatpush.msra.mxu0 0.0
    %898 = vmatpush.msra.mxu0 0.0
    %899 = vmatpush.msra.mxu0 0.0
    %900 = vmatpush.msra.mxu0 0.0
    %901 = vmatpush.msra.mxu0 0.0
    %902 = vmatpush.msra.mxu0 0.0
    %903 = vmatpush.msra.mxu0 0.0
    %904 = vmatpush.msra.mxu0 0.0
    %905 = vmatpush.msra.mxu0 %v257
    %906 = vmatpush.msra.mxu0 %v256
    %907 = vmatpush.msra.mxu0 %v255
    %908 = vmatpush.msra.mxu0 %v254
    %909 = vmatmul.f32.gmra.mxu0 %v891
    %v910 = vpop.f32.mrf.mxu0
    %v911 = vadd.f32 %v258, %v910
    %912 = vdwg.mxu0
    %v913 = vadd.f32 %v890, %v911
    %v914 = vxor.u32 %v913, 2147483648
    %v915 = vmul.f32 %v914, 1.442695
    %v916 = vpow.pop %v915
    %v917 = vadd.f32 %v916, 1.0
    %v918 = vrcp.pop %v917
    %v919 = vmul.f32 %v917, %v918
    %v920 = vsub.f32 1.0, %v919
    %v921 = vmul.f32 %v918, %v920
    %v922 = vadd.f32 %v918, %v921
    %vm923 = vweird.f32 %v917
    %vm924 = vweird.f32 %v918
    %vm925 = vmor %vm923, %vm924
    %v926 = vsel %vm925, %v918, %v922
    %v927 = vand.u32 2147483647, %v917
    %vm928 = vcmp.eq.f32.partialorder %v927, 8.507059e+37
    %v929 = vand.u32 %v917, 2147483648
    %v930 = vor.u32 1.1754944e-38, %v929
    %v931 = vsel %vm928, %v930, %v926
    %v932 = vmul.f32 1.0, %v931
    %934 = vrot.lane.b32.xlu0 %v911, 64
    %v935 = vpop.permute.xlu0 %934
    %v937 = vmul.f32 %v932, %v935
    %939 = vrot.lane.b32.xlu0 %v937, 64
    %v940 = vpop.permute.xlu0 %939
    %v942 = vadd.f32 %v890, %v940
    %v943 = vtanh.pop %v942
    %v944 = vsub.f32 1.0, %v932
    %946 = vrot.lane.b32.xlu0 %v943, 96
    %v947 = vpop.permute.xlu0 %946
    %v949 = vmul.f32 %v944, %v947
    %v950 = vmul.f32 %v932, %v829
    %v951 = vadd.f32 %v949, %v950
    %953 = vrot.lane.b32.xlu0 %v951, 96
    %v954 = vpop.permute.xlu0 %953
    %v956 = vsel %vm330, %v954, 0.0
    %957 = vadd.xlane.f32.xlu0 %v956
    %v958 = vpop.xlane.xlu0 %957
    %v959 = vmul.f32 %v958, %v340
    %v960 = vsub.f32 %v951, %v959
    %v961 = vmul.f32 %v960, %v960
    %963 = vrot.lane.b32.xlu0 %v961, 96
    %v964 = vpop.permute.xlu0 %963
    %v966 = vsel %vm330, %v964, 0.0
    %967 = vadd.xlane.f32.xlu0 %v966
    %v968 = vpop.xlane.xlu0 %967
    %v969 = vmul.f32 %v968, %v340
    %v970 = vadd.f32 %v969, 1e-05
    %v971 = vrsqrt.pop %v970
    %v972 = vmul.f32 %v971, %v970
    %v973 = vmul.f32 %v972, %v971
    %v974 = vmul.f32 0.5, %v973
    %v975 = vsub.f32 1.5, %v974
    %v976 = vmul.f32 %v971, %v975
    %vm977 = vweird.f32 %v970
    %vm978 = vweird.f32 %v971
    %vm979 = vmor %vm977, %vm978
    %v980 = vsel %vm979, %v971, %v976
    %v981 = vmul.f32 %v960, %v980
    %v982 = vmul.f32 %v981, %v366
    %v983 = vadd.f32 %v982, %v371
    %v984 = vld [vmem:[#allocation2 + $0x14] sm:$0xf]
    %986 = vrot.lane.b32.xlu0 %v983, 96
    %v987 = vpop.permute.xlu0 %986
    %v988 = vsel %vm169, %v987, 0
    %990 = vmatpush.msra.mxu0 0.0
    %991 = vmatpush.msra.mxu0 0.0
    %992 = vmatpush.msra.mxu0 0.0
    %993 = vmatpush.msra.mxu0 0.0
    %994 = vmatpush.msra.mxu0 0.0
    %995 = vmatpush.msra.mxu0 0.0
    %996 = vmatpush.msra.mxu0 0.0
    %997 = vmatpush.msra.mxu0 0.0
    %998 = vmatpush.msra.mxu0 0.0
    %999 = vmatpush.msra.mxu0 0.0
    %1000 = vmatpush.msra.mxu0 0.0
    %1001 = vmatpush.msra.mxu0 0.0
    %1002 = vmatpush.msra.mxu0 %v262
    %1003 = vmatpush.msra.mxu0 %v261
    %1004 = vmatpush.msra.mxu0 %v260
    %1005 = vmatpush.msra.mxu0 %v259
    %1006 = vmatmul.f32.gmra.mxu0 %v988
    %v1007 = vpop.f32.mrf.mxu0
    %v1008 = vadd.f32 0.0, %v1007
    %1009 = vdwg.mxu0
    %v1010 = vadd.f32 %v984, %v1008
    %1011 = vst.msk [vmem:[#allocation2 + $0x14] sm:$0xf] %vm330, %v1010
    %v1012 = vld [vmem:[#allocation3 + $0x18] sm:$0xf]
    %v1013 = vsel %vm169, %v954, 0
    %1015 = vmatpush.msra.mxu0 0.0
    %1016 = vmatpush.msra.mxu0 0.0
    %1017 = vmatpush.msra.mxu0 0.0
    %1018 = vmatpush.msra.mxu0 0.0
    %1019 = vmatpush.msra.mxu0 0.0
    %1020 = vmatpush.msra.mxu0 0.0
    %1021 = vmatpush.msra.mxu0 0.0
    %1022 = vmatpush.msra.mxu0 0.0
    %1023 = vmatpush.msra.mxu0 0.0
    %1024 = vmatpush.msra.mxu0 0.0
    %1025 = vmatpush.msra.mxu0 0.0
    %1026 = vmatpush.msra.mxu0 0.0
    %1027 = vmatpush.msra.mxu0 %v257
    %1028 = vmatpush.msra.mxu0 %v256
    %1029 = vmatpush.msra.mxu0 %v255
    %1030 = vmatpush.msra.mxu0 %v254
    %1031 = vmatmul.f32.gmra.mxu0 %v1013
    %v1032 = vpop.f32.mrf.mxu0
    %v1033 = vadd.f32 %v258, %v1032
    %1034 = vdwg.mxu0
    %v1035 = vadd.f32 %v1012, %v1033
    %v1036 = vxor.u32 %v1035, 2147483648
    %v1037 = vmul.f32 %v1036, 1.442695
    %v1038 = vpow.pop %v1037
    %v1039 = vadd.f32 %v1038, 1.0
    %v1040 = vrcp.pop %v1039
    %v1041 = vmul.f32 %v1039, %v1040
    %v1042 = vsub.f32 1.0, %v1041
    %v1043 = vmul.f32 %v1040, %v1042
    %v1044 = vadd.f32 %v1040, %v1043
    %vm1045 = vweird.f32 %v1039
    %vm1046 = vweird.f32 %v1040
    %vm1047 = vmor %vm1045, %vm1046
    %v1048 = vsel %vm1047, %v1040, %v1044
    %v1049 = vand.u32 2147483647, %v1039
    %vm1050 = vcmp.eq.f32.partialorder %v1049, 8.507059e+37
    %v1051 = vand.u32 %v1039, 2147483648
    %v1052 = vor.u32 1.1754944e-38, %v1051
    %v1053 = vsel %vm1050, %v1052, %v1048
    %v1054 = vmul.f32 1.0, %v1053
    %1056 = vrot.lane.b32.xlu0 %v1033, 64
    %v1057 = vpop.permute.xlu0 %1056
    %v1059 = vmul.f32 %v1054, %v1057
    %1061 = vrot.lane.b32.xlu0 %v1059, 64
    %v1062 = vpop.permute.xlu0 %1061
    %v1064 = vadd.f32 %v1012, %v1062
    %v1065 = vtanh.pop %v1064
    %v1066 = vsub.f32 1.0, %v1054
    %1068 = vrot.lane.b32.xlu0 %v1065, 96
    %v1069 = vpop.permute.xlu0 %1068
    %v1071 = vmul.f32 %v1066, %v1069
    %v1072 = vmul.f32 %v1054, %v951
    %v1073 = vadd.f32 %v1071, %v1072
    %1075 = vrot.lane.b32.xlu0 %v1073, 96
    %v1076 = vpop.permute.xlu0 %1075
    %v1078 = vsel %vm330, %v1076, 0.0
    %1079 = vadd.xlane.f32.xlu0 %v1078
    %v1080 = vpop.xlane.xlu0 %1079
    %v1081 = vmul.f32 %v1080, %v340
    %v1082 = vsub.f32 %v1073, %v1081
    %v1083 = vmul.f32 %v1082, %v1082
    %1085 = vrot.lane.b32.xlu0 %v1083, 96
    %v1086 = vpop.permute.xlu0 %1085
    %v1088 = vsel %vm330, %v1086, 0.0
    %1089 = vadd.xlane.f32.xlu0 %v1088
    %v1090 = vpop.xlane.xlu0 %1089
    %v1091 = vmul.f32 %v1090, %v340
    %v1092 = vadd.f32 %v1091, 1e-05
    %v1093 = vrsqrt.pop %v1092
    %v1094 = vmul.f32 %v1093, %v1092
    %v1095 = vmul.f32 %v1094, %v1093
    %v1096 = vmul.f32 0.5, %v1095
    %v1097 = vsub.f32 1.5, %v1096
    %v1098 = vmul.f32 %v1093, %v1097
    %vm1099 = vweird.f32 %v1092
    %vm1100 = vweird.f32 %v1093
    %vm1101 = vmor %vm1099, %vm1100
    %v1102 = vsel %vm1101, %v1093, %v1098
    %v1103 = vmul.f32 %v1082, %v1102
    %v1104 = vmul.f32 %v1103, %v366
    %v1105 = vadd.f32 %v1104, %v371
    %v1106 = vld [vmem:[#allocation2 + $0x18] sm:$0xf]
    %1108 = vrot.lane.b32.xlu0 %v1105, 96
    %v1109 = vpop.permute.xlu0 %1108
    %v1110 = vsel %vm169, %v1109, 0
    %1112 = vmatpush.msra.mxu0 0.0
    %1113 = vmatpush.msra.mxu0 0.0
    %1114 = vmatpush.msra.mxu0 0.0
    %1115 = vmatpush.msra.mxu0 0.0
    %1116 = vmatpush.msra.mxu0 0.0
    %1117 = vmatpush.msra.mxu0 0.0
    %1118 = vmatpush.msra.mxu0 0.0
    %1119 = vmatpush.msra.mxu0 0.0
    %1120 = vmatpush.msra.mxu0 0.0
    %1121 = vmatpush.msra.mxu0 0.0
    %1122 = vmatpush.msra.mxu0 0.0
    %1123 = vmatpush.msra.mxu0 0.0
    %1124 = vmatpush.msra.mxu0 %v262
    %1125 = vmatpush.msra.mxu0 %v261
    %1126 = vmatpush.msra.mxu0 %v260
    %1127 = vmatpush.msra.mxu0 %v259
    %1128 = vmatmul.f32.gmra.mxu0 %v1110
    %v1129 = vpop.f32.mrf.mxu0
    %v1130 = vadd.f32 0.0, %v1129
    %1131 = vdwg.mxu0
    %v1132 = vadd.f32 %v1106, %v1130
    %1133 = vst.msk [vmem:[#allocation2 + $0x18] sm:$0xf] %vm330, %v1132
    %v1134 = vld [vmem:[#allocation3 + $0x1c] sm:$0xf]
    %v1135 = vsel %vm169, %v1076, 0
    %1137 = vmatpush.msra.mxu0 0.0
    %1138 = vmatpush.msra.mxu0 0.0
    %1139 = vmatpush.msra.mxu0 0.0
    %1140 = vmatpush.msra.mxu0 0.0
    %1141 = vmatpush.msra.mxu0 0.0
    %1142 = vmatpush.msra.mxu0 0.0
    %1143 = vmatpush.msra.mxu0 0.0
    %1144 = vmatpush.msra.mxu0 0.0
    %1145 = vmatpush.msra.mxu0 0.0
    %1146 = vmatpush.msra.mxu0 0.0
    %1147 = vmatpush.msra.mxu0 0.0
    %1148 = vmatpush.msra.mxu0 0.0
    %1149 = vmatpush.msra.mxu0 %v257
    %1150 = vmatpush.msra.mxu0 %v256
    %1151 = vmatpush.msra.mxu0 %v255
    %1152 = vmatpush.msra.mxu0 %v254
    %1153 = vmatmul.f32.gmra.mxu0 %v1135
    %v1154 = vpop.f32.mrf.mxu0
    %v1155 = vadd.f32 %v258, %v1154
    %1156 = vdwg.mxu0
    %v1157 = vadd.f32 %v1134, %v1155
    %v1158 = vxor.u32 %v1157, 2147483648
    %v1159 = vmul.f32 %v1158, 1.442695
    %v1160 = vpow.pop %v1159
    %v1161 = vadd.f32 %v1160, 1.0
    %v1162 = vrcp.pop %v1161
    %v1163 = vmul.f32 %v1161, %v1162
    %v1164 = vsub.f32 1.0, %v1163
    %v1165 = vmul.f32 %v1162, %v1164
    %v1166 = vadd.f32 %v1162, %v1165
    %vm1167 = vweird.f32 %v1161
    %vm1168 = vweird.f32 %v1162
    %vm1169 = vmor %vm1167, %vm1168
    %v1170 = vsel %vm1169, %v1162, %v1166
    %v1171 = vand.u32 2147483647, %v1161
    %vm1172 = vcmp.eq.f32.partialorder %v1171, 8.507059e+37
    %v1173 = vand.u32 %v1161, 2147483648
    %v1174 = vor.u32 1.1754944e-38, %v1173
    %v1175 = vsel %vm1172, %v1174, %v1170
    %v1176 = vmul.f32 1.0, %v1175
    %1178 = vrot.lane.b32.xlu0 %v1155, 64
    %v1179 = vpop.permute.xlu0 %1178
    %v1181 = vmul.f32 %v1176, %v1179
    %1183 = vrot.lane.b32.xlu0 %v1181, 64
    %v1184 = vpop.permute.xlu0 %1183
    %v1186 = vadd.f32 %v1134, %v1184
    %v1187 = vtanh.pop %v1186
    %v1188 = vsub.f32 1.0, %v1176
    %1190 = vrot.lane.b32.xlu0 %v1187, 96
    %v1191 = vpop.permute.xlu0 %1190
    %v1193 = vmul.f32 %v1188, %v1191
    %v1194 = vmul.f32 %v1176, %v1073
    %v1195 = vadd.f32 %v1193, %v1194
    %1197 = vrot.lane.b32.xlu0 %v1195, 96
    %v1198 = vpop.permute.xlu0 %1197
    %v1200 = vsel %vm330, %v1198, 0.0
    %1201 = vadd.xlane.f32.xlu0 %v1200
    %v1202 = vpop.xlane.xlu0 %1201
    %v1203 = vmul.f32 %v1202, %v340
    %v1204 = vsub.f32 %v1195, %v1203
    %v1205 = vmul.f32 %v1204, %v1204
    %1207 = vrot.lane.b32.xlu0 %v1205, 96
    %v1208 = vpop.permute.xlu0 %1207
    %v1210 = vsel %vm330, %v1208, 0.0
    %1211 = vadd.xlane.f32.xlu0 %v1210
    %v1212 = vpop.xlane.xlu0 %1211
    %v1213 = vmul.f32 %v1212, %v340
    %v1214 = vadd.f32 %v1213, 1e-05
    %v1215 = vrsqrt.pop %v1214
    %v1216 = vmul.f32 %v1215, %v1214
    %v1217 = vmul.f32 %v1216, %v1215
    %v1218 = vmul.f32 0.5, %v1217
    %v1219 = vsub.f32 1.5, %v1218
    %v1220 = vmul.f32 %v1215, %v1219
    %vm1221 = vweird.f32 %v1214
    %vm1222 = vweird.f32 %v1215
    %vm1223 = vmor %vm1221, %vm1222
    %v1224 = vsel %vm1223, %v1215, %v1220
    %v1225 = vmul.f32 %v1204, %v1224
    %v1226 = vmul.f32 %v1225, %v366
    %v1227 = vadd.f32 %v1226, %v371
    %v1228 = vld [vmem:[#allocation2 + $0x1c] sm:$0xf]
    %1230 = vrot.lane.b32.xlu0 %v1227, 96
    %v1231 = vpop.permute.xlu0 %1230
    %v1232 = vsel %vm169, %v1231, 0
    %1234 = vmatpush.msra.mxu0 0.0
    %1235 = vmatpush.msra.mxu0 0.0
    %1236 = vmatpush.msra.mxu0 0.0
    %1237 = vmatpush.msra.mxu0 0.0
    %1238 = vmatpush.msra.mxu0 0.0
    %1239 = vmatpush.msra.mxu0 0.0
    %1240 = vmatpush.msra.mxu0 0.0
    %1241 = vmatpush.msra.mxu0 0.0
    %1242 = vmatpush.msra.mxu0 0.0
    %1243 = vmatpush.msra.mxu0 0.0
    %1244 = vmatpush.msra.mxu0 0.0
    %1245 = vmatpush.msra.mxu0 0.0
    %1246 = vmatpush.msra.mxu0 %v262
    %1247 = vmatpush.msra.mxu0 %v261
    %1248 = vmatpush.msra.mxu0 %v260
    %1249 = vmatpush.msra.mxu0 %v259
    %1250 = vmatmul.f32.gmra.mxu0 %v1232
    %v1251 = vpop.f32.mrf.mxu0
    %v1252 = vadd.f32 0.0, %v1251
    %1253 = vdwg.mxu0
    %v1254 = vadd.f32 %v1228, %v1252
    %1255 = vst.msk [vmem:[#allocation2 + $0x1c] sm:$0xf] %vm330, %v1254
    %v1256 = vld [vmem:[#allocation2] sm:$0xff]
    %v1257 = vld [vmem:[#allocation2 + $0x8] sm:$0xff]
    %v1258 = vld [vmem:[#allocation2 + $0x10] sm:$0xff]
    %v1259 = vld [vmem:[#allocation2 + $0x18] sm:$0xff]
    %v1260 = vld [vmem:[#allocation9] sm:$0xff]
    %v1261 = vld [vmem:[#allocation9 + $0x8] sm:$0xff]
    %v1262 = vld [vmem:[#allocation9 + $0x10] sm:$0xff]
    %v1263 = vld [vmem:[#allocation9 + $0x18] sm:$0xff]
    %v1264 = vperm.slane %v108, 2
    %v1266 = vsel %vm169, %v1256, 0
    %v1269 = vsel %vm169, %v1257, 0
    %v1272 = vsel %vm169, %v1258, 0
    %v1275 = vsel %vm169, %v1259, 0
    %1277 = vmatpush.msra.mxu0 0.0
    %1278 = vmatpush.msra.mxu0 0.0
    %1279 = vmatpush.msra.mxu0 0.0
    %1280 = vmatpush.msra.mxu0 0.0
    %1281 = vmatpush.msra.mxu0 0.0
    %1282 = vmatpush.msra.mxu0 0.0
    %1283 = vmatpush.msra.mxu0 0.0
    %1284 = vmatpush.msra.mxu0 0.0
    %1285 = vmatpush.msra.mxu0 0.0
    %1286 = vmatpush.msra.mxu0 0.0
    %1287 = vmatpush.msra.mxu0 0.0
    %1288 = vmatpush.msra.mxu0 0.0
    %1289 = vmatpush.msra.mxu0 %v1263
    %1290 = vmatpush.msra.mxu0 %v1262
    %1291 = vmatpush.msra.mxu0 %v1261
    %1292 = vmatpush.msra.mxu0 %v1260
    %1293 = vmatmul.f32.gmra.mxu0 %v1266
    %v1294 = vpop.f32.mrf.mxu0
    %v1295 = vadd.f32 %v1264, %v1294
    %1296 = vmatmul.f32.gmra.mxu0 %v1269
    %v1297 = vpop.f32.mrf.mxu0
    %v1298 = vadd.f32 %v1264, %v1297
    %1299 = vmatmul.f32.gmra.mxu0 %v1272
    %v1300 = vpop.f32.mrf.mxu0
    %v1301 = vadd.f32 %v1264, %v1300
    %1302 = vmatmul.f32.gmra.mxu0 %v1275
    %v1303 = vpop.f32.mrf.mxu0
    %v1304 = vadd.f32 %v1264, %v1303
    %1305 = vdwg.mxu0
    %1306 = vst.msk [vmem:[#allocation4] sm:$0xff] %vm211, %v1295
    %1307 = vst.msk [vmem:[#allocation4 + $0x8] sm:$0xff] %vm211, %v1298
    %1308 = vst.msk [vmem:[#allocation4 + $0x10] sm:$0xff] %vm211, %v1301
    %1309 = vst.msk [vmem:[#allocation4 + $0x18] sm:$0xff] %vm211, %v1304
    %v1310 = vld [vmem:[#allocation11] sm:$0xff]
    %v1311 = vld [vmem:[#allocation11 + $0x8] sm:$0xff]
    %v1312 = vld [vmem:[#allocation11 + $0x10] sm:$0xff]
    %v1313 = vld [vmem:[#allocation11 + $0x18] sm:$0xff]
    %v1314 = vperm.slane %v108, 4
    %1315 = vmatpush.msra.mxu0 0.0
    %1316 = vmatpush.msra.mxu0 0.0
    %1317 = vmatpush.msra.mxu0 0.0
    %1318 = vmatpush.msra.mxu0 0.0
    %1319 = vmatpush.msra.mxu0 0.0
    %1320 = vmatpush.msra.mxu0 0.0
    %1321 = vmatpush.msra.mxu0 0.0
    %1322 = vmatpush.msra.mxu0 0.0
    %1323 = vmatpush.msra.mxu0 0.0
    %1324 = vmatpush.msra.mxu0 0.0
    %1325 = vmatpush.msra.mxu0 0.0
    %1326 = vmatpush.msra.mxu0 0.0
    %1327 = vmatpush.msra.mxu0 %v1313
    %1328 = vmatpush.msra.mxu0 %v1312
    %1329 = vmatpush.msra.mxu0 %v1311
    %1330 = vmatpush.msra.mxu0 %v1310
    %1331 = vmatmul.f32.gmra.mxu0 %v1266
    %v1332 = vpop.f32.mrf.mxu0
    %v1333 = vadd.f32 %v1314, %v1332
    %1334 = vmatmul.f32.gmra.mxu0 %v1269
    %v1335 = vpop.f32.mrf.mxu0
    %v1336 = vadd.f32 %v1314, %v1335
    %1337 = vmatmul.f32.gmra.mxu0 %v1272
    %v1338 = vpop.f32.mrf.mxu0
    %v1339 = vadd.f32 %v1314, %v1338
    %1340 = vmatmul.f32.gmra.mxu0 %v1275
    %v1341 = vpop.f32.mrf.mxu0
    %v1342 = vadd.f32 %v1314, %v1341
    %1343 = vdwg.mxu0
    %1344 = vst.msk [vmem:[#allocation5] sm:$0xff] %vm211, %v1333
    %1345 = vst.msk [vmem:[#allocation5 + $0x8] sm:$0xff] %vm211, %v1336
    %1346 = vst.msk [vmem:[#allocation5 + $0x10] sm:$0xff] %vm211, %v1339
    %1347 = vst.msk [vmem:[#allocation5 + $0x18] sm:$0xff] %vm211, %v1342
    %v1348 = vld [vmem:[#allocation9 + $0x20] sm:$0xff]
    %v1349 = vld [vmem:[#allocation9 + $0x28] sm:$0xff]
    %v1350 = vld [vmem:[#allocation9 + $0x30] sm:$0xff]
    %v1351 = vld [vmem:[#allocation9 + $0x38] sm:$0xff]
    %v1352 = vld [vmem:[#allocation11 + $0x20] sm:$0xff]
    %v1353 = vld [vmem:[#allocation11 + $0x28] sm:$0xff]
    %v1354 = vld [vmem:[#allocation11 + $0x30] sm:$0xff]
    %v1355 = vld [vmem:[#allocation11 + $0x38] sm:$0xff]
    %v1356 = vperm.slane %v108, 3
    %v1357 = vperm.slane %v108, 5
    %v1358 = vld [vmem:[#allocation4] sm:$0xf]
    %1359 = vmatpush.msra.mxu0 0.0
    %1360 = vmatpush.msra.mxu0 0.0
    %1361 = vmatpush.msra.mxu0 0.0
    %1362 = vmatpush.msra.mxu0 0.0
    %1363 = vmatpush.msra.mxu0 0.0
    %1364 = vmatpush.msra.mxu0 0.0
    %1365 = vmatpush.msra.mxu0 0.0
    %1366 = vmatpush.msra.mxu0 0.0
    %1367 = vmatpush.msra.mxu0 0.0
    %1368 = vmatpush.msra.mxu0 0.0
    %1369 = vmatpush.msra.mxu0 0.0
    %1370 = vmatpush.msra.mxu0 0.0
    %1371 = vmatpush.msra.mxu0 %v1351
    %1372 = vmatpush.msra.mxu0 %v1350
    %1373 = vmatpush.msra.mxu0 %v1349
    %1374 = vmatpush.msra.mxu0 %v1348
    %1375 = vmatmul.f32.gmra.mxu0 %v265
    %v1376 = vpop.f32.mrf.mxu0
    %v1377 = vadd.f32 %v1356, %v1376
    %1378 = vdwg.mxu0
    %v1379 = vadd.f32 %v1358, %v1377
    %v1380 = vxor.u32 %v1379, 2147483648
    %v1381 = vmul.f32 %v1380, 1.442695
    %v1382 = vpow.pop %v1381
    %v1383 = vadd.f32 %v1382, 1.0
    %v1384 = vrcp.pop %v1383
    %v1385 = vmul.f32 %v1383, %v1384
    %v1386 = vsub.f32 1.0, %v1385
    %v1387 = vmul.f32 %v1384, %v1386
    %v1388 = vadd.f32 %v1384, %v1387
    %vm1389 = vweird.f32 %v1383
    %vm1390 = vweird.f32 %v1384
    %vm1391 = vmor %vm1389, %vm1390
    %v1392 = vsel %vm1391, %v1384, %v1388
    %v1393 = vand.u32 2147483647, %v1383
    %vm1394 = vcmp.eq.f32.partialorder %v1393, 8.507059e+37
    %v1395 = vand.u32 %v1383, 2147483648
    %v1396 = vor.u32 1.1754944e-38, %v1395
    %v1397 = vsel %vm1394, %v1396, %v1392
    %v1398 = vmul.f32 1.0, %v1397
    %1400 = vrot.lane.b32.xlu0 %v1377, 64
    %v1401 = vpop.permute.xlu0 %1400
    %v1403 = vmul.f32 %v1398, %v1401
    %1405 = vrot.lane.b32.xlu0 %v1403, 64
    %v1406 = vpop.permute.xlu0 %1405
    %v1408 = vadd.f32 %v1358, %v1406
    %v1409 = vtanh.pop %v1408
    %v1410 = vsub.f32 1.0, %v1398
    %1412 = vrot.lane.b32.xlu0 %v1409, 96
    %v1413 = vpop.permute.xlu0 %1412
    %v1415 = vmul.f32 %v1410, %v1413
    %v1416 = vmul.f32 %v1398, 0.0
    %v1417 = vadd.f32 %v1415, %v1416
    %v1418 = vld [vmem:[#allocation5 + $0x1c] sm:$0xf]
    %1419 = vmatpush.msra.mxu0 0.0
    %1420 = vmatpush.msra.mxu0 0.0
    %1421 = vmatpush.msra.mxu0 0.0
    %1422 = vmatpush.msra.mxu0 0.0
    %1423 = vmatpush.msra.mxu0 0.0
    %1424 = vmatpush.msra.mxu0 0.0
    %1425 = vmatpush.msra.mxu0 0.0
    %1426 = vmatpush.msra.mxu0 0.0
    %1427 = vmatpush.msra.mxu0 0.0
    %1428 = vmatpush.msra.mxu0 0.0
    %1429 = vmatpush.msra.mxu0 0.0
    %1430 = vmatpush.msra.mxu0 0.0
    %1431 = vmatpush.msra.mxu0 %v1355
    %1432 = vmatpush.msra.mxu0 %v1354
    %1433 = vmatpush.msra.mxu0 %v1353
    %1434 = vmatpush.msra.mxu0 %v1352
    %1435 = vmatmul.f32.gmra.mxu0 %v265
    %v1436 = vpop.f32.mrf.mxu0
    %v1437 = vadd.f32 %v1357, %v1436
    %1438 = vdwg.mxu0
    %v1439 = vadd.f32 %v1418, %v1437
    %v1440 = vxor.u32 %v1439, 2147483648
    %v1441 = vmul.f32 %v1440, 1.442695
    %v1442 = vpow.pop %v1441
    %v1443 = vadd.f32 %v1442, 1.0
    %v1444 = vrcp.pop %v1443
    %v1445 = vmul.f32 %v1443, %v1444
    %v1446 = vsub.f32 1.0, %v1445
    %v1447 = vmul.f32 %v1444, %v1446
    %v1448 = vadd.f32 %v1444, %v1447
    %vm1449 = vweird.f32 %v1443
    %vm1450 = vweird.f32 %v1444
    %vm1451 = vmor %vm1449, %vm1450
    %v1452 = vsel %vm1451, %v1444, %v1448
    %v1453 = vand.u32 2147483647, %v1443
    %vm1454 = vcmp.eq.f32.partialorder %v1453, 8.507059e+37
    %v1455 = vand.u32 %v1443, 2147483648
    %v1456 = vor.u32 1.1754944e-38, %v1455
    %v1457 = vsel %vm1454, %v1456, %v1452
    %v1458 = vmul.f32 1.0, %v1457
    %1460 = vrot.lane.b32.xlu0 %v1437, 64
    %v1461 = vpop.permute.xlu0 %1460
    %v1463 = vmul.f32 %v1458, %v1461
    %1465 = vrot.lane.b32.xlu0 %v1463, 64
    %v1466 = vpop.permute.xlu0 %1465
    %v1468 = vadd.f32 %v1418, %v1466
    %v1469 = vtanh.pop %v1468
    %v1470 = vsub.f32 1.0, %v1458
    %1472 = vrot.lane.b32.xlu0 %v1469, 96
    %v1473 = vpop.permute.xlu0 %1472
    %v1475 = vmul.f32 %v1470, %v1473
    %v1476 = vmul.f32 %v1458, 0.0
    %v1477 = vadd.f32 %v1475, %v1476
    %1479 = vrot.lane.b32.xlu0 %v1417, 96
    %v1480 = vpop.permute.xlu0 %1479
    %1482 = vst.msk [vmem:[%s8] sm:$0xf] %vm330, %v1480
    %1484 = vrot.lane.b32.xlu0 %v1477, 96
    %v1485 = vpop.permute.xlu0 %1484
    %s1487 = scalar_lea.vmem %s9, 28
    %1488 = vst.msk [vmem:[%s1487] sm:$0xf] %vm330, %v1485
    %v1489 = vld [vmem:[#allocation4 + $0x4] sm:$0xf]
    %v1490 = vsel %vm169, %v1480, 0
    %1492 = vmatpush.msra.mxu0 0.0
    %1493 = vmatpush.msra.mxu0 0.0
    %1494 = vmatpush.msra.mxu0 0.0
    %1495 = vmatpush.msra.mxu0 0.0
    %1496 = vmatpush.msra.mxu0 0.0
    %1497 = vmatpush.msra.mxu0 0.0
    %1498 = vmatpush.msra.mxu0 0.0
    %1499 = vmatpush.msra.mxu0 0.0
    %1500 = vmatpush.msra.mxu0 0.0
    %1501 = vmatpush.msra.mxu0 0.0
    %1502 = vmatpush.msra.mxu0 0.0
    %1503 = vmatpush.msra.mxu0 0.0
    %1504 = vmatpush.msra.mxu0 %v1351
    %1505 = vmatpush.msra.mxu0 %v1350
    %1506 = vmatpush.msra.mxu0 %v1349
    %1507 = vmatpush.msra.mxu0 %v1348
    %1508 = vmatmul.f32.gmra.mxu0 %v1490
    %v1509 = vpop.f32.mrf.mxu0
    %v1510 = vadd.f32 %v1356, %v1509
    %1511 = vdwg.mxu0
    %v1512 = vadd.f32 %v1489, %v1510
    %v1513 = vxor.u32 %v1512, 2147483648
    %v1514 = vmul.f32 %v1513, 1.442695
    %v1515 = vpow.pop %v1514
    %v1516 = vadd.f32 %v1515, 1.0
    %v1517 = vrcp.pop %v1516
    %v1518 = vmul.f32 %v1516, %v1517
    %v1519 = vsub.f32 1.0, %v1518
    %v1520 = vmul.f32 %v1517, %v1519
    %v1521 = vadd.f32 %v1517, %v1520
    %vm1522 = vweird.f32 %v1516
    %vm1523 = vweird.f32 %v1517
    %vm1524 = vmor %vm1522, %vm1523
    %v1525 = vsel %vm1524, %v1517, %v1521
    %v1526 = vand.u32 2147483647, %v1516
    %vm1527 = vcmp.eq.f32.partialorder %v1526, 8.507059e+37
    %v1528 = vand.u32 %v1516, 2147483648
    %v1529 = vor.u32 1.1754944e-38, %v1528
    %v1530 = vsel %vm1527, %v1529, %v1525
    %v1531 = vmul.f32 1.0, %v1530
    %1533 = vrot.lane.b32.xlu0 %v1510, 64
    %v1534 = vpop.permute.xlu0 %1533
    %v1536 = vmul.f32 %v1531, %v1534
    %1538 = vrot.lane.b32.xlu0 %v1536, 64
    %v1539 = vpop.permute.xlu0 %1538
    %v1541 = vadd.f32 %v1489, %v1539
    %v1542 = vtanh.pop %v1541
    %v1543 = vsub.f32 1.0, %v1531
    %1545 = vrot.lane.b32.xlu0 %v1542, 96
    %v1546 = vpop.permute.xlu0 %1545
    %v1548 = vmul.f32 %v1543, %v1546
    %v1549 = vmul.f32 %v1531, %v1417
    %v1550 = vadd.f32 %v1548, %v1549
    %v1551 = vld [vmem:[#allocation5 + $0x18] sm:$0xf]
    %v1552 = vsel %vm169, %v1485, 0
    %1554 = vmatpush.msra.mxu0 0.0
    %1555 = vmatpush.msra.mxu0 0.0
    %1556 = vmatpush.msra.mxu0 0.0
    %1557 = vmatpush.msra.mxu0 0.0
    %1558 = vmatpush.msra.mxu0 0.0
    %1559 = vmatpush.msra.mxu0 0.0
    %1560 = vmatpush.msra.mxu0 0.0
    %1561 = vmatpush.msra.mxu0 0.0
    %1562 = vmatpush.msra.mxu0 0.0
    %1563 = vmatpush.msra.mxu0 0.0
    %1564 = vmatpush.msra.mxu0 0.0
    %1565 = vmatpush.msra.mxu0 0.0
    %1566 = vmatpush.msra.mxu0 %v1355
    %1567 = vmatpush.msra.mxu0 %v1354
    %1568 = vmatpush.msra.mxu0 %v1353
    %1569 = vmatpush.msra.mxu0 %v1352
    %1570 = vmatmul.f32.gmra.mxu0 %v1552
    %v1571 = vpop.f32.mrf.mxu0
    %v1572 = vadd.f32 %v1357, %v1571
    %1573 = vdwg.mxu0
    %v1574 = vadd.f32 %v1551, %v1572
    %v1575 = vxor.u32 %v1574, 2147483648
    %v1576 = vmul.f32 %v1575, 1.442695
    %v1577 = vpow.pop %v1576
    %v1578 = vadd.f32 %v1577, 1.0
    %v1579 = vrcp.pop %v1578
    %v1580 = vmul.f32 %v1578, %v1579
    %v1581 = vsub.f32 1.0, %v1580
    %v1582 = vmul.f32 %v1579, %v1581
    %v1583 = vadd.f32 %v1579, %v1582
    %vm1584 = vweird.f32 %v1578
    %vm1585 = vweird.f32 %v1579
    %vm1586 = vmor %vm1584, %vm1585
    %v1587 = vsel %vm1586, %v1579, %v1583
    %v1588 = vand.u32 2147483647, %v1578
    %vm1589 = vcmp.eq.f32.partialorder %v1588, 8.507059e+37
    %v1590 = vand.u32 %v1578, 2147483648
    %v1591 = vor.u32 1.1754944e-38, %v1590
    %v1592 = vsel %vm1589, %v1591, %v1587
    %v1593 = vmul.f32 1.0, %v1592
    %1595 = vrot.lane.b32.xlu0 %v1572, 64
    %v1596 = vpop.permute.xlu0 %1595
    %v1598 = vmul.f32 %v1593, %v1596
    %1600 = vrot.lane.b32.xlu0 %v1598, 64
    %v1601 = vpop.permute.xlu0 %1600
    %v1603 = vadd.f32 %v1551, %v1601
    %v1604 = vtanh.pop %v1603
    %v1605 = vsub.f32 1.0, %v1593
    %1607 = vrot.lane.b32.xlu0 %v1604, 96
    %v1608 = vpop.permute.xlu0 %1607
    %v1610 = vmul.f32 %v1605, %v1608
    %v1611 = vmul.f32 %v1593, %v1477
    %v1612 = vadd.f32 %v1610, %v1611
    %1614 = vrot.lane.b32.xlu0 %v1550, 96
    %v1615 = vpop.permute.xlu0 %1614
    %s1617 = scalar_lea.vmem %s8, 4
    %1618 = vst.msk [vmem:[%s1617] sm:$0xf] %vm330, %v1615
    %1620 = vrot.lane.b32.xlu0 %v1612, 96
    %v1621 = vpop.permute.xlu0 %1620
    %s1623 = scalar_lea.vmem %s9, 24
    %1624 = vst.msk [vmem:[%s1623] sm:$0xf] %vm330, %v1621
    %v1625 = vld [vmem:[#allocation4 + $0x8] sm:$0xf]
    %v1626 = vsel %vm169, %v1615, 0
    %1628 = vmatpush.msra.mxu0 0.0
    %1629 = vmatpush.msra.mxu0 0.0
    %1630 = vmatpush.msra.mxu0 0.0
    %1631 = vmatpush.msra.mxu0 0.0
    %1632 = vmatpush.msra.mxu0 0.0
    %1633 = vmatpush.msra.mxu0 0.0
    %1634 = vmatpush.msra.mxu0 0.0
    %1635 = vmatpush.msra.mxu0 0.0
    %1636 = vmatpush.msra.mxu0 0.0
    %1637 = vmatpush.msra.mxu0 0.0
    %1638 = vmatpush.msra.mxu0 0.0
    %1639 = vmatpush.msra.mxu0 0.0
    %1640 = vmatpush.msra.mxu0 %v1351
    %1641 = vmatpush.msra.mxu0 %v1350
    %1642 = vmatpush.msra.mxu0 %v1349
    %1643 = vmatpush.msra.mxu0 %v1348
    %1644 = vmatmul.f32.gmra.mxu0 %v1626
    %v1645 = vpop.f32.mrf.mxu0
    %v1646 = vadd.f32 %v1356, %v1645
    %1647 = vdwg.mxu0
    %v1648 = vadd.f32 %v1625, %v1646
    %v1649 = vxor.u32 %v1648, 2147483648
    %v1650 = vmul.f32 %v1649, 1.442695
    %v1651 = vpow.pop %v1650
    %v1652 = vadd.f32 %v1651, 1.0
    %v1653 = vrcp.pop %v1652
    %v1654 = vmul.f32 %v1652, %v1653
    %v1655 = vsub.f32 1.0, %v1654
    %v1656 = vmul.f32 %v1653, %v1655
    %v1657 = vadd.f32 %v1653, %v1656
    %vm1658 = vweird.f32 %v1652
    %vm1659 = vweird.f32 %v1653
    %vm1660 = vmor %vm1658, %vm1659
    %v1661 = vsel %vm1660, %v1653, %v1657
    %v1662 = vand.u32 2147483647, %v1652
    %vm1663 = vcmp.eq.f32.partialorder %v1662, 8.507059e+37
    %v1664 = vand.u32 %v1652, 2147483648
    %v1665 = vor.u32 1.1754944e-38, %v1664
    %v1666 = vsel %vm1663, %v1665, %v1661
    %v1667 = vmul.f32 1.0, %v1666
    %1669 = vrot.lane.b32.xlu0 %v1646, 64
    %v1670 = vpop.permute.xlu0 %1669
    %v1672 = vmul.f32 %v1667, %v1670
    %1674 = vrot.lane.b32.xlu0 %v1672, 64
    %v1675 = vpop.permute.xlu0 %1674
    %v1677 = vadd.f32 %v1625, %v1675
    %v1678 = vtanh.pop %v1677
    %v1679 = vsub.f32 1.0, %v1667
    %1681 = vrot.lane.b32.xlu0 %v1678, 96
    %v1682 = vpop.permute.xlu0 %1681
    %v1684 = vmul.f32 %v1679, %v1682
    %v1685 = vmul.f32 %v1667, %v1550
    %v1686 = vadd.f32 %v1684, %v1685
    %v1687 = vld [vmem:[#allocation5 + $0x14] sm:$0xf]
    %v1688 = vsel %vm169, %v1621, 0
    %1690 = vmatpush.msra.mxu0 0.0
    %1691 = vmatpush.msra.mxu0 0.0
    %1692 = vmatpush.msra.mxu0 0.0
    %1693 = vmatpush.msra.mxu0 0.0
    %1694 = vmatpush.msra.mxu0 0.0
    %1695 = vmatpush.msra.mxu0 0.0
    %1696 = vmatpush.msra.mxu0 0.0
    %1697 = vmatpush.msra.mxu0 0.0
    %1698 = vmatpush.msra.mxu0 0.0
    %1699 = vmatpush.msra.mxu0 0.0
    %1700 = vmatpush.msra.mxu0 0.0
    %1701 = vmatpush.msra.mxu0 0.0
    %1702 = vmatpush.msra.mxu0 %v1355
    %1703 = vmatpush.msra.mxu0 %v1354
    %1704 = vmatpush.msra.mxu0 %v1353
    %1705 = vmatpush.msra.mxu0 %v1352
    %1706 = vmatmul.f32.gmra.mxu0 %v1688
    %v1707 = vpop.f32.mrf.mxu0
    %v1708 = vadd.f32 %v1357, %v1707
    %1709 = vdwg.mxu0
    %v1710 = vadd.f32 %v1687, %v1708
    %v1711 = vxor.u32 %v1710, 2147483648
    %v1712 = vmul.f32 %v1711, 1.442695
    %v1713 = vpow.pop %v1712
    %v1714 = vadd.f32 %v1713, 1.0
    %v1715 = vrcp.pop %v1714
    %v1716 = vmul.f32 %v1714, %v1715
    %v1717 = vsub.f32 1.0, %v1716
    %v1718 = vmul.f32 %v1715, %v1717
    %v1719 = vadd.f32 %v1715, %v1718
    %vm1720 = vweird.f32 %v1714
    %vm1721 = vweird.f32 %v1715
    %vm1722 = vmor %vm1720, %vm1721
    %v1723 = vsel %vm1722, %v1715, %v1719
    %v1724 = vand.u32 2147483647, %v1714
    %vm1725 = vcmp.eq.f32.partialorder %v1724, 8.507059e+37
    %v1726 = vand.u32 %v1714, 2147483648
    %v1727 = vor.u32 1.1754944e-38, %v1726
    %v1728 = vsel %vm1725, %v1727, %v1723
    %v1729 = vmul.f32 1.0, %v1728
    %1731 = vrot.lane.b32.xlu0 %v1708, 64
    %v1732 = vpop.permute.xlu0 %1731
    %v1734 = vmul.f32 %v1729, %v1732
    %1736 = vrot.lane.b32.xlu0 %v1734, 64
    %v1737 = vpop.permute.xlu0 %1736
    %v1739 = vadd.f32 %v1687, %v1737
    %v1740 = vtanh.pop %v1739
    %v1741 = vsub.f32 1.0, %v1729
    %1743 = vrot.lane.b32.xlu0 %v1740, 96
    %v1744 = vpop.permute.xlu0 %1743
    %v1746 = vmul.f32 %v1741, %v1744
    %v1747 = vmul.f32 %v1729, %v1612
    %v1748 = vadd.f32 %v1746, %v1747
    %1750 = vrot.lane.b32.xlu0 %v1686, 96
    %v1751 = vpop.permute.xlu0 %1750
    %s1753 = scalar_lea.vmem %s8, 8
    %1754 = vst.msk [vmem:[%s1753] sm:$0xf] %vm330, %v1751
    %1756 = vrot.lane.b32.xlu0 %v1748, 96
    %v1757 = vpop.permute.xlu0 %1756
    %s1759 = scalar_lea.vmem %s9, 20
    %1760 = vst.msk [vmem:[%s1759] sm:$0xf] %vm330, %v1757
    %v1761 = vld [vmem:[#allocation4 + $0xc] sm:$0xf]
    %v1762 = vsel %vm169, %v1751, 0
    %1764 = vmatpush.msra.mxu0 0.0
    %1765 = vmatpush.msra.mxu0 0.0
    %1766 = vmatpush.msra.mxu0 0.0
    %1767 = vmatpush.msra.mxu0 0.0
    %1768 = vmatpush.msra.mxu0 0.0
    %1769 = vmatpush.msra.mxu0 0.0
    %1770 = vmatpush.msra.mxu0 0.0
    %1771 = vmatpush.msra.mxu0 0.0
    %1772 = vmatpush.msra.mxu0 0.0
    %1773 = vmatpush.msra.mxu0 0.0
    %1774 = vmatpush.msra.mxu0 0.0
    %1775 = vmatpush.msra.mxu0 0.0
    %1776 = vmatpush.msra.mxu0 %v1351
    %1777 = vmatpush.msra.mxu0 %v1350
    %1778 = vmatpush.msra.mxu0 %v1349
    %1779 = vmatpush.msra.mxu0 %v1348
    %1780 = vmatmul.f32.gmra.mxu0 %v1762
    %v1781 = vpop.f32.mrf.mxu0
    %v1782 = vadd.f32 %v1356, %v1781
    %1783 = vdwg.mxu0
    %v1784 = vadd.f32 %v1761, %v1782
    %v1785 = vxor.u32 %v1784, 2147483648
    %v1786 = vmul.f32 %v1785, 1.442695
    %v1787 = vpow.pop %v1786
    %v1788 = vadd.f32 %v1787, 1.0
    %v1789 = vrcp.pop %v1788
    %v1790 = vmul.f32 %v1788, %v1789
    %v1791 = vsub.f32 1.0, %v1790
    %v1792 = vmul.f32 %v1789, %v1791
    %v1793 = vadd.f32 %v1789, %v1792
    %vm1794 = vweird.f32 %v1788
    %vm1795 = vweird.f32 %v1789
    %vm1796 = vmor %vm1794, %vm1795
    %v1797 = vsel %vm1796, %v1789, %v1793
    %v1798 = vand.u32 2147483647, %v1788
    %vm1799 = vcmp.eq.f32.partialorder %v1798, 8.507059e+37
    %v1800 = vand.u32 %v1788, 2147483648
    %v1801 = vor.u32 1.1754944e-38, %v1800
    %v1802 = vsel %vm1799, %v1801, %v1797
    %v1803 = vmul.f32 1.0, %v1802
    %1805 = vrot.lane.b32.xlu0 %v1782, 64
    %v1806 = vpop.permute.xlu0 %1805
    %v1808 = vmul.f32 %v1803, %v1806
    %1810 = vrot.lane.b32.xlu0 %v1808, 64
    %v1811 = vpop.permute.xlu0 %1810
    %v1813 = vadd.f32 %v1761, %v1811
    %v1814 = vtanh.pop %v1813
    %v1815 = vsub.f32 1.0, %v1803
    %1817 = vrot.lane.b32.xlu0 %v1814, 96
    %v1818 = vpop.permute.xlu0 %1817
    %v1820 = vmul.f32 %v1815, %v1818
    %v1821 = vmul.f32 %v1803, %v1686
    %v1822 = vadd.f32 %v1820, %v1821
    %v1823 = vld [vmem:[#allocation5 + $0x10] sm:$0xf]
    %v1824 = vsel %vm169, %v1757, 0
    %1826 = vmatpush.msra.mxu0 0.0
    %1827 = vmatpush.msra.mxu0 0.0
    %1828 = vmatpush.msra.mxu0 0.0
    %1829 = vmatpush.msra.mxu0 0.0
    %1830 = vmatpush.msra.mxu0 0.0
    %1831 = vmatpush.msra.mxu0 0.0
    %1832 = vmatpush.msra.mxu0 0.0
    %1833 = vmatpush.msra.mxu0 0.0
    %1834 = vmatpush.msra.mxu0 0.0
    %1835 = vmatpush.msra.mxu0 0.0
    %1836 = vmatpush.msra.mxu0 0.0
    %1837 = vmatpush.msra.mxu0 0.0
    %1838 = vmatpush.msra.mxu0 %v1355
    %1839 = vmatpush.msra.mxu0 %v1354
    %1840 = vmatpush.msra.mxu0 %v1353
    %1841 = vmatpush.msra.mxu0 %v1352
    %1842 = vmatmul.f32.gmra.mxu0 %v1824
    %v1843 = vpop.f32.mrf.mxu0
    %v1844 = vadd.f32 %v1357, %v1843
    %1845 = vdwg.mxu0
    %v1846 = vadd.f32 %v1823, %v1844
    %v1847 = vxor.u32 %v1846, 2147483648
    %v1848 = vmul.f32 %v1847, 1.442695
    %v1849 = vpow.pop %v1848
    %v1850 = vadd.f32 %v1849, 1.0
    %v1851 = vrcp.pop %v1850
    %v1852 = vmul.f32 %v1850, %v1851
    %v1853 = vsub.f32 1.0, %v1852
    %v1854 = vmul.f32 %v1851, %v1853
    %v1855 = vadd.f32 %v1851, %v1854
    %vm1856 = vweird.f32 %v1850
    %vm1857 = vweird.f32 %v1851
    %vm1858 = vmor %vm1856, %vm1857
    %v1859 = vsel %vm1858, %v1851, %v1855
    %v1860 = vand.u32 2147483647, %v1850
    %vm1861 = vcmp.eq.f32.partialorder %v1860, 8.507059e+37
    %v1862 = vand.u32 %v1850, 2147483648
    %v1863 = vor.u32 1.1754944e-38, %v1862
    %v1864 = vsel %vm1861, %v1863, %v1859
    %v1865 = vmul.f32 1.0, %v1864
    %1867 = vrot.lane.b32.xlu0 %v1844, 64
    %v1868 = vpop.permute.xlu0 %1867
    %v1870 = vmul.f32 %v1865, %v1868
    %1872 = vrot.lane.b32.xlu0 %v1870, 64
    %v1873 = vpop.permute.xlu0 %1872
    %v1875 = vadd.f32 %v1823, %v1873
    %v1876 = vtanh.pop %v1875
    %v1877 = vsub.f32 1.0, %v1865
    %1879 = vrot.lane.b32.xlu0 %v1876, 96
    %v1880 = vpop.permute.xlu0 %1879
    %v1882 = vmul.f32 %v1877, %v1880
    %v1883 = vmul.f32 %v1865, %v1748
    %v1884 = vadd.f32 %v1882, %v1883
    %1886 = vrot.lane.b32.xlu0 %v1822, 96
    %v1887 = vpop.permute.xlu0 %1886
    %s1889 = scalar_lea.vmem %s8, 12
    %1890 = vst.msk [vmem:[%s1889] sm:$0xf] %vm330, %v1887
    %1892 = vrot.lane.b32.xlu0 %v1884, 96
    %v1893 = vpop.permute.xlu0 %1892
    %s1895 = scalar_lea.vmem %s9, 16
    %1896 = vst.msk [vmem:[%s1895] sm:$0xf] %vm330, %v1893
    %v1897 = vld [vmem:[#allocation4 + $0x10] sm:$0xf]
    %v1898 = vsel %vm169, %v1887, 0
    %1900 = vmatpush.msra.mxu0 0.0
    %1901 = vmatpush.msra.mxu0 0.0
    %1902 = vmatpush.msra.mxu0 0.0
    %1903 = vmatpush.msra.mxu0 0.0
    %1904 = vmatpush.msra.mxu0 0.0
    %1905 = vmatpush.msra.mxu0 0.0
    %1906 = vmatpush.msra.mxu0 0.0
    %1907 = vmatpush.msra.mxu0 0.0
    %1908 = vmatpush.msra.mxu0 0.0
    %1909 = vmatpush.msra.mxu0 0.0
    %1910 = vmatpush.msra.mxu0 0.0
    %1911 = vmatpush.msra.mxu0 0.0
    %1912 = vmatpush.msra.mxu0 %v1351
    %1913 = vmatpush.msra.mxu0 %v1350
    %1914 = vmatpush.msra.mxu0 %v1349
    %1915 = vmatpush.msra.mxu0 %v1348
    %1916 = vmatmul.f32.gmra.mxu0 %v1898
    %v1917 = vpop.f32.mrf.mxu0
    %v1918 = vadd.f32 %v1356, %v1917
    %1919 = vdwg.mxu0
    %v1920 = vadd.f32 %v1897, %v1918
    %v1921 = vxor.u32 %v1920, 2147483648
    %v1922 = vmul.f32 %v1921, 1.442695
    %v1923 = vpow.pop %v1922
    %v1924 = vadd.f32 %v1923, 1.0
    %v1925 = vrcp.pop %v1924
    %v1926 = vmul.f32 %v1924, %v1925
    %v1927 = vsub.f32 1.0, %v1926
    %v1928 = vmul.f32 %v1925, %v1927
    %v1929 = vadd.f32 %v1925, %v1928
    %vm1930 = vweird.f32 %v1924
    %vm1931 = vweird.f32 %v1925
    %vm1932 = vmor %vm1930, %vm1931
    %v1933 = vsel %vm1932, %v1925, %v1929
    %v1934 = vand.u32 2147483647, %v1924
    %vm1935 = vcmp.eq.f32.partialorder %v1934, 8.507059e+37
    %v1936 = vand.u32 %v1924, 2147483648
    %v1937 = vor.u32 1.1754944e-38, %v1936
    %v1938 = vsel %vm1935, %v1937, %v1933
    %v1939 = vmul.f32 1.0, %v1938
    %1941 = vrot.lane.b32.xlu0 %v1918, 64
    %v1942 = vpop.permute.xlu0 %1941
    %v1944 = vmul.f32 %v1939, %v1942
    %1946 = vrot.lane.b32.xlu0 %v1944, 64
    %v1947 = vpop.permute.xlu0 %1946
    %v1949 = vadd.f32 %v1897, %v1947
    %v1950 = vtanh.pop %v1949
    %v1951 = vsub.f32 1.0, %v1939
    %1953 = vrot.lane.b32.xlu0 %v1950, 96
    %v1954 = vpop.permute.xlu0 %1953
    %v1956 = vmul.f32 %v1951, %v1954
    %v1957 = vmul.f32 %v1939, %v1822
    %v1958 = vadd.f32 %v1956, %v1957
    %v1959 = vld [vmem:[#allocation5 + $0xc] sm:$0xf]
    %v1960 = vsel %vm169, %v1893, 0
    %1962 = vmatpush.msra.mxu0 0.0
    %1963 = vmatpush.msra.mxu0 0.0
    %1964 = vmatpush.msra.mxu0 0.0
    %1965 = vmatpush.msra.mxu0 0.0
    %1966 = vmatpush.msra.mxu0 0.0
    %1967 = vmatpush.msra.mxu0 0.0
    %1968 = vmatpush.msra.mxu0 0.0
    %1969 = vmatpush.msra.mxu0 0.0
    %1970 = vmatpush.msra.mxu0 0.0
    %1971 = vmatpush.msra.mxu0 0.0
    %1972 = vmatpush.msra.mxu0 0.0
    %1973 = vmatpush.msra.mxu0 0.0
    %1974 = vmatpush.msra.mxu0 %v1355
    %1975 = vmatpush.msra.mxu0 %v1354
    %1976 = vmatpush.msra.mxu0 %v1353
    %1977 = vmatpush.msra.mxu0 %v1352
    %1978 = vmatmul.f32.gmra.mxu0 %v1960
    %v1979 = vpop.f32.mrf.mxu0
    %v1980 = vadd.f32 %v1357, %v1979
    %1981 = vdwg.mxu0
    %v1982 = vadd.f32 %v1959, %v1980
    %v1983 = vxor.u32 %v1982, 2147483648
    %v1984 = vmul.f32 %v1983, 1.442695
    %v1985 = vpow.pop %v1984
    %v1986 = vadd.f32 %v1985, 1.0
    %v1987 = vrcp.pop %v1986
    %v1988 = vmul.f32 %v1986, %v1987
    %v1989 = vsub.f32 1.0, %v1988
    %v1990 = vmul.f32 %v1987, %v1989
    %v1991 = vadd.f32 %v1987, %v1990
    %vm1992 = vweird.f32 %v1986
    %vm1993 = vweird.f32 %v1987
    %vm1994 = vmor %vm1992, %vm1993
    %v1995 = vsel %vm1994, %v1987, %v1991
    %v1996 = vand.u32 2147483647, %v1986
    %vm1997 = vcmp.eq.f32.partialorder %v1996, 8.507059e+37
    %v1998 = vand.u32 %v1986, 2147483648
    %v1999 = vor.u32 1.1754944e-38, %v1998
    %v2000 = vsel %vm1997, %v1999, %v1995
    %v2001 = vmul.f32 1.0, %v2000
    %2003 = vrot.lane.b32.xlu0 %v1980, 64
    %v2004 = vpop.permute.xlu0 %2003
    %v2006 = vmul.f32 %v2001, %v2004
    %2008 = vrot.lane.b32.xlu0 %v2006, 64
    %v2009 = vpop.permute.xlu0 %2008
    %v2011 = vadd.f32 %v1959, %v2009
    %v2012 = vtanh.pop %v2011
    %v2013 = vsub.f32 1.0, %v2001
    %2015 = vrot.lane.b32.xlu0 %v2012, 96
    %v2016 = vpop.permute.xlu0 %2015
    %v2018 = vmul.f32 %v2013, %v2016
    %v2019 = vmul.f32 %v2001, %v1884
    %v2020 = vadd.f32 %v2018, %v2019
    %2022 = vrot.lane.b32.xlu0 %v1958, 96
    %v2023 = vpop.permute.xlu0 %2022
    %s2025 = scalar_lea.vmem %s8, 16
    %2026 = vst.msk [vmem:[%s2025] sm:$0xf] %vm330, %v2023
    %2028 = vrot.lane.b32.xlu0 %v2020, 96
    %v2029 = vpop.permute.xlu0 %2028
    %s2031 = scalar_lea.vmem %s9, 12
    %2032 = vst.msk [vmem:[%s2031] sm:$0xf] %vm330, %v2029
    %v2033 = vld [vmem:[#allocation4 + $0x14] sm:$0xf]
    %v2034 = vsel %vm169, %v2023, 0
    %2036 = vmatpush.msra.mxu0 0.0
    %2037 = vmatpush.msra.mxu0 0.0
    %2038 = vmatpush.msra.mxu0 0.0
    %2039 = vmatpush.msra.mxu0 0.0
    %2040 = vmatpush.msra.mxu0 0.0
    %2041 = vmatpush.msra.mxu0 0.0
    %2042 = vmatpush.msra.mxu0 0.0
    %2043 = vmatpush.msra.mxu0 0.0
    %2044 = vmatpush.msra.mxu0 0.0
    %2045 = vmatpush.msra.mxu0 0.0
    %2046 = vmatpush.msra.mxu0 0.0
    %2047 = vmatpush.msra.mxu0 0.0
    %2048 = vmatpush.msra.mxu0 %v1351
    %2049 = vmatpush.msra.mxu0 %v1350
    %2050 = vmatpush.msra.mxu0 %v1349
    %2051 = vmatpush.msra.mxu0 %v1348
    %2052 = vmatmul.f32.gmra.mxu0 %v2034
    %v2053 = vpop.f32.mrf.mxu0
    %v2054 = vadd.f32 %v1356, %v2053
    %2055 = vdwg.mxu0
    %v2056 = vadd.f32 %v2033, %v2054
    %v2057 = vxor.u32 %v2056, 2147483648
    %v2058 = vmul.f32 %v2057, 1.442695
    %v2059 = vpow.pop %v2058
    %v2060 = vadd.f32 %v2059, 1.0
    %v2061 = vrcp.pop %v2060
    %v2062 = vmul.f32 %v2060, %v2061
    %v2063 = vsub.f32 1.0, %v2062
    %v2064 = vmul.f32 %v2061, %v2063
    %v2065 = vadd.f32 %v2061, %v2064
    %vm2066 = vweird.f32 %v2060
    %vm2067 = vweird.f32 %v2061
    %vm2068 = vmor %vm2066, %vm2067
    %v2069 = vsel %vm2068, %v2061, %v2065
    %v2070 = vand.u32 2147483647, %v2060
    %vm2071 = vcmp.eq.f32.partialorder %v2070, 8.507059e+37
    %v2072 = vand.u32 %v2060, 2147483648
    %v2073 = vor.u32 1.1754944e-38, %v2072
    %v2074 = vsel %vm2071, %v2073, %v2069
    %v2075 = vmul.f32 1.0, %v2074
    %2077 = vrot.lane.b32.xlu0 %v2054, 64
    %v2078 = vpop.permute.xlu0 %2077
    %v2080 = vmul.f32 %v2075, %v2078
    %2082 = vrot.lane.b32.xlu0 %v2080, 64
    %v2083 = vpop.permute.xlu0 %2082
    %v2085 = vadd.f32 %v2033, %v2083
    %v2086 = vtanh.pop %v2085
    %v2087 = vsub.f32 1.0, %v2075
    %2089 = vrot.lane.b32.xlu0 %v2086, 96
    %v2090 = vpop.permute.xlu0 %2089
    %v2092 = vmul.f32 %v2087, %v2090
    %v2093 = vmul.f32 %v2075, %v1958
    %v2094 = vadd.f32 %v2092, %v2093
    %v2095 = vld [vmem:[#allocation5 + $0x8] sm:$0xf]
    %v2096 = vsel %vm169, %v2029, 0
    %2098 = vmatpush.msra.mxu0 0.0
    %2099 = vmatpush.msra.mxu0 0.0
    %2100 = vmatpush.msra.mxu0 0.0
    %2101 = vmatpush.msra.mxu0 0.0
    %2102 = vmatpush.msra.mxu0 0.0
    %2103 = vmatpush.msra.mxu0 0.0
    %2104 = vmatpush.msra.mxu0 0.0
    %2105 = vmatpush.msra.mxu0 0.0
    %2106 = vmatpush.msra.mxu0 0.0
    %2107 = vmatpush.msra.mxu0 0.0
    %2108 = vmatpush.msra.mxu0 0.0
    %2109 = vmatpush.msra.mxu0 0.0
    %2110 = vmatpush.msra.mxu0 %v1355
    %2111 = vmatpush.msra.mxu0 %v1354
    %2112 = vmatpush.msra.mxu0 %v1353
    %2113 = vmatpush.msra.mxu0 %v1352
    %2114 = vmatmul.f32.gmra.mxu0 %v2096
    %v2115 = vpop.f32.mrf.mxu0
    %v2116 = vadd.f32 %v1357, %v2115
    %2117 = vdwg.mxu0
    %v2118 = vadd.f32 %v2095, %v2116
    %v2119 = vxor.u32 %v2118, 2147483648
    %v2120 = vmul.f32 %v2119, 1.442695
    %v2121 = vpow.pop %v2120
    %v2122 = vadd.f32 %v2121, 1.0
    %v2123 = vrcp.pop %v2122
    %v2124 = vmul.f32 %v2122, %v2123
    %v2125 = vsub.f32 1.0, %v2124
    %v2126 = vmul.f32 %v2123, %v2125
    %v2127 = vadd.f32 %v2123, %v2126
    %vm2128 = vweird.f32 %v2122
    %vm2129 = vweird.f32 %v2123
    %vm2130 = vmor %vm2128, %vm2129
    %v2131 = vsel %vm2130, %v2123, %v2127
    %v2132 = vand.u32 2147483647, %v2122
    %vm2133 = vcmp.eq.f32.partialorder %v2132, 8.507059e+37
    %v2134 = vand.u32 %v2122, 2147483648
    %v2135 = vor.u32 1.1754944e-38, %v2134
    %v2136 = vsel %vm2133, %v2135, %v2131
    %v2137 = vmul.f32 1.0, %v2136
    %2139 = vrot.lane.b32.xlu0 %v2116, 64
    %v2140 = vpop.permute.xlu0 %2139
    %v2142 = vmul.f32 %v2137, %v2140
    %2144 = vrot.lane.b32.xlu0 %v2142, 64
    %v2145 = vpop.permute.xlu0 %2144
    %v2147 = vadd.f32 %v2095, %v2145
    %v2148 = vtanh.pop %v2147
    %v2149 = vsub.f32 1.0, %v2137
    %2151 = vrot.lane.b32.xlu0 %v2148, 96
    %v2152 = vpop.permute.xlu0 %2151
    %v2154 = vmul.f32 %v2149, %v2152
    %v2155 = vmul.f32 %v2137, %v2020
    %v2156 = vadd.f32 %v2154, %v2155
    %2158 = vrot.lane.b32.xlu0 %v2094, 96
    %v2159 = vpop.permute.xlu0 %2158
    %s2161 = scalar_lea.vmem %s8, 20
    %2162 = vst.msk [vmem:[%s2161] sm:$0xf] %vm330, %v2159
    %2164 = vrot.lane.b32.xlu0 %v2156, 96
    %v2165 = vpop.permute.xlu0 %2164
    %s2167 = scalar_lea.vmem %s9, 8
    %2168 = vst.msk [vmem:[%s2167] sm:$0xf] %vm330, %v2165
    %v2169 = vld [vmem:[#allocation4 + $0x18] sm:$0xf]
    %v2170 = vsel %vm169, %v2159, 0
    %2172 = vmatpush.msra.mxu0 0.0
    %2173 = vmatpush.msra.mxu0 0.0
    %2174 = vmatpush.msra.mxu0 0.0
    %2175 = vmatpush.msra.mxu0 0.0
    %2176 = vmatpush.msra.mxu0 0.0
    %2177 = vmatpush.msra.mxu0 0.0
    %2178 = vmatpush.msra.mxu0 0.0
    %2179 = vmatpush.msra.mxu0 0.0
    %2180 = vmatpush.msra.mxu0 0.0
    %2181 = vmatpush.msra.mxu0 0.0
    %2182 = vmatpush.msra.mxu0 0.0
    %2183 = vmatpush.msra.mxu0 0.0
    %2184 = vmatpush.msra.mxu0 %v1351
    %2185 = vmatpush.msra.mxu0 %v1350
    %2186 = vmatpush.msra.mxu0 %v1349
    %2187 = vmatpush.msra.mxu0 %v1348
    %2188 = vmatmul.f32.gmra.mxu0 %v2170
    %v2189 = vpop.f32.mrf.mxu0
    %v2190 = vadd.f32 %v1356, %v2189
    %2191 = vdwg.mxu0
    %v2192 = vadd.f32 %v2169, %v2190
    %v2193 = vxor.u32 %v2192, 2147483648
    %v2194 = vmul.f32 %v2193, 1.442695
    %v2195 = vpow.pop %v2194
    %v2196 = vadd.f32 %v2195, 1.0
    %v2197 = vrcp.pop %v2196
    %v2198 = vmul.f32 %v2196, %v2197
    %v2199 = vsub.f32 1.0, %v2198
    %v2200 = vmul.f32 %v2197, %v2199
    %v2201 = vadd.f32 %v2197, %v2200
    %vm2202 = vweird.f32 %v2196
    %vm2203 = vweird.f32 %v2197
    %vm2204 = vmor %vm2202, %vm2203
    %v2205 = vsel %vm2204, %v2197, %v2201
    %v2206 = vand.u32 2147483647, %v2196
    %vm2207 = vcmp.eq.f32.partialorder %v2206, 8.507059e+37
    %v2208 = vand.u32 %v2196, 2147483648
    %v2209 = vor.u32 1.1754944e-38, %v2208
    %v2210 = vsel %vm2207, %v2209, %v2205
    %v2211 = vmul.f32 1.0, %v2210
    %2213 = vrot.lane.b32.xlu0 %v2190, 64
    %v2214 = vpop.permute.xlu0 %2213
    %v2216 = vmul.f32 %v2211, %v2214
    %2218 = vrot.lane.b32.xlu0 %v2216, 64
    %v2219 = vpop.permute.xlu0 %2218
    %v2221 = vadd.f32 %v2169, %v2219
    %v2222 = vtanh.pop %v2221
    %v2223 = vsub.f32 1.0, %v2211
    %2225 = vrot.lane.b32.xlu0 %v2222, 96
    %v2226 = vpop.permute.xlu0 %2225
    %v2228 = vmul.f32 %v2223, %v2226
    %v2229 = vmul.f32 %v2211, %v2094
    %v2230 = vadd.f32 %v2228, %v2229
    %v2231 = vld [vmem:[#allocation5 + $0x4] sm:$0xf]
    %v2232 = vsel %vm169, %v2165, 0
    %2234 = vmatpush.msra.mxu0 0.0
    %2235 = vmatpush.msra.mxu0 0.0
    %2236 = vmatpush.msra.mxu0 0.0
    %2237 = vmatpush.msra.mxu0 0.0
    %2238 = vmatpush.msra.mxu0 0.0
    %2239 = vmatpush.msra.mxu0 0.0
    %2240 = vmatpush.msra.mxu0 0.0
    %2241 = vmatpush.msra.mxu0 0.0
    %2242 = vmatpush.msra.mxu0 0.0
    %2243 = vmatpush.msra.mxu0 0.0
    %2244 = vmatpush.msra.mxu0 0.0
    %2245 = vmatpush.msra.mxu0 0.0
    %2246 = vmatpush.msra.mxu0 %v1355
    %2247 = vmatpush.msra.mxu0 %v1354
    %2248 = vmatpush.msra.mxu0 %v1353
    %2249 = vmatpush.msra.mxu0 %v1352
    %2250 = vmatmul.f32.gmra.mxu0 %v2232
    %v2251 = vpop.f32.mrf.mxu0
    %v2252 = vadd.f32 %v1357, %v2251
    %2253 = vdwg.mxu0
    %v2254 = vadd.f32 %v2231, %v2252
    %v2255 = vxor.u32 %v2254, 2147483648
    %v2256 = vmul.f32 %v2255, 1.442695
    %v2257 = vpow.pop %v2256
    %v2258 = vadd.f32 %v2257, 1.0
    %v2259 = vrcp.pop %v2258
    %v2260 = vmul.f32 %v2258, %v2259
    %v2261 = vsub.f32 1.0, %v2260
    %v2262 = vmul.f32 %v2259, %v2261
    %v2263 = vadd.f32 %v2259, %v2262
    %vm2264 = vweird.f32 %v2258
    %vm2265 = vweird.f32 %v2259
    %vm2266 = vmor %vm2264, %vm2265
    %v2267 = vsel %vm2266, %v2259, %v2263
    %v2268 = vand.u32 2147483647, %v2258
    %vm2269 = vcmp.eq.f32.partialorder %v2268, 8.507059e+37
    %v2270 = vand.u32 %v2258, 2147483648
    %v2271 = vor.u32 1.1754944e-38, %v2270
    %v2272 = vsel %vm2269, %v2271, %v2267
    %v2273 = vmul.f32 1.0, %v2272
    %2275 = vrot.lane.b32.xlu0 %v2252, 64
    %v2276 = vpop.permute.xlu0 %2275
    %v2278 = vmul.f32 %v2273, %v2276
    %2280 = vrot.lane.b32.xlu0 %v2278, 64
    %v2281 = vpop.permute.xlu0 %2280
    %v2283 = vadd.f32 %v2231, %v2281
    %v2284 = vtanh.pop %v2283
    %v2285 = vsub.f32 1.0, %v2273
    %2287 = vrot.lane.b32.xlu0 %v2284, 96
    %v2288 = vpop.permute.xlu0 %2287
    %v2290 = vmul.f32 %v2285, %v2288
    %v2291 = vmul.f32 %v2273, %v2156
    %v2292 = vadd.f32 %v2290, %v2291
    %2294 = vrot.lane.b32.xlu0 %v2230, 96
    %v2295 = vpop.permute.xlu0 %2294
    %s2297 = scalar_lea.vmem %s8, 24
    %2298 = vst.msk [vmem:[%s2297] sm:$0xf] %vm330, %v2295
    %2300 = vrot.lane.b32.xlu0 %v2292, 96
    %v2301 = vpop.permute.xlu0 %2300
    %s2303 = scalar_lea.vmem %s9, 4
    %2304 = vst.msk [vmem:[%s2303] sm:$0xf] %vm330, %v2301
    %v2305 = vld [vmem:[#allocation4 + $0x1c] sm:$0xf]
    %v2306 = vsel %vm169, %v2295, 0
    %2308 = vmatpush.msra.mxu0 0.0
    %2309 = vmatpush.msra.mxu0 0.0
    %2310 = vmatpush.msra.mxu0 0.0
    %2311 = vmatpush.msra.mxu0 0.0
    %2312 = vmatpush.msra.mxu0 0.0
    %2313 = vmatpush.msra.mxu0 0.0
    %2314 = vmatpush.msra.mxu0 0.0
    %2315 = vmatpush.msra.mxu0 0.0
    %2316 = vmatpush.msra.mxu0 0.0
    %2317 = vmatpush.msra.mxu0 0.0
    %2318 = vmatpush.msra.mxu0 0.0
    %2319 = vmatpush.msra.mxu0 0.0
    %2320 = vmatpush.msra.mxu0 %v1351
    %2321 = vmatpush.msra.mxu0 %v1350
    %2322 = vmatpush.msra.mxu0 %v1349
    %2323 = vmatpush.msra.mxu0 %v1348
    %2324 = vmatmul.f32.gmra.mxu0 %v2306
    %v2325 = vpop.f32.mrf.mxu0
    %v2326 = vadd.f32 %v1356, %v2325
    %2327 = vdwg.mxu0
    %v2328 = vadd.f32 %v2305, %v2326
    %v2329 = vxor.u32 %v2328, 2147483648
    %v2330 = vmul.f32 %v2329, 1.442695
    %v2331 = vpow.pop %v2330
    %v2332 = vadd.f32 %v2331, 1.0
    %v2333 = vrcp.pop %v2332
    %v2334 = vmul.f32 %v2332, %v2333
    %v2335 = vsub.f32 1.0, %v2334
    %v2336 = vmul.f32 %v2333, %v2335
    %v2337 = vadd.f32 %v2333, %v2336
    %vm2338 = vweird.f32 %v2332
    %vm2339 = vweird.f32 %v2333
    %vm2340 = vmor %vm2338, %vm2339
    %v2341 = vsel %vm2340, %v2333, %v2337
    %v2342 = vand.u32 2147483647, %v2332
    %vm2343 = vcmp.eq.f32.partialorder %v2342, 8.507059e+37
    %v2344 = vand.u32 %v2332, 2147483648
    %v2345 = vor.u32 1.1754944e-38, %v2344
    %v2346 = vsel %vm2343, %v2345, %v2341
    %v2347 = vmul.f32 1.0, %v2346
    %2349 = vrot.lane.b32.xlu0 %v2326, 64
    %v2350 = vpop.permute.xlu0 %2349
    %v2352 = vmul.f32 %v2347, %v2350
    %2354 = vrot.lane.b32.xlu0 %v2352, 64
    %v2355 = vpop.permute.xlu0 %2354
    %v2357 = vadd.f32 %v2305, %v2355
    %v2358 = vtanh.pop %v2357
    %v2359 = vsub.f32 1.0, %v2347
    %2361 = vrot.lane.b32.xlu0 %v2358, 96
    %v2362 = vpop.permute.xlu0 %2361
    %v2364 = vmul.f32 %v2359, %v2362
    %v2365 = vmul.f32 %v2347, %v2230
    %v2366 = vadd.f32 %v2364, %v2365
    %v2367 = vld [vmem:[#allocation5] sm:$0xf]
    %v2368 = vsel %vm169, %v2301, 0
    %2370 = vmatpush.msra.mxu0 0.0
    %2371 = vmatpush.msra.mxu0 0.0
    %2372 = vmatpush.msra.mxu0 0.0
    %2373 = vmatpush.msra.mxu0 0.0
    %2374 = vmatpush.msra.mxu0 0.0
    %2375 = vmatpush.msra.mxu0 0.0
    %2376 = vmatpush.msra.mxu0 0.0
    %2377 = vmatpush.msra.mxu0 0.0
    %2378 = vmatpush.msra.mxu0 0.0
    %2379 = vmatpush.msra.mxu0 0.0
    %2380 = vmatpush.msra.mxu0 0.0
    %2381 = vmatpush.msra.mxu0 0.0
    %2382 = vmatpush.msra.mxu0 %v1355
    %2383 = vmatpush.msra.mxu0 %v1354
    %2384 = vmatpush.msra.mxu0 %v1353
    %2385 = vmatpush.msra.mxu0 %v1352
    %2386 = vmatmul.f32.gmra.mxu0 %v2368
    %v2387 = vpop.f32.mrf.mxu0
    %v2388 = vadd.f32 %v1357, %v2387
    %2389 = vdwg.mxu0
    %v2390 = vadd.f32 %v2367, %v2388
    %v2391 = vxor.u32 %v2390, 2147483648
    %v2392 = vmul.f32 %v2391, 1.442695
    %v2393 = vpow.pop %v2392
    %v2394 = vadd.f32 %v2393, 1.0
    %v2395 = vrcp.pop %v2394
    %v2396 = vmul.f32 %v2394, %v2395
    %v2397 = vsub.f32 1.0, %v2396
    %v2398 = vmul.f32 %v2395, %v2397
    %v2399 = vadd.f32 %v2395, %v2398
    %vm2400 = vweird.f32 %v2394
    %vm2401 = vweird.f32 %v2395
    %vm2402 = vmor %vm2400, %vm2401
    %v2403 = vsel %vm2402, %v2395, %v2399
    %v2404 = vand.u32 2147483647, %v2394
    %vm2405 = vcmp.eq.f32.partialorder %v2404, 8.507059e+37
    %v2406 = vand.u32 %v2394, 2147483648
    %v2407 = vor.u32 1.1754944e-38, %v2406
    %v2408 = vsel %vm2405, %v2407, %v2403
    %v2409 = vmul.f32 1.0, %v2408
    %2411 = vrot.lane.b32.xlu0 %v2388, 64
    %v2412 = vpop.permute.xlu0 %2411
    %v2414 = vmul.f32 %v2409, %v2412
    %2416 = vrot.lane.b32.xlu0 %v2414, 64
    %v2417 = vpop.permute.xlu0 %2416
    %v2419 = vadd.f32 %v2367, %v2417
    %v2420 = vtanh.pop %v2419
    %v2421 = vsub.f32 1.0, %v2409
    %2423 = vrot.lane.b32.xlu0 %v2420, 96
    %v2424 = vpop.permute.xlu0 %2423
    %v2426 = vmul.f32 %v2421, %v2424
    %v2427 = vmul.f32 %v2409, %v2292
    %v2428 = vadd.f32 %v2426, %v2427
    %2430 = vrot.lane.b32.xlu0 %v2366, 96
    %v2431 = vpop.permute.xlu0 %2430
    %s2433 = scalar_lea.vmem %s8, 28
    %2434 = vst.msk [vmem:[%s2433] sm:$0xf] %vm330, %v2431
    %2436 = vrot.lane.b32.xlu0 %v2428, 96
    %v2437 = vpop.permute.xlu0 %2436
    %2439 = vst.msk [vmem:[%s9] sm:$0xf] %vm330, %v2437
    %2440 = vst.msk [vmem:[#allocation15] sm:$0xf] %vm330, %v2431
    %s2441 = scalar_lea.vmem [#allocation15], 4
    %2442 = vst.msk [vmem:[%s2441] sm:$0xf] %vm330, %v2437
    %v2443 = vld [vmem:[%s8] sm:$0xf]
    %v2444 = vld [vmem:[%s8 + $0x4] sm:$0xf]
    %v2445 = vld [vmem:[%s8 + $0x8] sm:$0xf]
    %v2446 = vld [vmem:[%s8 + $0xc] sm:$0xf]
    %v2447 = vld [vmem:[%s8 + $0x10] sm:$0xf]
    %v2448 = vld [vmem:[%s8 + $0x14] sm:$0xf]
    %v2449 = vld [vmem:[%s8 + $0x18] sm:$0xf]
    %v2450 = vld [vmem:[%s8 + $0x1c] sm:$0xf]
    %v2451 = vld [vmem:[%s9] sm:$0xf]
    %v2452 = vld [vmem:[%s9 + $0x4] sm:$0xf]
    %v2453 = vld [vmem:[%s9 + $0x8] sm:$0xf]
    %v2454 = vld [vmem:[%s9 + $0xc] sm:$0xf]
    %v2455 = vld [vmem:[%s9 + $0x10] sm:$0xf]
    %v2456 = vld [vmem:[%s9 + $0x14] sm:$0xf]
    %v2457 = vld [vmem:[%s9 + $0x18] sm:$0xf]
    %v2458 = vld [vmem:[%s9 + $0x1c] sm:$0xf]
    %v2459 = vsel %vm330, %v2443, 0.0
    %2460 = vadd.xlane.f32.xlu0 %v2459
    %v2461 = vpop.xlane.xlu0 %2460
    %v2462 = vsel %vm330, %v2444, 0.0
    %2463 = vadd.xlane.f32.xlu0 %v2462
    %v2464 = vpop.xlane.xlu0 %2463
    %v2465 = vsel %vm330, %v2445, 0.0
    %2466 = vadd.xlane.f32.xlu0 %v2465
    %v2467 = vpop.xlane.xlu0 %2466
    %v2468 = vsel %vm330, %v2446, 0.0
    %2469 = vadd.xlane.f32.xlu0 %v2468
    %v2470 = vpop.xlane.xlu0 %2469
    %v2471 = vsel %vm330, %v2447, 0.0
    %2472 = vadd.xlane.f32.xlu0 %v2471
    %v2473 = vpop.xlane.xlu0 %2472
    %v2474 = vsel %vm330, %v2448, 0.0
    %2475 = vadd.xlane.f32.xlu0 %v2474
    %v2476 = vpop.xlane.xlu0 %2475
    %v2477 = vsel %vm330, %v2449, 0.0
    %2478 = vadd.xlane.f32.xlu0 %v2477
    %v2479 = vpop.xlane.xlu0 %2478
    %v2480 = vsel %vm330, %v2450, 0.0
    %2481 = vadd.xlane.f32.xlu0 %v2480
    %v2482 = vpop.xlane.xlu0 %2481
    %v2483 = vsel %vm330, %v2451, 0.0
    %2484 = vadd.xlane.f32.xlu0 %v2483
    %v2485 = vpop.xlane.xlu0 %2484
    %v2486 = vsel %vm330, %v2452, 0.0
    %2487 = vadd.xlane.f32.xlu0 %v2486
    %v2488 = vpop.xlane.xlu0 %2487
    %v2489 = vsel %vm330, %v2453, 0.0
    %2490 = vadd.xlane.f32.xlu0 %v2489
    %v2491 = vpop.xlane.xlu0 %2490
    %v2492 = vsel %vm330, %v2454, 0.0
    %2493 = vadd.xlane.f32.xlu0 %v2492
    %v2494 = vpop.xlane.xlu0 %2493
    %v2495 = vsel %vm330, %v2455, 0.0
    %2496 = vadd.xlane.f32.xlu0 %v2495
    %v2497 = vpop.xlane.xlu0 %2496
    %v2498 = vsel %vm330, %v2456, 0.0
    %2499 = vadd.xlane.f32.xlu0 %v2498
    %v2500 = vpop.xlane.xlu0 %2499
    %v2501 = vsel %vm330, %v2457, 0.0
    %2502 = vadd.xlane.f32.xlu0 %v2501
    %v2503 = vpop.xlane.xlu0 %2502
    %v2504 = vsel %vm330, %v2458, 0.0
    %2505 = vadd.xlane.f32.xlu0 %v2504
    %v2506 = vpop.xlane.xlu0 %2505
    %v2507 = vadd.f32 %v2461, %v2485
    %v2508 = vadd.f32 %v2464, %v2488
    %v2509 = vadd.f32 %v2467, %v2491
    %v2510 = vadd.f32 %v2470, %v2494
    %v2511 = vadd.f32 %v2473, %v2497
    %v2512 = vadd.f32 %v2476, %v2500
    %v2513 = vadd.f32 %v2479, %v2503
    %v2514 = vadd.f32 %v2482, %v2506
    %v2515 = vmul.f32 %v2507, 0.015625
    %v2516 = vmul.f32 %v2508, 0.015625
    %v2517 = vmul.f32 %v2509, 0.015625
    %v2518 = vmul.f32 %v2510, 0.015625
    %v2519 = vmul.f32 %v2511, 0.015625
    %v2520 = vmul.f32 %v2512, 0.015625
    %v2521 = vmul.f32 %v2513, 0.015625
    %v2522 = vmul.f32 %v2514, 0.015625
    %v2523 = vsub.f32 %v2443, %v2515
    %v2524 = vsub.f32 %v2444, %v2516
    %v2525 = vsub.f32 %v2445, %v2517
    %v2526 = vsub.f32 %v2446, %v2518
    %v2527 = vsub.f32 %v2447, %v2519
    %v2528 = vsub.f32 %v2448, %v2520
    %v2529 = vsub.f32 %v2449, %v2521
    %v2530 = vsub.f32 %v2450, %v2522
    %v2531 = vmul.f32 %v2523, %v2523
    %v2532 = vmul.f32 %v2524, %v2524
    %v2533 = vmul.f32 %v2525, %v2525
    %v2534 = vmul.f32 %v2526, %v2526
    %v2535 = vmul.f32 %v2527, %v2527
    %v2536 = vmul.f32 %v2528, %v2528
    %v2537 = vmul.f32 %v2529, %v2529
    %v2538 = vmul.f32 %v2530, %v2530
    %v2539 = vsel %vm330, %v2531, 0.0
    %2540 = vadd.xlane.f32.xlu0 %v2539
    %v2541 = vpop.xlane.xlu0 %2540
    %v2542 = vsel %vm330, %v2532, 0.0
    %2543 = vadd.xlane.f32.xlu0 %v2542
    %v2544 = vpop.xlane.xlu0 %2543
    %v2545 = vsel %vm330, %v2533, 0.0
    %2546 = vadd.xlane.f32.xlu0 %v2545
    %v2547 = vpop.xlane.xlu0 %2546
    %v2548 = vsel %vm330, %v2534, 0.0
    %2549 = vadd.xlane.f32.xlu0 %v2548
    %v2550 = vpop.xlane.xlu0 %2549
    %v2551 = vsel %vm330, %v2535, 0.0
    %2552 = vadd.xlane.f32.xlu0 %v2551
    %v2553 = vpop.xlane.xlu0 %2552
    %v2554 = vsel %vm330, %v2536, 0.0
    %2555 = vadd.xlane.f32.xlu0 %v2554
    %v2556 = vpop.xlane.xlu0 %2555
    %v2557 = vsel %vm330, %v2537, 0.0
    %2558 = vadd.xlane.f32.xlu0 %v2557
    %v2559 = vpop.xlane.xlu0 %2558
    %v2560 = vsel %vm330, %v2538, 0.0
    %2561 = vadd.xlane.f32.xlu0 %v2560
    %v2562 = vpop.xlane.xlu0 %2561
    %v2563 = vsub.f32 %v2451, %v2515
    %v2564 = vsub.f32 %v2452, %v2516
    %v2565 = vsub.f32 %v2453, %v2517
    %v2566 = vsub.f32 %v2454, %v2518
    %v2567 = vsub.f32 %v2455, %v2519
    %v2568 = vsub.f32 %v2456, %v2520
    %v2569 = vsub.f32 %v2457, %v2521
    %v2570 = vsub.f32 %v2458, %v2522
    %v2571 = vmul.f32 %v2563, %v2563
    %v2572 = vmul.f32 %v2564, %v2564
    %v2573 = vmul.f32 %v2565, %v2565
    %v2574 = vmul.f32 %v2566, %v2566
    %v2575 = vmul.f32 %v2567, %v2567
    %v2576 = vmul.f32 %v2568, %v2568
    %v2577 = vmul.f32 %v2569, %v2569
    %v2578 = vmul.f32 %v2570, %v2570
    %v2579 = vsel %vm330, %v2571, 0.0
    %2580 = vadd.xlane.f32.xlu0 %v2579
    %v2581 = vpop.xlane.xlu0 %2580
    %v2582 = vsel %vm330, %v2572, 0.0
    %2583 = vadd.xlane.f32.xlu0 %v2582
    %v2584 = vpop.xlane.xlu0 %2583
    %v2585 = vsel %vm330, %v2573, 0.0
    %2586 = vadd.xlane.f32.xlu0 %v2585
    %v2587 = vpop.xlane.xlu0 %2586
    %v2588 = vsel %vm330, %v2574, 0.0
    %2589 = vadd.xlane.f32.xlu0 %v2588
    %v2590 = vpop.xlane.xlu0 %2589
    %v2591 = vsel %vm330, %v2575, 0.0
    %2592 = vadd.xlane.f32.xlu0 %v2591
    %v2593 = vpop.xlane.xlu0 %2592
    %v2594 = vsel %vm330, %v2576, 0.0
    %2595 = vadd.xlane.f32.xlu0 %v2594
    %v2596 = vpop.xlane.xlu0 %2595
    %v2597 = vsel %vm330, %v2577, 0.0
    %2598 = vadd.xlane.f32.xlu0 %v2597
    %v2599 = vpop.xlane.xlu0 %2598
    %v2600 = vsel %vm330, %v2578, 0.0
    %2601 = vadd.xlane.f32.xlu0 %v2600
    %v2602 = vpop.xlane.xlu0 %2601
    %v2603 = vadd.f32 %v2541, %v2581
    %v2604 = vadd.f32 %v2544, %v2584
    %v2605 = vadd.f32 %v2547, %v2587
    %v2606 = vadd.f32 %v2550, %v2590
    %v2607 = vadd.f32 %v2553, %v2593
    %v2608 = vadd.f32 %v2556, %v2596
    %v2609 = vadd.f32 %v2559, %v2599
    %v2610 = vadd.f32 %v2562, %v2602
    %v2611 = vmul.f32 %v2603, 0.015625
    %v2612 = vmul.f32 %v2604, 0.015625
    %v2613 = vmul.f32 %v2605, 0.015625
    %v2614 = vmul.f32 %v2606, 0.015625
    %v2615 = vmul.f32 %v2607, 0.015625
    %v2616 = vmul.f32 %v2608, 0.015625
    %v2617 = vmul.f32 %v2609, 0.015625
    %v2618 = vmul.f32 %v2610, 0.015625
    %v2619 = vadd.f32 %v2611, 1e-05
    %v2620 = vadd.f32 %v2612, 1e-05
    %v2621 = vadd.f32 %v2613, 1e-05
    %v2622 = vadd.f32 %v2614, 1e-05
    %v2623 = vadd.f32 %v2615, 1e-05
    %v2624 = vadd.f32 %v2616, 1e-05
    %v2625 = vadd.f32 %v2617, 1e-05
    %v2626 = vadd.f32 %v2618, 1e-05
    %v2627 = vrsqrt.pop %v2619
    %v2628 = vmul.f32 %v2627, %v2619
    %v2629 = vmul.f32 %v2628, %v2627
    %v2630 = vmul.f32 0.5, %v2629
    %v2631 = vsub.f32 1.5, %v2630
    %v2632 = vmul.f32 %v2627, %v2631
    %vm2633 = vweird.f32 %v2619
    %vm2634 = vweird.f32 %v2627
    %vm2635 = vmor %vm2633, %vm2634
    %v2636 = vsel %vm2635, %v2627, %v2632
    %v2637 = vrsqrt.pop %v2620
    %v2638 = vmul.f32 %v2637, %v2620
    %v2639 = vmul.f32 %v2638, %v2637
    %v2640 = vmul.f32 0.5, %v2639
    %v2641 = vsub.f32 1.5, %v2640
    %v2642 = vmul.f32 %v2637, %v2641
    %vm2643 = vweird.f32 %v2620
    %vm2644 = vweird.f32 %v2637
    %vm2645 = vmor %vm2643, %vm2644
    %v2646 = vsel %vm2645, %v2637, %v2642
    %v2647 = vrsqrt.pop %v2621
    %v2648 = vmul.f32 %v2647, %v2621
    %v2649 = vmul.f32 %v2648, %v2647
    %v2650 = vmul.f32 0.5, %v2649
    %v2651 = vsub.f32 1.5, %v2650
    %v2652 = vmul.f32 %v2647, %v2651
    %vm2653 = vweird.f32 %v2621
    %vm2654 = vweird.f32 %v2647
    %vm2655 = vmor %vm2653, %vm2654
    %v2656 = vsel %vm2655, %v2647, %v2652
    %v2657 = vrsqrt.pop %v2622
    %v2658 = vmul.f32 %v2657, %v2622
    %v2659 = vmul.f32 %v2658, %v2657
    %v2660 = vmul.f32 0.5, %v2659
    %v2661 = vsub.f32 1.5, %v2660
    %v2662 = vmul.f32 %v2657, %v2661
    %vm2663 = vweird.f32 %v2622
    %vm2664 = vweird.f32 %v2657
    %vm2665 = vmor %vm2663, %vm2664
    %v2666 = vsel %vm2665, %v2657, %v2662
    %v2667 = vrsqrt.pop %v2623
    %v2668 = vmul.f32 %v2667, %v2623
    %v2669 = vmul.f32 %v2668, %v2667
    %v2670 = vmul.f32 0.5, %v2669
    %v2671 = vsub.f32 1.5, %v2670
    %v2672 = vmul.f32 %v2667, %v2671
    %vm2673 = vweird.f32 %v2623
    %vm2674 = vweird.f32 %v2667
    %vm2675 = vmor %vm2673, %vm2674
    %v2676 = vsel %vm2675, %v2667, %v2672
    %v2677 = vrsqrt.pop %v2624
    %v2678 = vmul.f32 %v2677, %v2624
    %v2679 = vmul.f32 %v2678, %v2677
    %v2680 = vmul.f32 0.5, %v2679
    %v2681 = vsub.f32 1.5, %v2680
    %v2682 = vmul.f32 %v2677, %v2681
    %vm2683 = vweird.f32 %v2624
    %vm2684 = vweird.f32 %v2677
    %vm2685 = vmor %vm2683, %vm2684
    %v2686 = vsel %vm2685, %v2677, %v2682
    %v2687 = vrsqrt.pop %v2625
    %v2688 = vmul.f32 %v2687, %v2625
    %v2689 = vmul.f32 %v2688, %v2687
    %v2690 = vmul.f32 0.5, %v2689
    %v2691 = vsub.f32 1.5, %v2690
    %v2692 = vmul.f32 %v2687, %v2691
    %vm2693 = vweird.f32 %v2625
    %vm2694 = vweird.f32 %v2687
    %vm2695 = vmor %vm2693, %vm2694
    %v2696 = vsel %vm2695, %v2687, %v2692
    %v2697 = vrsqrt.pop %v2626
    %v2698 = vmul.f32 %v2697, %v2626
    %v2699 = vmul.f32 %v2698, %v2697
    %v2700 = vmul.f32 0.5, %v2699
    %v2701 = vsub.f32 1.5, %v2700
    %v2702 = vmul.f32 %v2697, %v2701
    %vm2703 = vweird.f32 %v2626
    %vm2704 = vweird.f32 %v2697
    %vm2705 = vmor %vm2703, %vm2704
    %v2706 = vsel %vm2705, %v2697, %v2702
    %v2707 = vmul.f32 %v2523, %v2636
    %v2708 = vmul.f32 %v2524, %v2646
    %v2709 = vmul.f32 %v2525, %v2656
    %v2710 = vmul.f32 %v2526, %v2666
    %v2711 = vmul.f32 %v2527, %v2676
    %v2712 = vmul.f32 %v2528, %v2686
    %v2713 = vmul.f32 %v2529, %v2696
    %v2714 = vmul.f32 %v2530, %v2706
    %v2715 = vperm.slane %v107, 4
    %v2716 = vmul.f32 %v2707, %v2715
    %v2717 = vmul.f32 %v2708, %v2715
    %v2718 = vmul.f32 %v2709, %v2715
    %v2719 = vmul.f32 %v2710, %v2715
    %v2720 = vmul.f32 %v2711, %v2715
    %v2721 = vmul.f32 %v2712, %v2715
    %v2722 = vmul.f32 %v2713, %v2715
    %v2723 = vmul.f32 %v2714, %v2715
    %v2724 = vperm.slane %v107, 6
    %v2725 = vadd.f32 %v2716, %v2724
    %v2726 = vadd.f32 %v2717, %v2724
    %v2727 = vadd.f32 %v2718, %v2724
    %v2728 = vadd.f32 %v2719, %v2724
    %v2729 = vadd.f32 %v2720, %v2724
    %v2730 = vadd.f32 %v2721, %v2724
    %v2731 = vadd.f32 %v2722, %v2724
    %v2732 = vadd.f32 %v2723, %v2724
    %2733 = vst.msk [vmem:[%s8] sm:$0xf] %vm330, %v2725
    %2734 = vst.msk [vmem:[%s8 + $0x4] sm:$0xf] %vm330, %v2726
    %2735 = vst.msk [vmem:[%s8 + $0x8] sm:$0xf] %vm330, %v2727
    %2736 = vst.msk [vmem:[%s8 + $0xc] sm:$0xf] %vm330, %v2728
    %2737 = vst.msk [vmem:[%s8 + $0x10] sm:$0xf] %vm330, %v2729
    %2738 = vst.msk [vmem:[%s8 + $0x14] sm:$0xf] %vm330, %v2730
    %2739 = vst.msk [vmem:[%s8 + $0x18] sm:$0xf] %vm330, %v2731
    %2740 = vst.msk [vmem:[%s8 + $0x1c] sm:$0xf] %vm330, %v2732
    %v2741 = vmul.f32 %v2563, %v2636
    %v2742 = vmul.f32 %v2564, %v2646
    %v2743 = vmul.f32 %v2565, %v2656
    %v2744 = vmul.f32 %v2566, %v2666
    %v2745 = vmul.f32 %v2567, %v2676
    %v2746 = vmul.f32 %v2568, %v2686
    %v2747 = vmul.f32 %v2569, %v2696
    %v2748 = vmul.f32 %v2570, %v2706
    %v2749 = vperm.slane %v107, 5
    %v2750 = vmul.f32 %v2741, %v2749
    %v2751 = vmul.f32 %v2742, %v2749
    %v2752 = vmul.f32 %v2743, %v2749
    %v2753 = vmul.f32 %v2744, %v2749
    %v2754 = vmul.f32 %v2745, %v2749
    %v2755 = vmul.f32 %v2746, %v2749
    %v2756 = vmul.f32 %v2747, %v2749
    %v2757 = vmul.f32 %v2748, %v2749
    %v2758 = vperm.slane %v107, 7
    %v2759 = vadd.f32 %v2750, %v2758
    %v2760 = vadd.f32 %v2751, %v2758
    %v2761 = vadd.f32 %v2752, %v2758
    %v2762 = vadd.f32 %v2753, %v2758
    %v2763 = vadd.f32 %v2754, %v2758
    %v2764 = vadd.f32 %v2755, %v2758
    %v2765 = vadd.f32 %v2756, %v2758
    %v2766 = vadd.f32 %v2757, %v2758
    %2767 = vst.msk [vmem:[%s9] sm:$0xf] %vm330, %v2759
    %2768 = vst.msk [vmem:[%s9 + $0x4] sm:$0xf] %vm330, %v2760
    %2769 = vst.msk [vmem:[%s9 + $0x8] sm:$0xf] %vm330, %v2761
    %2770 = vst.msk [vmem:[%s9 + $0xc] sm:$0xf] %vm330, %v2762
    %2771 = vst.msk [vmem:[%s9 + $0x10] sm:$0xf] %vm330, %v2763
    %2772 = vst.msk [vmem:[%s9 + $0x14] sm:$0xf] %vm330, %v2764
    %2773 = vst.msk [vmem:[%s9 + $0x18] sm:$0xf] %vm330, %v2765
    %2774 = vst.msk [vmem:[%s9 + $0x1c] sm:$0xf] %vm330, %v2766
    // Predicated region
    $region54: #{encoder_forward.1} parent=1 // pred_check
      _
    $region55: #{encoder_forward.1} parent=1 // pred_check_branch
      %2776 = sbr.rel (0) target = $region57
    $region56: #{encoder_forward.1} parent=1 // pred_region
      _
    $region57: #{encoder_forward.1} parent=1 // pred_fallthru
      _
    // Predicated region
    $region58: #{encoder_forward.1} parent=1 // pred_check
      _
    $region59: #{encoder_forward.1} parent=1 // pred_check_branch
      %2778 = sbr.rel (0) target = $region61
    $region60: #{encoder_forward.1} parent=1 // pred_region
      _
    $region61: #{encoder_forward.1} parent=1 // pred_fallthru
      _
    // Predicated region
    $region62: #{encoder_forward.1} parent=1 // pred_check
      _
    $region63: #{encoder_forward.1} parent=1 // pred_check_branch
      %2780 = sbr.rel (0) target = $region65
    $region64: #{encoder_forward.1} parent=1 // pred_region
      %2782 = vsyncadd [#allocation8], 0
      %s2783 = sshll.u32 [#allocation15], 4
      %s2784 = int_to_ptr.vmem [resolvable:$true] %s2783
      %s2785 = sshll.u32 %s10, 4
      %s2786 = int_to_ptr.hbm [resolvable:$true] %s2785
      %2791 = dma.vmem_to_hbm [thread:$0]  %s2784, 128, %s2786, [#allocation8], 64, 64, 4
    $region65: #{encoder_forward.1} parent=1 // pred_fallthru
      _
    // Predicated region
    $region66: #{encoder_forward.1} parent=1 // pred_check
      _
    $region67: #{encoder_forward.1} parent=1 // pred_check_branch
      %2793 = sbr.rel (0) target = $region69
    $region68: #{encoder_forward.1} parent=1 // pred_region
      _
    $region69: #{encoder_forward.1} parent=1 // pred_fallthru
      _
    // Predicated region
    $region70: #{encoder_forward.1} parent=1 // pred_check
      _
    $region71: #{encoder_forward.1} parent=1 // pred_check_branch
      %2795 = sbr.rel (0) target = $region73
    $region72: #{encoder_forward.1} parent=1 // pred_region
      _
    $region73: #{encoder_forward.1} parent=1 // pred_fallthru
      _
    // Predicated region
    $region74: #{encoder_forward.1} parent=1 // pred_check
      _
    $region75: #{encoder_forward.1} parent=1 // pred_check_branch
      %2797 = sbr.rel (0) target = $region77
    $region76: #{encoder_forward.1} parent=1 // pred_region
      %2799 = dma.done [#allocation8], 128
    $region77: #{encoder_forward.1} parent=1 // pred_fallthru
      _
    %2800 = vsyncpa [#allocation7], 1
    %2801 = vsyncpa [#allocation10], 1
    %2802 = vsyncpa [#allocation13], 1
    %2803 = vsyncpa [#allocation8], 1

</llo_original>
